<compile_context>
chip_gen: v5e
topology: v5e:2x2
jax: 0.10.0
libtpu: 0.0.40
codegen_flags: <defaults>
</compile_context>

<pallas_src>
import functools

import jax
import jax.numpy as jnp
from jax.experimental import pallas as pl
from jax.experimental.pallas import tpu as pltpu

_HID1, _HID2, _NCLS = 512, 256, 2


def _image_da_all_kernel(x_ref, w1t_ref, b1_ref, w2t_ref, b2_ref, w3_ref,
                         b3_ref, out_ref, acc_ref, *, l_total):
    # x_ref:   (B, D, TILE_L)  channels-first tile of the input
    # w1t_ref: (512, D) bf16   b1_ref: (512, 1) f32
    # w2t_ref: (256, 512) bf16 b2_ref: (256, 1) f32
    # w3_ref:  (256, 2) f32    b3_ref: (1, 2) f32
    # acc_ref: (256, B) f32    running pooled sum (resident across grid steps)
    k = pl.program_id(0)
    nb, _, tl = x_ref.shape

    @pl.when(k == 0)
    def _init():
        acc_ref[...] = jnp.zeros_like(acc_ref)

    # Lane mask for the (possibly partial) last tile: positions >= L are
    # padding and must not contribute to the pooled sum.
    pos = jax.lax.broadcasted_iota(jnp.int32, (1, tl), 1) + k * tl
    valid = pos < l_total                                       # (1, TILE_L)

    cols = []
    for b in range(nb):                 # B is small & static -> unrolled
        xb = x_ref[b].astype(jnp.bfloat16)                      # (D, TILE_L)

        # Conv1d(dim, 512, k=1): (512, D) @ (D, TILE_L), bf16 in / f32 acc.
        h1 = jnp.dot(w1t_ref[...], xb,
                     preferred_element_type=jnp.float32)        # (512, TILE_L)
        h1 = jnp.maximum(h1 + b1_ref[...], 0.0)

        # Conv1d(512, 256, k=1): the dominant MXU matmul.
        h2 = jnp.dot(w2t_ref[...], h1.astype(jnp.bfloat16),
                     preferred_element_type=jnp.float32)        # (256, TILE_L)
        h2 = jnp.maximum(h2 + b2_ref[...], 0.0)

        # Mask padded tail positions, then reduce over the length axis.
        h2 = jnp.where(valid, h2, 0.0)
        cols.append(jnp.sum(h2, axis=1, keepdims=True))         # (256, 1)

    acc_ref[...] += jnp.concatenate(cols, axis=1)               # (256, B)

    @pl.when(k == pl.num_programs(0) - 1)
    def _finalize():
        # AdaptiveAvgPool1d(1): divide the accumulated sum by the true L once.
        pooled = (acc_ref[...] * (1.0 / l_total)).T             # (B, 256) f32
        logits = jnp.dot(pooled, w3_ref[...],
                         preferred_element_type=jnp.float32)    # Linear(256, 2)
        out_ref[...] = logits + b3_ref[...]


def _vmem_capacity_bytes():
    try:
        return int(pltpu.get_tpu_info().vmem_capacity_bytes)
    except Exception:
        return 64 * 1024 * 1024   # v7x physical VMEM; conservative elsewhere


def _pick_tile_l(batch, dim, length, x_itemsize, vmem_bytes):
    """Largest L tile whose f32 intermediates stay well inside VMEM."""
    if length <= 512:
        return length                     # one full-extent block is always legal
    # Per-position footprint: h1 + h2 (f32, per unrolled batch) plus the
    # double-buffered x slab.  Keep it around <=30% of VMEM so resident
    # weights / accumulator / pipeline buffers fit comfortably.
    per_pos = batch * ((_HID1 + _HID2) * 4 + 2 * dim * x_itemsize)
    budget = int(vmem_bytes * 0.30)
    tile = (budget // per_pos) // 128 * 128
    return int(max(128, min(8192, tile)))


def image_da_all_forward(x_ncl, need_backprop, params, *, tile_l=None):
    """Forward of _ImageDA_all.

    x_ncl:          (B, dim, L) array in PyTorch NCL layout (consumed as-is).
    need_backprop:  scalar / (1,) array (domain label).
    params:         dict of weights (see init_params).
    Returns (logits (B, 2) float32, label (B,) int32).
    """
    B, D, L = x_ncl.shape

    # grad_reverse is the identity in the forward pass.
    # Kernel-side weight layouts: channels-first (transposed) bf16 for the two
    # big matmuls, f32 biases as columns, f32 head weights.
    w1t = params["w1"].T.astype(jnp.bfloat16)                   # (512, D)
    b1c = params["b1"].astype(jnp.float32).reshape(_HID1, 1)    # (512, 1)
    w2t = params["w2"].T.astype(jnp.bfloat16)                   # (256, 512)
    b2c = params["b2"].astype(jnp.float32).reshape(_HID2, 1)    # (256, 1)
    w3 = params["w3"].astype(jnp.float32)                       # (256, 2)
    b3 = params["b3"].astype(jnp.float32).reshape(1, _NCLS)     # (1, 2)

    vmem_bytes = _vmem_capacity_bytes()
    if tile_l is None:
        tile_l = _pick_tile_l(B, D, L, x_ncl.dtype.itemsize, vmem_bytes)
    if tile_l >= L:
        tile_l = L                         # full-extent lane block: always legal
    elif tile_l % 128 != 0:
        tile_l = max(128, (tile_l // 128) * 128)
    num_tiles = pl.cdiv(L, tile_l)

    kernel = functools.partial(_image_da_all_kernel, l_total=L)

    flops = 2 * B * L * (D * _HID1 + _HID1 * _HID2) + 2 * B * _HID2 * _NCLS
    bytes_accessed = (x_ncl.size * x_ncl.dtype.itemsize
                      + (w1t.size + w2t.size) * 2
                      + (b1c.size + b2c.size + w3.size + b3.size) * 4
                      + B * _NCLS * 4)

    logits = pl.pallas_call(
        kernel,
        out_shape=jax.ShapeDtypeStruct((B, _NCLS), jnp.float32),
        grid=(num_tiles,),
        in_specs=[
            pl.BlockSpec((B, D, tile_l), lambda k: (0, 0, k)),   # x tile
            pl.BlockSpec((_HID1, D), lambda k: (0, 0)),          # w1^T (resident)
            pl.BlockSpec((_HID1, 1), lambda k: (0, 0)),          # b1
            pl.BlockSpec((_HID2, _HID1), lambda k: (0, 0)),      # w2^T (resident)
            pl.BlockSpec((_HID2, 1), lambda k: (0, 0)),          # b2
            pl.BlockSpec((_HID2, _NCLS), lambda k: (0, 0)),      # w3 (resident)
            pl.BlockSpec((1, _NCLS), lambda k: (0, 0)),          # b3
        ],
        out_specs=pl.BlockSpec((B, _NCLS), lambda k: (0, 0)),
        scratch_shapes=[pltpu.VMEM((_HID2, B), jnp.float32)],    # pooled sum acc
        compiler_params=pltpu.CompilerParams(
            dimension_semantics=("arbitrary",),
            vmem_limit_bytes=(vmem_bytes * 3) // 4),
        cost_estimate=pl.CostEstimate(flops=flops, transcendentals=0,
                                      bytes_accessed=bytes_accessed),
    )(x_ncl, w1t, b1c, w2t, b2c, w3, b3)

    # TODO(synk): ImgallLabelResizeLayer source is not provided; the standard DA
    # head broadcasts the scalar domain label to one label per batch element.
    nb_val = jnp.asarray(need_backprop).reshape(-1)[0]
    label = jnp.full((B,), nb_val, dtype=jnp.int32)
    return logits, label


def init_params(dim, key):
    """Deterministic synthetic parameters matching the module's __init__."""
    k1, k2, k3, k4, k5, k6 = jax.random.split(key, 6)
    scale = 0.1
    return {
        # Conv1d(dim, 512, 1): torch weight (512, dim, 1) -> stored as (dim, 512)
        "w1": scale * jax.random.normal(k1, (dim, _HID1), jnp.float32),
        "b1": scale * jax.random.normal(k2, (1, _HID1), jnp.float32),
        # Conv1d(512, 256, 1): torch weight (256, 512, 1) -> stored as (512, 256)
        "w2": scale * jax.random.normal(k3, (_HID1, _HID2), jnp.float32),
        "b2": scale * jax.random.normal(k4, (1, _HID2), jnp.float32),
        # Linear(256, 2): torch weight (2, 256) -> stored as (256, 2)
        "w3": scale * jax.random.normal(k5, (_HID2, _NCLS), jnp.float32),
        "b3": scale * jax.random.normal(k6, (1, _NCLS), jnp.float32),
    }


def _reference_forward(x_ncl, params):
    """Pure-JAX reference mirroring kernel numerics (bf16 matmuls, f32 acc)."""
    x = jnp.transpose(x_ncl, (0, 2, 1)).astype(jnp.bfloat16)     # (B, L, D)
    w1 = params["w1"].astype(jnp.bfloat16)
    w2 = params["w2"].astype(jnp.bfloat16)
    h1 = jnp.einsum("bld,dk->blk", x, w1, preferred_element_type=jnp.float32)
    h1 = jnp.maximum(h1 + params["b1"][None].astype(jnp.float32), 0.0)
    h2 = jnp.einsum("blk,kc->blc", h1.astype(jnp.bfloat16), w2,
                    preferred_element_type=jnp.float32)
    h2 = jnp.maximum(h2 + params["b2"][None].astype(jnp.float32), 0.0)
    pooled = jnp.mean(h2, axis=1)                                # (B, 256)
    return jnp.dot(pooled, params["w3"],
                   preferred_element_type=jnp.float32) + params["b3"]


if __name__ == "__main__":
    # Small shapes consistent with the module: batch=2, channels(dim)=4, and
    # L=300 positions.  With tile_l=128 this runs 3 grid steps and exercises
    # the tiled reduction, resident-weight path, and partial-tail masking.
    B, DIM, L = 2, 4, 300

    key = jax.random.PRNGKey(0)
    kx, kp = jax.random.split(key)
    x = jax.random.normal(kx, (B, DIM, L), jnp.float32)   # PyTorch NCL layout
    need_backprop = jnp.array([1], dtype=jnp.int32)
    params = init_params(DIM, kp)

    logits, label = image_da_all_forward(x, need_backprop, params, tile_l=128)
    logits = jax.block_until_ready(logits)
    label = jax.block_until_ready(label)

    ref = _reference_forward(x, params)
    assert logits.shape == (B, _NCLS)
    assert label.shape == (B,)
    assert bool(jnp.all(label == 1))
    assert jnp.allclose(logits, ref, atol=2e-3, rtol=2e-3), (
        f"mismatch vs reference:\n{logits}\nvs\n{ref}")

    print("KERNEL_OK")
</pallas_src>

<mosaic_0001>
module attributes {stable_mosaic.version = 11 : i64} {
  func.func @_image_da_all_kernel(%arg0: i32, %arg1: memref<2x4x128xf32, #tpu.memory_space<vmem>>, %arg2: memref<512x4xbf16, #tpu.memory_space<vmem>>, %arg3: memref<512x1xf32, #tpu.memory_space<vmem>>, %arg4: memref<256x512xbf16, #tpu.memory_space<vmem>>, %arg5: memref<256x1xf32, #tpu.memory_space<vmem>>, %arg6: memref<256x2xf32, #tpu.memory_space<vmem>>, %arg7: memref<1x2xf32, #tpu.memory_space<vmem>>, %arg8: memref<2x2xf32, #tpu.memory_space<vmem>>, %arg9: memref<256x2xf32, #tpu.memory_space<vmem>>) attributes {dimension_semantics = [#tpu.dimension_semantics<arbitrary>], iteration_bounds = array<i64: 3>, scalar_prefetch = 0 : i64, scratch_operands = 1 : i64, tpu.core_type = #tpu.core_type<tc>, window_params = [{transform_indices = @transform_0, window_bounds = array<i64: 2, 4, 128>}, {pipeline_mode = #tpu.pipeline_mode<synchronous>, transform_indices = @transform_1, window_bounds = array<i64: 512, 4>}, {pipeline_mode = #tpu.pipeline_mode<synchronous>, transform_indices = @transform_2, window_bounds = array<i64: 512, 1>}, {pipeline_mode = #tpu.pipeline_mode<synchronous>, transform_indices = @transform_3, window_bounds = array<i64: 256, 512>}, {pipeline_mode = #tpu.pipeline_mode<synchronous>, transform_indices = @transform_4, window_bounds = array<i64: 256, 1>}, {pipeline_mode = #tpu.pipeline_mode<synchronous>, transform_indices = @transform_5, window_bounds = array<i64: 256, 2>}, {pipeline_mode = #tpu.pipeline_mode<synchronous>, transform_indices = @transform_6, window_bounds = array<i64: 1, 2>}, {pipeline_mode = #tpu.pipeline_mode<synchronous>, transform_indices = @transform_7, window_bounds = array<i64: 2, 2>}]} {
    %c0_i32 = arith.constant 0 : i32
    %0 = arith.cmpi eq, %arg0, %c0_i32 : i32
    %1 = arith.extui %0 : i1 to i32
    %c0_i32_0 = arith.constant 0 : i32
    %2 = arith.cmpi ne, %1, %c0_i32_0 : i32
    scf.if %2 {
      %cst_37 = arith.constant 0.000000e+00 : f32
      %64 = vector.broadcast %cst_37 : f32 to vector<256x2xf32>
      %c0_38 = arith.constant 0 : index
      %c0_39 = arith.constant 0 : index
      %65 = vector.load %arg9[%c0_38, %c0_39] : memref<256x2xf32, #tpu.memory_space<vmem>>, vector<256x2xf32>
      tpu.vector_store %arg9[%c0_38, %c0_39], %64 {strides = array<i32>} : memref<256x2xf32, #tpu.memory_space<vmem>>, vector<256x2xf32>,
    } else {
    }
    %3 = tpu.iota {dimensions = array<i32: 1>} : vector<1x128xi32>
    %c128_i32 = arith.constant 128 : i32
    %4 = arith.muli %arg0, %c128_i32 : i32
    %5 = vector.broadcast %4 : i32 to vector<1x128xi32>
    %6 = arith.addi %3, %5 : vector<1x128xi32>
    %c300_i32 = arith.constant 300 : i32
    %7 = vector.broadcast %c300_i32 : i32 to vector<1x128xi32>
    %8 = arith.cmpi slt, %6, %7 : vector<1x128xi32>
    %c0 = arith.constant 0 : index
    %c0_1 = arith.constant 0 : index
    %c0_2 = arith.constant 0 : index
    %9 = vector.load %arg1[%c0, %c0_1, %c0_2] : memref<2x4x128xf32, #tpu.memory_space<vmem>>, vector<1x4x128xf32>
    %10 = vector.shape_cast %9 : vector<1x4x128xf32> to vector<4x128xf32>
    %11 = arith.truncf %10 : vector<4x128xf32> to vector<4x128xbf16>
    %c0_3 = arith.constant 0 : index
    %c0_4 = arith.constant 0 : index
    %12 = vector.load %arg2[%c0_3, %c0_4] : memref<512x4xbf16, #tpu.memory_space<vmem>>, vector<512x4xbf16>
    %cst = arith.constant dense<0.000000e+00> : vector<512x128xf32>
    %13 = tpu.matmul %12, %11, %cst {dimension_numbers = #tpu.dot_dimension_numbers<[1], [0], [0], [1], [0, 0, 1, 1], [], []>} : vector<512x4xbf16>, vector<4x128xbf16>, vector<512x128xf32> -> vector<512x128xf32>
    %c0_5 = arith.constant 0 : index
    %c0_6 = arith.constant 0 : index
    %14 = vector.load %arg3[%c0_5, %c0_6] : memref<512x1xf32, #tpu.memory_space<vmem>>, vector<512x1xf32>
    %15 = vector.broadcast %14 : vector<512x1xf32> to vector<512x128xf32>
    %16 = arith.addf %13, %15 : vector<512x128xf32>
    %cst_7 = arith.constant 0.000000e+00 : f32
    %17 = vector.broadcast %cst_7 : f32 to vector<512x128xf32>
    %18 = arith.maximumf %16, %17 : vector<512x128xf32>
    %c0_8 = arith.constant 0 : index
    %c0_9 = arith.constant 0 : index
    %19 = vector.load %arg4[%c0_8, %c0_9] : memref<256x512xbf16, #tpu.memory_space<vmem>>, vector<256x512xbf16>
    %20 = arith.truncf %18 : vector<512x128xf32> to vector<512x128xbf16>
    %cst_10 = arith.constant dense<0.000000e+00> : vector<256x128xf32>
    %21 = tpu.matmul %19, %20, %cst_10 {dimension_numbers = #tpu.dot_dimension_numbers<[1], [0], [0], [1], [0, 0, 1, 1], [], []>} : vector<256x512xbf16>, vector<512x128xbf16>, vector<256x128xf32> -> vector<256x128xf32>
    %c0_11 = arith.constant 0 : index
    %c0_12 = arith.constant 0 : index
    %22 = vector.load %arg5[%c0_11, %c0_12] : memref<256x1xf32, #tpu.memory_space<vmem>>, vector<256x1xf32>
    %23 = vector.broadcast %22 : vector<256x1xf32> to vector<256x128xf32>
    %24 = arith.addf %21, %23 : vector<256x128xf32>
    %cst_13 = arith.constant 0.000000e+00 : f32
    %25 = vector.broadcast %cst_13 : f32 to vector<256x128xf32>
    %26 = arith.maximumf %24, %25 : vector<256x128xf32>
    %cst_14 = arith.constant 0.000000e+00 : f32
    %27 = vector.shape_cast %8 : vector<1x128xi1> to vector<1x128xi1>
    %28 = vector.broadcast %27 : vector<1x128xi1> to vector<256x128xi1>
    %29 = vector.broadcast %cst_14 : f32 to vector<256x128xf32>
    %30 = arith.select %28, %26, %29 : vector<256x128xi1>, vector<256x128xf32>
    %cst_15 = arith.constant dense<0.000000e+00> : vector<256xf32>
    %31 = vector.multi_reduction <add>, %30, %cst_15 [1] : vector<256x128xf32> to vector<256xf32>
    %32 = vector.shape_cast %31 : vector<256xf32> to vector<256x1xf32>
    %c1 = arith.constant 1 : index
    %c0_16 = arith.constant 0 : index
    %c0_17 = arith.constant 0 : index
    %33 = vector.load %arg1[%c1, %c0_16, %c0_17] : memref<2x4x128xf32, #tpu.memory_space<vmem>>, vector<1x4x128xf32>
    %34 = vector.shape_cast %33 : vector<1x4x128xf32> to vector<4x128xf32>
    %35 = arith.truncf %34 : vector<4x128xf32> to vector<4x128xbf16>
    %c0_18 = arith.constant 0 : index
    %c0_19 = arith.constant 0 : index
    %36 = vector.load %arg2[%c0_18, %c0_19] : memref<512x4xbf16, #tpu.memory_space<vmem>>, vector<512x4xbf16>
    %cst_20 = arith.constant dense<0.000000e+00> : vector<512x128xf32>
    %37 = tpu.matmul %36, %35, %cst_20 {dimension_numbers = #tpu.dot_dimension_numbers<[1], [0], [0], [1], [0, 0, 1, 1], [], []>} : vector<512x4xbf16>, vector<4x128xbf16>, vector<512x128xf32> -> vector<512x128xf32>
    %c0_21 = arith.constant 0 : index
    %c0_22 = arith.constant 0 : index
    %38 = vector.load %arg3[%c0_21, %c0_22] : memref<512x1xf32, #tpu.memory_space<vmem>>, vector<512x1xf32>
    %39 = vector.broadcast %38 : vector<512x1xf32> to vector<512x128xf32>
    %40 = arith.addf %37, %39 : vector<512x128xf32>
    %cst_23 = arith.constant 0.000000e+00 : f32
    %41 = vector.broadcast %cst_23 : f32 to vector<512x128xf32>
    %42 = arith.maximumf %40, %41 : vector<512x128xf32>
    %c0_24 = arith.constant 0 : index
    %c0_25 = arith.constant 0 : index
    %43 = vector.load %arg4[%c0_24, %c0_25] : memref<256x512xbf16, #tpu.memory_space<vmem>>, vector<256x512xbf16>
    %44 = arith.truncf %42 : vector<512x128xf32> to vector<512x128xbf16>
    %cst_26 = arith.constant dense<0.000000e+00> : vector<256x128xf32>
    %45 = tpu.matmul %43, %44, %cst_26 {dimension_numbers = #tpu.dot_dimension_numbers<[1], [0], [0], [1], [0, 0, 1, 1], [], []>} : vector<256x512xbf16>, vector<512x128xbf16>, vector<256x128xf32> -> vector<256x128xf32>
    %c0_27 = arith.constant 0 : index
    %c0_28 = arith.constant 0 : index
    %46 = vector.load %arg5[%c0_27, %c0_28] : memref<256x1xf32, #tpu.memory_space<vmem>>, vector<256x1xf32>
    %47 = vector.broadcast %46 : vector<256x1xf32> to vector<256x128xf32>
    %48 = arith.addf %45, %47 : vector<256x128xf32>
    %cst_29 = arith.constant 0.000000e+00 : f32
    %49 = vector.broadcast %cst_29 : f32 to vector<256x128xf32>
    %50 = arith.maximumf %48, %49 : vector<256x128xf32>
    %cst_30 = arith.constant 0.000000e+00 : f32
    %51 = vector.shape_cast %8 : vector<1x128xi1> to vector<1x128xi1>
    %52 = vector.broadcast %51 : vector<1x128xi1> to vector<256x128xi1>
    %53 = vector.broadcast %cst_30 : f32 to vector<256x128xf32>
    %54 = arith.select %52, %50, %53 : vector<256x128xi1>, vector<256x128xf32>
    %cst_31 = arith.constant dense<0.000000e+00> : vector<256xf32>
    %55 = vector.multi_reduction <add>, %54, %cst_31 [1] : vector<256x128xf32> to vector<256xf32>
    %56 = vector.shape_cast %55 : vector<256xf32> to vector<256x1xf32>
    %c0_32 = arith.constant 0 : index
    %c0_33 = arith.constant 0 : index
    %57 = vector.load %arg9[%c0_32, %c0_33] : memref<256x2xf32, #tpu.memory_space<vmem>>, vector<256x2xf32>
    %58 = tpu.concatenate %32, %56 in 1 : vector<256x1xf32>, vector<256x1xf32> -> vector<256x2xf32>
    %59 = arith.addf %57, %58 : vector<256x2xf32>
    %c0_34 = arith.constant 0 : index
    %c0_35 = arith.constant 0 : index
    %60 = vector.load %arg9[%c0_34, %c0_35] : memref<256x2xf32, #tpu.memory_space<vmem>>, vector<256x2xf32>
    tpu.vector_store %arg9[%c0_34, %c0_35], %59 {strides = array<i32>} : memref<256x2xf32, #tpu.memory_space<vmem>>, vector<256x2xf32>,
    %c2_i32 = arith.constant 2 : i32
    %61 = arith.cmpi eq, %arg0, %c2_i32 : i32
    %62 = arith.extui %61 : i1 to i32
    %c0_i32_36 = arith.constant 0 : i32
    %63 = arith.cmpi ne, %62, %c0_i32_36 : i32
    scf.if %63 {
      %c0_37 = arith.constant 0 : index
      %c0_38 = arith.constant 0 : index
      %64 = vector.load %arg9[%c0_37, %c0_38] : memref<256x2xf32, #tpu.memory_space<vmem>>, vector<256x2xf32>
      %cst_39 = arith.constant 0.00333333341 : f32
      %65 = vector.broadcast %cst_39 : f32 to vector<256x2xf32>
      %66 = arith.mulf %64, %65 : vector<256x2xf32>
      %67 = tpu.transpose %66, [1, 0] : vector<256x2xf32> -> vector<2x256xf32>
      %c0_40 = arith.constant 0 : index
      %c0_41 = arith.constant 0 : index
      %68 = vector.load %arg6[%c0_40, %c0_41] : memref<256x2xf32, #tpu.memory_space<vmem>>, vector<256x2xf32>
      %cst_42 = arith.constant dense<0.000000e+00> : vector<2x2xf32>
      %69 = tpu.matmul %67, %68, %cst_42 {dimension_numbers = #tpu.dot_dimension_numbers<[1], [0], [0], [1], [0, 0, 1, 1], [], []>} : vector<2x256xf32>, vector<256x2xf32>, vector<2x2xf32> -> vector<2x2xf32>
      %c0_43 = arith.constant 0 : index
      %c0_44 = arith.constant 0 : index
      %70 = vector.load %arg7[%c0_43, %c0_44] : memref<1x2xf32, #tpu.memory_space<vmem>>, vector<1x2xf32>
      %71 = vector.broadcast %70 : vector<1x2xf32> to vector<2x2xf32>
      %72 = arith.addf %69, %71 : vector<2x2xf32>
      %c0_45 = arith.constant 0 : index
      %c0_46 = arith.constant 0 : index
      %73 = vector.load %arg8[%c0_45, %c0_46] : memref<2x2xf32, #tpu.memory_space<vmem>>, vector<2x2xf32>
      tpu.vector_store %arg8[%c0_45, %c0_46], %72 {strides = array<i32>} : memref<2x2xf32, #tpu.memory_space<vmem>>, vector<2x2xf32>,
    } else {
    }
    return
  }
  func.func @transform_0(%arg0: i32) -> (i32, i32, i32) {
    %c0_i32 = arith.constant 0 : i32
    %c0_i32_0 = arith.constant 0 : i32
    %c0_i32_1 = arith.constant 0 : i32
    return %c0_i32, %c0_i32_0, %arg0 : i32, i32, i32
  }
  func.func @transform_1(%arg0: i32) -> (i32, i32) {
    %c0_i32 = arith.constant 0 : i32
    %c0_i32_0 = arith.constant 0 : i32
    %c0_i32_1 = arith.constant 0 : i32
    return %c0_i32, %c0_i32_0 : i32, i32
  }
  func.func @transform_2(%arg0: i32) -> (i32, i32) {
    %c0_i32 = arith.constant 0 : i32
    %c0_i32_0 = arith.constant 0 : i32
    %c0_i32_1 = arith.constant 0 : i32
    return %c0_i32, %c0_i32_0 : i32, i32
  }
  func.func @transform_3(%arg0: i32) -> (i32, i32) {
    %c0_i32 = arith.constant 0 : i32
    %c0_i32_0 = arith.constant 0 : i32
    %c0_i32_1 = arith.constant 0 : i32
    return %c0_i32, %c0_i32_0 : i32, i32
  }
  func.func @transform_4(%arg0: i32) -> (i32, i32) {
    %c0_i32 = arith.constant 0 : i32
    %c0_i32_0 = arith.constant 0 : i32
    %c0_i32_1 = arith.constant 0 : i32
    return %c0_i32, %c0_i32_0 : i32, i32
  }
  func.func @transform_5(%arg0: i32) -> (i32, i32) {
    %c0_i32 = arith.constant 0 : i32
    %c0_i32_0 = arith.constant 0 : i32
    %c0_i32_1 = arith.constant 0 : i32
    return %c0_i32, %c0_i32_0 : i32, i32
  }
  func.func @transform_6(%arg0: i32) -> (i32, i32) {
    %c0_i32 = arith.constant 0 : i32
    %c0_i32_0 = arith.constant 0 : i32
    %c0_i32_1 = arith.constant 0 : i32
    return %c0_i32, %c0_i32_0 : i32, i32
  }
  func.func @transform_7(%arg0: i32) -> (i32, i32) {
    %c0_i32 = arith.constant 0 : i32
    %c0_i32_0 = arith.constant 0 : i32
    %c0_i32_1 = arith.constant 0 : i32
    return %c0_i32, %c0_i32_0 : i32, i32
  }
}

</mosaic_0001>

<llo_original>
// kernel: tpu_custom_call.1
$region0: #{tpu_custom_call.1}
  #allocation0 [shape = 'u32[]', space=smem, size = 0x4, offset = 0x4, fixed_abs, tag = 'smem constant byte address 0x4 - core index']
  #allocation1 [shape = 'u32[72,128]{1,0:T(1,128)}', space=vmem, size = 0x9000, scoped, tag = 'internal scratch']
  #allocation2 [shape = 'f32[256,2]{1,0:T(8,128)}', space=vmem, size = 0x20000, scoped, tag = 'scratch operand']
  %s0 = inlined_call_operand.vmem [shape: f32[2,4,300], index: 0, kind: input, shape index: {}]
  %s1 = inlined_call_operand.vmem [shape: bf16[512,4], index: 1, kind: input, shape index: {}]
  %s2 = inlined_call_operand.vmem [shape: f32[512,1], index: 2, kind: input, shape index: {}]
  %s3 = inlined_call_operand.vmem [shape: bf16[256,512], index: 3, kind: input, shape index: {}]
  %s4 = inlined_call_operand.vmem [shape: f32[256,1], index: 4, kind: input, shape index: {}]
  %s5 = inlined_call_operand.vmem [shape: f32[256,2], index: 5, kind: input, shape index: {}]
  %s6 = inlined_call_operand.vmem [shape: f32[1,2], index: 6, kind: input, shape index: {}]
  %s7 = inlined_call_operand.hbm [shape: f32[2,2], index: 7, kind: output, shape index: {}]
  %s8 = sld [smem:[#allocation0]]
  $region110: #{tpu_custom_call.1} parent=0
    _
  %s10 = ssub.s32 1, %s8
  %s11 = scalar_select 0, %s10, %s8
  $region1: #{tpu_custom_call.1} parent=0
    #allocation3 [shape = 'u8[8192]{0}', space=vmem, size = 0x2000, scoped, tag = 'input window, operand 0']
    #allocation4 [shape = 'u8[1024]{0}', space=vmem, size = 0x400, scoped, tag = 'output window, operand 0, single buffered']
    #allocation5 [shape = 's32[2]{0}', space=sflag, size = 0x8, scoped, tag = 'scoped memory for tpu_custom_call.1']
    %12 = vsyncpa [#allocation5], 0
    loop: start=0, step=1, limit=5
    $region2: #{tpu_custom_call.1} parent=1 // loop_pre_header
      _
    $region3: #{tpu_custom_call.1} parent=1 // loop_header
      %s14 = sphi 0, %s18
      %p15 = scmp.ge.s32.totalorder %s14, 5
      %s24 = sphi 0, %s26
      %s27 = sphi 0, %s24
      %s28 = sphi 0, %s27
      %s44 = sphi 0, %s28
      %s48 = sphi 0, %s48
      %s50 = sphi 0, %s48
      %s51 = sphi 0, %s50
      %s65 = sphi 0, %s51
      %s69 = sphi 0, %s69
      %s71 = sphi 0, %s69
      %s72 = sphi 0, %s71
      %s86 = sphi 0, %s72
      %s90 = sphi 0, %s90
      %s92 = sphi 0, %s90
      %s93 = sphi 0, %s92
      %s107 = sphi 0, %s93
      %s111 = sphi 0, %s111
      %s113 = sphi 0, %s111
      %s114 = sphi 0, %s113
      %s128 = sphi 0, %s114
      %s132 = sphi 0, %s132
      %s134 = sphi 0, %s132
      %s135 = sphi 0, %s134
      %s149 = sphi 0, %s135
      %s153 = sphi 0, %s153
      %s155 = sphi 0, %s153
      %s156 = sphi 0, %s155
      %s170 = sphi 0, %s156
      %s174 = sphi 0, %s174
      %s176 = sphi 0, %s174
      %s177 = sphi 0, %s176
      %s191 = sphi 0, %s177
    $region4: #{tpu_custom_call.1} parent=1 // loop_header_branch
      %17 = sbr.rel (%p15) target = $region8
    $region5: #{tpu_custom_call.1} parent=1 // loop_body
      %s19 = ssub.s32 %s14, 1
      %s20 = ssub.s32 %s14, 2
      %s21 = sadd.s32 %s14, 1
      %s22 = ssub.s32 %s14, %s21
      %p23 = scmp.eq.s32.totalorder %s22, 0
      %s25 = sadd.s32 %s24, 1
      %s26 = scalar_select %p23, %s24, %s25
      %p29 = pneg %p23
      %p30 = scmp.eq.s32.totalorder %s14, 2
      %p31 = por %p29, %p30
      %p32 = scmp.ne.s32.totalorder %s24, %s27
      %p33 = scmp.eq.s32.totalorder %s14, 0
      %p34 = por %p32, %p33
      %p35 = scmp.ne.s32.totalorder %s24, %s27
      %p36 = scmp.eq.s32.totalorder %s19, 2
      %p37 = por %p35, %p36
      %p38 = scmp.ne.s32.totalorder %s27, %s28
      %p39 = scmp.eq.s32.totalorder %s19, 0
      %p40 = por %p38, %p39
      %p41 = scmp.ne.s32.totalorder %s27, %s28
      %p42 = scmp.eq.s32.totalorder %s20, 2
      %p43 = por %p41, %p42
      %p45 = scmp.ne.s32.totalorder %s28, %s44
      %p46 = scmp.eq.s32.totalorder %s20, 0
      %p47 = por %p45, %p46
      %s49 = sadd.s32 %s48, 1
      %p52 = scmp.eq.s32.totalorder %s14, 2
      %p53 = scmp.ne.s32.totalorder %s48, %s50
      %p54 = scmp.eq.s32.totalorder %s14, 0
      %p55 = por %p53, %p54
      %p56 = scmp.ne.s32.totalorder %s48, %s50
      %p57 = scmp.eq.s32.totalorder %s19, 2
      %p58 = por %p56, %p57
      %p59 = scmp.ne.s32.totalorder %s50, %s51
      %p60 = scmp.eq.s32.totalorder %s19, 0
      %p61 = por %p59, %p60
      %p62 = scmp.ne.s32.totalorder %s50, %s51
      %p63 = scmp.eq.s32.totalorder %s20, 2
      %p64 = por %p62, %p63
      %p66 = scmp.ne.s32.totalorder %s51, %s65
      %p67 = scmp.eq.s32.totalorder %s20, 0
      %p68 = por %p66, %p67
      %s70 = sadd.s32 %s69, 1
      %p73 = scmp.eq.s32.totalorder %s14, 2
      %p74 = scmp.ne.s32.totalorder %s69, %s71
      %p75 = scmp.eq.s32.totalorder %s14, 0
      %p76 = por %p74, %p75
      %p77 = scmp.ne.s32.totalorder %s69, %s71
      %p78 = scmp.eq.s32.totalorder %s19, 2
      %p79 = por %p77, %p78
      %p80 = scmp.ne.s32.totalorder %s71, %s72
      %p81 = scmp.eq.s32.totalorder %s19, 0
      %p82 = por %p80, %p81
      %p83 = scmp.ne.s32.totalorder %s71, %s72
      %p84 = scmp.eq.s32.totalorder %s20, 2
      %p85 = por %p83, %p84
      %p87 = scmp.ne.s32.totalorder %s72, %s86
      %p88 = scmp.eq.s32.totalorder %s20, 0
      %p89 = por %p87, %p88
      %s91 = sadd.s32 %s90, 1
      %p94 = scmp.eq.s32.totalorder %s14, 2
      %p95 = scmp.ne.s32.totalorder %s90, %s92
      %p96 = scmp.eq.s32.totalorder %s14, 0
      %p97 = por %p95, %p96
      %p98 = scmp.ne.s32.totalorder %s90, %s92
      %p99 = scmp.eq.s32.totalorder %s19, 2
      %p100 = por %p98, %p99
      %p101 = scmp.ne.s32.totalorder %s92, %s93
      %p102 = scmp.eq.s32.totalorder %s19, 0
      %p103 = por %p101, %p102
      %p104 = scmp.ne.s32.totalorder %s92, %s93
      %p105 = scmp.eq.s32.totalorder %s20, 2
      %p106 = por %p104, %p105
      %p108 = scmp.ne.s32.totalorder %s93, %s107
      %p109 = scmp.eq.s32.totalorder %s20, 0
      %p110 = por %p108, %p109
      %s112 = sadd.s32 %s111, 1
      %p115 = scmp.eq.s32.totalorder %s14, 2
      %p116 = scmp.ne.s32.totalorder %s111, %s113
      %p117 = scmp.eq.s32.totalorder %s14, 0
      %p118 = por %p116, %p117
      %p119 = scmp.ne.s32.totalorder %s111, %s113
      %p120 = scmp.eq.s32.totalorder %s19, 2
      %p121 = por %p119, %p120
      %p122 = scmp.ne.s32.totalorder %s113, %s114
      %p123 = scmp.eq.s32.totalorder %s19, 0
      %p124 = por %p122, %p123
      %p125 = scmp.ne.s32.totalorder %s113, %s114
      %p126 = scmp.eq.s32.totalorder %s20, 2
      %p127 = por %p125, %p126
      %p129 = scmp.ne.s32.totalorder %s114, %s128
      %p130 = scmp.eq.s32.totalorder %s20, 0
      %p131 = por %p129, %p130
      %s133 = sadd.s32 %s132, 1
      %p136 = scmp.eq.s32.totalorder %s14, 2
      %p137 = scmp.ne.s32.totalorder %s132, %s134
      %p138 = scmp.eq.s32.totalorder %s14, 0
      %p139 = por %p137, %p138
      %p140 = scmp.ne.s32.totalorder %s132, %s134
      %p141 = scmp.eq.s32.totalorder %s19, 2
      %p142 = por %p140, %p141
      %p143 = scmp.ne.s32.totalorder %s134, %s135
      %p144 = scmp.eq.s32.totalorder %s19, 0
      %p145 = por %p143, %p144
      %p146 = scmp.ne.s32.totalorder %s134, %s135
      %p147 = scmp.eq.s32.totalorder %s20, 2
      %p148 = por %p146, %p147
      %p150 = scmp.ne.s32.totalorder %s135, %s149
      %p151 = scmp.eq.s32.totalorder %s20, 0
      %p152 = por %p150, %p151
      %s154 = sadd.s32 %s153, 1
      %p157 = scmp.eq.s32.totalorder %s14, 2
      %p158 = scmp.ne.s32.totalorder %s153, %s155
      %p159 = scmp.eq.s32.totalorder %s14, 0
      %p160 = por %p158, %p159
      %p161 = scmp.ne.s32.totalorder %s153, %s155
      %p162 = scmp.eq.s32.totalorder %s19, 2
      %p163 = por %p161, %p162
      %p164 = scmp.ne.s32.totalorder %s155, %s156
      %p165 = scmp.eq.s32.totalorder %s19, 0
      %p166 = por %p164, %p165
      %p167 = scmp.ne.s32.totalorder %s155, %s156
      %p168 = scmp.eq.s32.totalorder %s20, 2
      %p169 = por %p167, %p168
      %p171 = scmp.ne.s32.totalorder %s156, %s170
      %p172 = scmp.eq.s32.totalorder %s20, 0
      %p173 = por %p171, %p172
      %s175 = sadd.s32 %s174, 1
      %p178 = scmp.eq.s32.totalorder %s14, 2
      %p179 = scmp.ne.s32.totalorder %s174, %s176
      %p180 = scmp.eq.s32.totalorder %s14, 0
      %p181 = por %p179, %p180
      %p182 = scmp.ne.s32.totalorder %s174, %s176
      %p183 = scmp.eq.s32.totalorder %s19, 2
      %p184 = por %p182, %p183
      %p185 = scmp.ne.s32.totalorder %s176, %s177
      %p186 = scmp.eq.s32.totalorder %s19, 0
      %p187 = por %p185, %p186
      %p188 = scmp.ne.s32.totalorder %s176, %s177
      %p189 = scmp.eq.s32.totalorder %s20, 2
      %p190 = por %p188, %p189
      %p192 = scmp.ne.s32.totalorder %s177, %s191
      %p193 = scmp.eq.s32.totalorder %s20, 0
      %p194 = por %p192, %p193
      %p195 = scmp.le.s32.totalorder 1, %s14
      %p196 = scmp.lt.s32.totalorder %s14, 4
      %p197 = pnand %p195, %p196
      %p198 = pneg %p197
      // Predicated region
      $region9: #{tpu_custom_call.1} parent=5 // pred_check
        _
      $region10: #{tpu_custom_call.1} parent=5 // pred_check_branch
        %200 = sbr.rel (%p197) target = $region12
      $region11: #{tpu_custom_call.1} parent=5 // pred_region
        %s201 = ssub.s32 %s14, 1
        // Predicated region
        $region13: #{tpu_custom_call.1} parent=11 // pred_check
          %p202 = pneg %p61
        $region14: #{tpu_custom_call.1} parent=11 // pred_check_branch
          %204 = sbr.rel (%p202) target = $region16
        $region15: #{tpu_custom_call.1} parent=11 // pred_region
          _
        $region16: #{tpu_custom_call.1} parent=11 // pred_fallthru
          _
        // Predicated region
        $region17: #{tpu_custom_call.1} parent=11 // pred_check
          %p205 = pneg %p82
        $region18: #{tpu_custom_call.1} parent=11 // pred_check_branch
          %207 = sbr.rel (%p205) target = $region20
        $region19: #{tpu_custom_call.1} parent=11 // pred_region
          _
        $region20: #{tpu_custom_call.1} parent=11 // pred_fallthru
          _
        // Predicated region
        $region21: #{tpu_custom_call.1} parent=11 // pred_check
          %p208 = pneg %p103
        $region22: #{tpu_custom_call.1} parent=11 // pred_check_branch
          %210 = sbr.rel (%p208) target = $region24
        $region23: #{tpu_custom_call.1} parent=11 // pred_region
          _
        $region24: #{tpu_custom_call.1} parent=11 // pred_fallthru
          _
        // Predicated region
        $region25: #{tpu_custom_call.1} parent=11 // pred_check
          %p211 = pneg %p124
        $region26: #{tpu_custom_call.1} parent=11 // pred_check_branch
          %213 = sbr.rel (%p211) target = $region28
        $region27: #{tpu_custom_call.1} parent=11 // pred_region
          _
        $region28: #{tpu_custom_call.1} parent=11 // pred_fallthru
          _
        // Predicated region
        $region29: #{tpu_custom_call.1} parent=11 // pred_check
          %p214 = pneg %p145
        $region30: #{tpu_custom_call.1} parent=11 // pred_check_branch
          %216 = sbr.rel (%p214) target = $region32
        $region31: #{tpu_custom_call.1} parent=11 // pred_region
          _
        $region32: #{tpu_custom_call.1} parent=11 // pred_fallthru
          _
        // Predicated region
        $region33: #{tpu_custom_call.1} parent=11 // pred_check
          %p217 = pneg %p166
        $region34: #{tpu_custom_call.1} parent=11 // pred_check_branch
          %219 = sbr.rel (%p217) target = $region36
        $region35: #{tpu_custom_call.1} parent=11 // pred_region
          _
        $region36: #{tpu_custom_call.1} parent=11 // pred_fallthru
          _
      $region12: #{tpu_custom_call.1} parent=5 // pred_fallthru
        _
      %p220 = scmp.lt.s32.totalorder %s14, 3
      // Predicated region
      $region37: #{tpu_custom_call.1} parent=5 // pred_check
        %p221 = pneg %p220
      $region38: #{tpu_custom_call.1} parent=5 // pred_check_branch
        %223 = sbr.rel (%p221) target = $region40
      $region39: #{tpu_custom_call.1} parent=5 // pred_region
        // Predicated region
        $region41: #{tpu_custom_call.1} parent=39 // pred_check
          %p224 = pneg %p34
        $region42: #{tpu_custom_call.1} parent=39 // pred_check_branch
          %226 = sbr.rel (%p224) target = $region44
        $region43: #{tpu_custom_call.1} parent=39 // pred_region
          %s227 = sand.u32 %s24, 1
          %s228 = sand.u32 %s24, 1
          %s229 = smul.addr %s228, 8
          %s230 = scalar_lea.vmem [#allocation3], %s229
          %s231 = smul.addr %s14, 4
          %s232 = scalar_lea.vmem %s0, %s231
          // Predicated region
          $region45: #{tpu_custom_call.1} parent=43 // pred_check
            _
          $region46: #{tpu_custom_call.1} parent=43 // pred_check_branch
            %234 = sbr.rel (0) target = $region48
          $region47: #{tpu_custom_call.1} parent=43 // pred_region
            // Predicated region
            $region49: #{tpu_custom_call.1} parent=47 // pred_check
              _
            $region50: #{tpu_custom_call.1} parent=47 // pred_check_branch
              %236 = sbr.rel target = $region52
            $region51: #{tpu_custom_call.1} parent=47 // pred_region
              // Predicated region
              $region64: #{tpu_custom_call.1} parent=51 // pred_check
                _
              $region65: #{tpu_custom_call.1} parent=51 // pred_check_branch
                %254 = sbr.rel (0) target = $region67
              $region66: #{tpu_custom_call.1} parent=51 // pred_region
                loop: start=0, step=1, limit=1
                $region68: #{tpu_custom_call.1} parent=66 // loop_pre_header
                  _
                $region69: #{tpu_custom_call.1} parent=66 // loop_header
                  %s256 = sphi 0, %s260
                  %p257 = scmp.ge.s32.totalorder %s256, 1
                  %s261 = sphi %s232, %s232
                  %s262 = sphi %s230, %s230
                $region70: #{tpu_custom_call.1} parent=66 // loop_header_branch
                  %259 = sbr.rel (%p257) target = $region74
                $region71: #{tpu_custom_call.1} parent=66 // loop_body
                  _
                $region72: #{tpu_custom_call.1} parent=66 // loop_footer
                  %s260 = sadd.s32 1, %s256
                $region73: #{tpu_custom_call.1} parent=66 // loop_footer_branch
                  %255 = sbr.rel target = $region69
                $region74: #{tpu_custom_call.1} parent=66 // loop_exit
                  _
                %s264 = ssub.s32 16, 1
                loop: start=0, step=1, limit=1
                $region75: #{tpu_custom_call.1} parent=66 // loop_pre_header
                  _
                $region76: #{tpu_custom_call.1} parent=66 // loop_header
                  %s266 = sphi 0, %s270
                  %p267 = scmp.ge.s32.totalorder %s266, 1
                  %s271 = sphi %s232, %s232
                  %s272 = sphi %s230, %s230
                $region77: #{tpu_custom_call.1} parent=66 // loop_header_branch
                  %269 = sbr.rel (%p267) target = $region81
                $region78: #{tpu_custom_call.1} parent=66 // loop_body
                  %v273 = vld [vmem:[%s271] sm:%s264]
                  %274 = vst [vmem:[%s272] sm:%s264] %v273
                  %v275 = vld [vmem:[%s271 + $0xc] sm:%s264]
                  %276 = vst [vmem:[%s272 + $0x4] sm:%s264] %v275
                $region79: #{tpu_custom_call.1} parent=66 // loop_footer
                  %s270 = sadd.s32 1, %s266
                $region80: #{tpu_custom_call.1} parent=66 // loop_footer_branch
                  %265 = sbr.rel target = $region76
                $region81: #{tpu_custom_call.1} parent=66 // loop_exit
                  _
              $region67: #{tpu_custom_call.1} parent=51 // pred_fallthru
                _
            $region52: #{tpu_custom_call.1} parent=47 // pred_fallthru
              _
            // Predicated region
            $region53: #{tpu_custom_call.1} parent=47 // pred_check
              _
            $region54: #{tpu_custom_call.1} parent=47 // pred_check_branch
              %238 = sbr.rel (0) target = $region56
            $region55: #{tpu_custom_call.1} parent=47 // pred_region
              %s240 = ssub.s32 16, 1
              loop: start=0, step=1, limit=1
              $region57: #{tpu_custom_call.1} parent=55 // loop_pre_header
                _
              $region58: #{tpu_custom_call.1} parent=55 // loop_header
                %s242 = sphi 0, %s246
                %p243 = scmp.ge.s32.totalorder %s242, 1
                %s247 = sphi %s232, %s232
                %s248 = sphi %s230, %s230
              $region59: #{tpu_custom_call.1} parent=55 // loop_header_branch
                %245 = sbr.rel (%p243) target = $region63
              $region60: #{tpu_custom_call.1} parent=55 // loop_body
                %v249 = vld [vmem:[%s247] sm:%s240]
                %250 = vst [vmem:[%s248] sm:%s240] %v249
                %v251 = vld [vmem:[%s247 + $0xc] sm:%s240]
                %252 = vst [vmem:[%s248 + $0x4] sm:%s240] %v251
              $region61: #{tpu_custom_call.1} parent=55 // loop_footer
                %s246 = sadd.s32 1, %s242
              $region62: #{tpu_custom_call.1} parent=55 // loop_footer_branch
                %241 = sbr.rel target = $region58
              $region63: #{tpu_custom_call.1} parent=55 // loop_exit
                _
            $region56: #{tpu_custom_call.1} parent=47 // pred_fallthru
              _
          $region48: #{tpu_custom_call.1} parent=43 // pred_fallthru
            _
          %277 = vnop
        $region44: #{tpu_custom_call.1} parent=39 // pred_fallthru
          _
      $region40: #{tpu_custom_call.1} parent=5 // pred_fallthru
        _
      %p278 = scmp.le.s32.totalorder 1, %s14
      %p279 = scmp.lt.s32.totalorder %s14, 4
      %p280 = pnand %p278, %p279
      %p281 = pneg %p280
      // Predicated region
      $region82: #{tpu_custom_call.1} parent=5 // pred_check
        _
      $region83: #{tpu_custom_call.1} parent=5 // pred_check_branch
        %283 = sbr.rel (%p280) target = $region85
      $region84: #{tpu_custom_call.1} parent=5 // pred_region
        %s284 = ssub.s32 %s14, 1
        %s285 = sand.u32 %s27, 1
        %s286 = sand.u32 %s27, 1
        %s287 = smul.addr %s286, 8
        %s288 = scalar_lea.vmem [#allocation3], %s287
        // Predicated region
        $region86: #{tpu_custom_call.1} parent=84 // pred_check
          %p289 = pneg %p40
        $region87: #{tpu_custom_call.1} parent=84 // pred_check_branch
          %291 = sbr.rel (%p289) target = $region89
        $region88: #{tpu_custom_call.1} parent=84 // pred_region
          _
        $region89: #{tpu_custom_call.1} parent=84 // pred_fallthru
          _
        %s292 = sand.u32 %s27, 1
        %s293 = sand.u32 %s27, 1
        %s294 = smul.addr %s293, 8
        %s295 = scalar_lea.vmem [#allocation3], %s294
        %p296 = pneg %p40
        %p297 = pneg %p37
        %p298 = pneg %p61
        %p299 = pneg %p58
        %p300 = pneg %p82
        %p301 = pneg %p79
        %p302 = pneg %p103
        %p303 = pneg %p100
        %p304 = pneg %p124
        %p305 = pneg %p121
        %p306 = pneg %p145
        %p307 = pneg %p142
        %p308 = pneg %p166
        %p309 = pneg %p163
        %p310 = pneg %p187
        %p311 = pneg %p184
        %p313 = scmp.eq.s32.totalorder %s19, 0
        // Predicated region
        $region90: #{tpu_custom_call.1} parent=84 // pred_check
          %p314 = pneg %p313
        $region91: #{tpu_custom_call.1} parent=84 // pred_check_branch
          %316 = sbr.rel (%p314) target = $region93
        $region92: #{tpu_custom_call.1} parent=84 // pred_region
          %vm317 = vcmask 15360
          %318 = vst.msk [vmem:[#allocation2] sm:$0xff] %vm317, 0.0
          %319 = vst.msk [vmem:[#allocation2 + $0x8] sm:$0xff] %vm317, 0.0
          %320 = vst.msk [vmem:[#allocation2 + $0x10] sm:$0xff] %vm317, 0.0
          %321 = vst.msk [vmem:[#allocation2 + $0x18] sm:$0xff] %vm317, 0.0
          %322 = vst.msk [vmem:[#allocation2 + $0x20] sm:$0xff] %vm317, 0.0
          %323 = vst.msk [vmem:[#allocation2 + $0x28] sm:$0xff] %vm317, 0.0
          %324 = vst.msk [vmem:[#allocation2 + $0x30] sm:$0xff] %vm317, 0.0
          %325 = vst.msk [vmem:[#allocation2 + $0x38] sm:$0xff] %vm317, 0.0
          %326 = vst.msk [vmem:[#allocation2 + $0x40] sm:$0xff] %vm317, 0.0
          %327 = vst.msk [vmem:[#allocation2 + $0x48] sm:$0xff] %vm317, 0.0
          %328 = vst.msk [vmem:[#allocation2 + $0x50] sm:$0xff] %vm317, 0.0
          %329 = vst.msk [vmem:[#allocation2 + $0x58] sm:$0xff] %vm317, 0.0
          %330 = vst.msk [vmem:[#allocation2 + $0x60] sm:$0xff] %vm317, 0.0
          %331 = vst.msk [vmem:[#allocation2 + $0x68] sm:$0xff] %vm317, 0.0
          %332 = vst.msk [vmem:[#allocation2 + $0x70] sm:$0xff] %vm317, 0.0
          %333 = vst.msk [vmem:[#allocation2 + $0x78] sm:$0xff] %vm317, 0.0
          %334 = vst.msk [vmem:[#allocation2 + $0x80] sm:$0xff] %vm317, 0.0
          %335 = vst.msk [vmem:[#allocation2 + $0x88] sm:$0xff] %vm317, 0.0
          %336 = vst.msk [vmem:[#allocation2 + $0x90] sm:$0xff] %vm317, 0.0
          %337 = vst.msk [vmem:[#allocation2 + $0x98] sm:$0xff] %vm317, 0.0
          %338 = vst.msk [vmem:[#allocation2 + $0xa0] sm:$0xff] %vm317, 0.0
          %339 = vst.msk [vmem:[#allocation2 + $0xa8] sm:$0xff] %vm317, 0.0
          %340 = vst.msk [vmem:[#allocation2 + $0xb0] sm:$0xff] %vm317, 0.0
          %341 = vst.msk [vmem:[#allocation2 + $0xb8] sm:$0xff] %vm317, 0.0
          %342 = vst.msk [vmem:[#allocation2 + $0xc0] sm:$0xff] %vm317, 0.0
          %343 = vst.msk [vmem:[#allocation2 + $0xc8] sm:$0xff] %vm317, 0.0
          %344 = vst.msk [vmem:[#allocation2 + $0xd0] sm:$0xff] %vm317, 0.0
          %345 = vst.msk [vmem:[#allocation2 + $0xd8] sm:$0xff] %vm317, 0.0
          %346 = vst.msk [vmem:[#allocation2 + $0xe0] sm:$0xff] %vm317, 0.0
          %347 = vst.msk [vmem:[#allocation2 + $0xe8] sm:$0xff] %vm317, 0.0
          %348 = vst.msk [vmem:[#allocation2 + $0xf0] sm:$0xff] %vm317, 0.0
          %349 = vst.msk [vmem:[#allocation2 + $0xf8] sm:$0xff] %vm317, 0.0
        $region93: #{tpu_custom_call.1} parent=84 // pred_fallthru
          _
        %v350 = vlaneseq
        %v351 = vand.u32 %v350, 127
        %s352 = smul.u32 %s19, 128
        %v353 = vstv %s352
        %v354 = vadd.s32 %v351, %v353
        %vm355 = vcmp.lt.s32.totalorder %v354, 300
        %v356 = vld [vmem:[%s288] sm:$0xf]
        %v357 = vpack.c.bf16 %v356, %v356
        %v358 = vld [vmem:[%s1] sm:$0xf]
        %v359 = vld [vmem:[%s1 + $0x4] sm:$0xf]
        %v360 = vld [vmem:[%s1 + $0x8] sm:$0xf]
        %v361 = vld [vmem:[%s1 + $0xc] sm:$0xf]
        %v362 = vld [vmem:[%s1 + $0x10] sm:$0xf]
        %v363 = vld [vmem:[%s1 + $0x14] sm:$0xf]
        %v364 = vld [vmem:[%s1 + $0x18] sm:$0xf]
        %v365 = vld [vmem:[%s1 + $0x1c] sm:$0xf]
        %v366 = vld [vmem:[%s1 + $0x20] sm:$0xf]
        %v367 = vld [vmem:[%s1 + $0x24] sm:$0xf]
        %v368 = vld [vmem:[%s1 + $0x28] sm:$0xf]
        %v369 = vld [vmem:[%s1 + $0x2c] sm:$0xf]
        %v370 = vld [vmem:[%s1 + $0x30] sm:$0xf]
        %v371 = vld [vmem:[%s1 + $0x34] sm:$0xf]
        %v372 = vld [vmem:[%s1 + $0x38] sm:$0xf]
        %v373 = vld [vmem:[%s1 + $0x3c] sm:$0xf]
        %v374 = vld [vmem:[%s1 + $0x40] sm:$0xf]
        %v375 = vld [vmem:[%s1 + $0x44] sm:$0xf]
        %v376 = vld [vmem:[%s1 + $0x48] sm:$0xf]
        %v377 = vld [vmem:[%s1 + $0x4c] sm:$0xf]
        %v378 = vld [vmem:[%s1 + $0x50] sm:$0xf]
        %v379 = vld [vmem:[%s1 + $0x54] sm:$0xf]
        %v380 = vld [vmem:[%s1 + $0x58] sm:$0xf]
        %v381 = vld [vmem:[%s1 + $0x5c] sm:$0xf]
        %v382 = vld [vmem:[%s1 + $0x60] sm:$0xf]
        %v383 = vld [vmem:[%s1 + $0x64] sm:$0xf]
        %v384 = vld [vmem:[%s1 + $0x68] sm:$0xf]
        %v385 = vld [vmem:[%s1 + $0x6c] sm:$0xf]
        %v386 = vld [vmem:[%s1 + $0x70] sm:$0xf]
        %v387 = vld [vmem:[%s1 + $0x74] sm:$0xf]
        %v388 = vld [vmem:[%s1 + $0x78] sm:$0xf]
        %v389 = vld [vmem:[%s1 + $0x7c] sm:$0xf]
        %v390 = vld [vmem:[%s1 + $0x80] sm:$0xf]
        %v391 = vld [vmem:[%s1 + $0x84] sm:$0xf]
        %v392 = vld [vmem:[%s1 + $0x88] sm:$0xf]
        %v393 = vld [vmem:[%s1 + $0x8c] sm:$0xf]
        %v394 = vld [vmem:[%s1 + $0x90] sm:$0xf]
        %v395 = vld [vmem:[%s1 + $0x94] sm:$0xf]
        %v396 = vld [vmem:[%s1 + $0x98] sm:$0xf]
        %v397 = vld [vmem:[%s1 + $0x9c] sm:$0xf]
        %v398 = vld [vmem:[%s1 + $0xa0] sm:$0xf]
        %v399 = vld [vmem:[%s1 + $0xa4] sm:$0xf]
        %v400 = vld [vmem:[%s1 + $0xa8] sm:$0xf]
        %v401 = vld [vmem:[%s1 + $0xac] sm:$0xf]
        %v402 = vld [vmem:[%s1 + $0xb0] sm:$0xf]
        %v403 = vld [vmem:[%s1 + $0xb4] sm:$0xf]
        %v404 = vld [vmem:[%s1 + $0xb8] sm:$0xf]
        %v405 = vld [vmem:[%s1 + $0xbc] sm:$0xf]
        %v406 = vld [vmem:[%s1 + $0xc0] sm:$0xf]
        %v407 = vld [vmem:[%s1 + $0xc4] sm:$0xf]
        %v408 = vld [vmem:[%s1 + $0xc8] sm:$0xf]
        %v409 = vld [vmem:[%s1 + $0xcc] sm:$0xf]
        %v410 = vld [vmem:[%s1 + $0xd0] sm:$0xf]
        %v411 = vld [vmem:[%s1 + $0xd4] sm:$0xf]
        %v412 = vld [vmem:[%s1 + $0xd8] sm:$0xf]
        %v413 = vld [vmem:[%s1 + $0xdc] sm:$0xf]
        %v414 = vld [vmem:[%s1 + $0xe0] sm:$0xf]
        %v415 = vld [vmem:[%s1 + $0xe4] sm:$0xf]
        %v416 = vld [vmem:[%s1 + $0xe8] sm:$0xf]
        %v417 = vld [vmem:[%s1 + $0xec] sm:$0xf]
        %v418 = vld [vmem:[%s1 + $0xf0] sm:$0xf]
        %v419 = vld [vmem:[%s1 + $0xf4] sm:$0xf]
        %v420 = vld [vmem:[%s1 + $0xf8] sm:$0xf]
        %v421 = vld [vmem:[%s1 + $0xfc] sm:$0xf]
        %v422 = vld [vmem:[%s2] sm:$0xff]
        %v423 = vld [vmem:[%s2 + $0x8] sm:$0xff]
        %v424 = vld [vmem:[%s2 + $0x10] sm:$0xff]
        %v425 = vld [vmem:[%s2 + $0x18] sm:$0xff]
        %v426 = vld [vmem:[%s2 + $0x20] sm:$0xff]
        %v427 = vld [vmem:[%s2 + $0x28] sm:$0xff]
        %v428 = vld [vmem:[%s2 + $0x30] sm:$0xff]
        %v429 = vld [vmem:[%s2 + $0x38] sm:$0xff]
        %v430 = vld [vmem:[%s2 + $0x40] sm:$0xff]
        %v431 = vld [vmem:[%s2 + $0x48] sm:$0xff]
        %v432 = vld [vmem:[%s2 + $0x50] sm:$0xff]
        %v433 = vld [vmem:[%s2 + $0x58] sm:$0xff]
        %v434 = vld [vmem:[%s2 + $0x60] sm:$0xff]
        %v435 = vld [vmem:[%s2 + $0x68] sm:$0xff]
        %v436 = vld [vmem:[%s2 + $0x70] sm:$0xff]
        %v437 = vld [vmem:[%s2 + $0x78] sm:$0xff]
        %v438 = vld [vmem:[%s2 + $0x80] sm:$0xff]
        %v439 = vld [vmem:[%s2 + $0x88] sm:$0xff]
        %v440 = vld [vmem:[%s2 + $0x90] sm:$0xff]
        %v441 = vld [vmem:[%s2 + $0x98] sm:$0xff]
        %v442 = vld [vmem:[%s2 + $0xa0] sm:$0xff]
        %v443 = vld [vmem:[%s2 + $0xa8] sm:$0xff]
        %v444 = vld [vmem:[%s2 + $0xb0] sm:$0xff]
        %v445 = vld [vmem:[%s2 + $0xb8] sm:$0xff]
        %v446 = vld [vmem:[%s2 + $0xc0] sm:$0xff]
        %v447 = vld [vmem:[%s2 + $0xc8] sm:$0xff]
        %v448 = vld [vmem:[%s2 + $0xd0] sm:$0xff]
        %v449 = vld [vmem:[%s2 + $0xd8] sm:$0xff]
        %v450 = vld [vmem:[%s2 + $0xe0] sm:$0xff]
        %v451 = vld [vmem:[%s2 + $0xe8] sm:$0xff]
        %v452 = vld [vmem:[%s2 + $0xf0] sm:$0xff]
        %v453 = vld [vmem:[%s2 + $0xf8] sm:$0xff]
        %v454 = vld [vmem:[%s2 + $0x100] sm:$0xff]
        %v455 = vld [vmem:[%s2 + $0x108] sm:$0xff]
        %v456 = vld [vmem:[%s2 + $0x110] sm:$0xff]
        %v457 = vld [vmem:[%s2 + $0x118] sm:$0xff]
        %v458 = vld [vmem:[%s2 + $0x120] sm:$0xff]
        %v459 = vld [vmem:[%s2 + $0x128] sm:$0xff]
        %v460 = vld [vmem:[%s2 + $0x130] sm:$0xff]
        %v461 = vld [vmem:[%s2 + $0x138] sm:$0xff]
        %v462 = vld [vmem:[%s2 + $0x140] sm:$0xff]
        %v463 = vld [vmem:[%s2 + $0x148] sm:$0xff]
        %v464 = vld [vmem:[%s2 + $0x150] sm:$0xff]
        %v465 = vld [vmem:[%s2 + $0x158] sm:$0xff]
        %v466 = vld [vmem:[%s2 + $0x160] sm:$0xff]
        %v467 = vld [vmem:[%s2 + $0x168] sm:$0xff]
        %v468 = vld [vmem:[%s2 + $0x170] sm:$0xff]
        %v469 = vld [vmem:[%s2 + $0x178] sm:$0xff]
        %v470 = vld [vmem:[%s2 + $0x180] sm:$0xff]
        %v471 = vld [vmem:[%s2 + $0x188] sm:$0xff]
        %v472 = vld [vmem:[%s2 + $0x190] sm:$0xff]
        %v473 = vld [vmem:[%s2 + $0x198] sm:$0xff]
        %v474 = vld [vmem:[%s2 + $0x1a0] sm:$0xff]
        %v475 = vld [vmem:[%s2 + $0x1a8] sm:$0xff]
        %v476 = vld [vmem:[%s2 + $0x1b0] sm:$0xff]
        %v477 = vld [vmem:[%s2 + $0x1b8] sm:$0xff]
        %v478 = vld [vmem:[%s2 + $0x1c0] sm:$0xff]
        %v479 = vld [vmem:[%s2 + $0x1c8] sm:$0xff]
        %v480 = vld [vmem:[%s2 + $0x1d0] sm:$0xff]
        %v481 = vld [vmem:[%s2 + $0x1d8] sm:$0xff]
        %v482 = vld [vmem:[%s2 + $0x1e0] sm:$0xff]
        %v483 = vld [vmem:[%s2 + $0x1e8] sm:$0xff]
        %v484 = vld [vmem:[%s2 + $0x1f0] sm:$0xff]
        %v485 = vld [vmem:[%s2 + $0x1f8] sm:$0xff]
        %487 = vset.pattern.permute.xlu0 0
        %488 = vperm.xlu0 %487, %v422
        %v489 = vpop.permute.xlu0 %488
        %492 = vset.pattern.permute.xlu0 0
        %493 = vperm.xlu0 %492, %v423
        %v494 = vpop.permute.xlu0 %493
        %497 = vset.pattern.permute.xlu0 0
        %498 = vperm.xlu0 %497, %v424
        %v499 = vpop.permute.xlu0 %498
        %502 = vset.pattern.permute.xlu0 0
        %503 = vperm.xlu0 %502, %v425
        %v504 = vpop.permute.xlu0 %503
        %507 = vset.pattern.permute.xlu0 0
        %508 = vperm.xlu0 %507, %v426
        %v509 = vpop.permute.xlu0 %508
        %512 = vset.pattern.permute.xlu0 0
        %513 = vperm.xlu0 %512, %v427
        %v514 = vpop.permute.xlu0 %513
        %517 = vset.pattern.permute.xlu0 0
        %518 = vperm.xlu0 %517, %v428
        %v519 = vpop.permute.xlu0 %518
        %522 = vset.pattern.permute.xlu0 0
        %523 = vperm.xlu0 %522, %v429
        %v524 = vpop.permute.xlu0 %523
        %527 = vset.pattern.permute.xlu0 0
        %528 = vperm.xlu0 %527, %v430
        %v529 = vpop.permute.xlu0 %528
        %532 = vset.pattern.permute.xlu0 0
        %533 = vperm.xlu0 %532, %v431
        %v534 = vpop.permute.xlu0 %533
        %537 = vset.pattern.permute.xlu0 0
        %538 = vperm.xlu0 %537, %v432
        %v539 = vpop.permute.xlu0 %538
        %542 = vset.pattern.permute.xlu0 0
        %543 = vperm.xlu0 %542, %v433
        %v544 = vpop.permute.xlu0 %543
        %547 = vset.pattern.permute.xlu0 0
        %548 = vperm.xlu0 %547, %v434
        %v549 = vpop.permute.xlu0 %548
        %552 = vset.pattern.permute.xlu0 0
        %553 = vperm.xlu0 %552, %v435
        %v554 = vpop.permute.xlu0 %553
        %557 = vset.pattern.permute.xlu0 0
        %558 = vperm.xlu0 %557, %v436
        %v559 = vpop.permute.xlu0 %558
        %562 = vset.pattern.permute.xlu0 0
        %563 = vperm.xlu0 %562, %v437
        %v564 = vpop.permute.xlu0 %563
        %567 = vset.pattern.permute.xlu0 0
        %568 = vperm.xlu0 %567, %v438
        %v569 = vpop.permute.xlu0 %568
        %572 = vset.pattern.permute.xlu0 0
        %573 = vperm.xlu0 %572, %v439
        %v574 = vpop.permute.xlu0 %573
        %577 = vset.pattern.permute.xlu0 0
        %578 = vperm.xlu0 %577, %v440
        %v579 = vpop.permute.xlu0 %578
        %582 = vset.pattern.permute.xlu0 0
        %583 = vperm.xlu0 %582, %v441
        %v584 = vpop.permute.xlu0 %583
        %587 = vset.pattern.permute.xlu0 0
        %588 = vperm.xlu0 %587, %v442
        %v589 = vpop.permute.xlu0 %588
        %592 = vset.pattern.permute.xlu0 0
        %593 = vperm.xlu0 %592, %v443
        %v594 = vpop.permute.xlu0 %593
        %597 = vset.pattern.permute.xlu0 0
        %598 = vperm.xlu0 %597, %v444
        %v599 = vpop.permute.xlu0 %598
        %602 = vset.pattern.permute.xlu0 0
        %603 = vperm.xlu0 %602, %v445
        %v604 = vpop.permute.xlu0 %603
        %607 = vset.pattern.permute.xlu0 0
        %608 = vperm.xlu0 %607, %v446
        %v609 = vpop.permute.xlu0 %608
        %612 = vset.pattern.permute.xlu0 0
        %613 = vperm.xlu0 %612, %v447
        %v614 = vpop.permute.xlu0 %613
        %617 = vset.pattern.permute.xlu0 0
        %618 = vperm.xlu0 %617, %v448
        %v619 = vpop.permute.xlu0 %618
        %622 = vset.pattern.permute.xlu0 0
        %623 = vperm.xlu0 %622, %v449
        %v624 = vpop.permute.xlu0 %623
        %627 = vset.pattern.permute.xlu0 0
        %628 = vperm.xlu0 %627, %v450
        %v629 = vpop.permute.xlu0 %628
        %632 = vset.pattern.permute.xlu0 0
        %633 = vperm.xlu0 %632, %v451
        %v634 = vpop.permute.xlu0 %633
        %637 = vset.pattern.permute.xlu0 0
        %638 = vperm.xlu0 %637, %v452
        %v639 = vpop.permute.xlu0 %638
        %642 = vset.pattern.permute.xlu0 0
        %643 = vperm.xlu0 %642, %v453
        %v644 = vpop.permute.xlu0 %643
        %647 = vset.pattern.permute.xlu0 0
        %648 = vperm.xlu0 %647, %v454
        %v649 = vpop.permute.xlu0 %648
        %652 = vset.pattern.permute.xlu0 0
        %653 = vperm.xlu0 %652, %v455
        %v654 = vpop.permute.xlu0 %653
        %657 = vset.pattern.permute.xlu0 0
        %658 = vperm.xlu0 %657, %v456
        %v659 = vpop.permute.xlu0 %658
        %662 = vset.pattern.permute.xlu0 0
        %663 = vperm.xlu0 %662, %v457
        %v664 = vpop.permute.xlu0 %663
        %667 = vset.pattern.permute.xlu0 0
        %668 = vperm.xlu0 %667, %v458
        %v669 = vpop.permute.xlu0 %668
        %672 = vset.pattern.permute.xlu0 0
        %673 = vperm.xlu0 %672, %v459
        %v674 = vpop.permute.xlu0 %673
        %677 = vset.pattern.permute.xlu0 0
        %678 = vperm.xlu0 %677, %v460
        %v679 = vpop.permute.xlu0 %678
        %682 = vset.pattern.permute.xlu0 0
        %683 = vperm.xlu0 %682, %v461
        %v684 = vpop.permute.xlu0 %683
        %687 = vset.pattern.permute.xlu0 0
        %688 = vperm.xlu0 %687, %v462
        %v689 = vpop.permute.xlu0 %688
        %692 = vset.pattern.permute.xlu0 0
        %693 = vperm.xlu0 %692, %v463
        %v694 = vpop.permute.xlu0 %693
        %697 = vset.pattern.permute.xlu0 0
        %698 = vperm.xlu0 %697, %v464
        %v699 = vpop.permute.xlu0 %698
        %702 = vset.pattern.permute.xlu0 0
        %703 = vperm.xlu0 %702, %v465
        %v704 = vpop.permute.xlu0 %703
        %707 = vset.pattern.permute.xlu0 0
        %708 = vperm.xlu0 %707, %v466
        %v709 = vpop.permute.xlu0 %708
        %712 = vset.pattern.permute.xlu0 0
        %713 = vperm.xlu0 %712, %v467
        %v714 = vpop.permute.xlu0 %713
        %717 = vset.pattern.permute.xlu0 0
        %718 = vperm.xlu0 %717, %v468
        %v719 = vpop.permute.xlu0 %718
        %722 = vset.pattern.permute.xlu0 0
        %723 = vperm.xlu0 %722, %v469
        %v724 = vpop.permute.xlu0 %723
        %727 = vset.pattern.permute.xlu0 0
        %728 = vperm.xlu0 %727, %v470
        %v729 = vpop.permute.xlu0 %728
        %732 = vset.pattern.permute.xlu0 0
        %733 = vperm.xlu0 %732, %v471
        %v734 = vpop.permute.xlu0 %733
        %737 = vset.pattern.permute.xlu0 0
        %738 = vperm.xlu0 %737, %v472
        %v739 = vpop.permute.xlu0 %738
        %742 = vset.pattern.permute.xlu0 0
        %743 = vperm.xlu0 %742, %v473
        %v744 = vpop.permute.xlu0 %743
        %747 = vset.pattern.permute.xlu0 0
        %748 = vperm.xlu0 %747, %v474
        %v749 = vpop.permute.xlu0 %748
        %752 = vset.pattern.permute.xlu0 0
        %753 = vperm.xlu0 %752, %v475
        %v754 = vpop.permute.xlu0 %753
        %757 = vset.pattern.permute.xlu0 0
        %758 = vperm.xlu0 %757, %v476
        %v759 = vpop.permute.xlu0 %758
        %762 = vset.pattern.permute.xlu0 0
        %763 = vperm.xlu0 %762, %v477
        %v764 = vpop.permute.xlu0 %763
        %767 = vset.pattern.permute.xlu0 0
        %768 = vperm.xlu0 %767, %v478
        %v769 = vpop.permute.xlu0 %768
        %772 = vset.pattern.permute.xlu0 0
        %773 = vperm.xlu0 %772, %v479
        %v774 = vpop.permute.xlu0 %773
        %777 = vset.pattern.permute.xlu0 0
        %778 = vperm.xlu0 %777, %v480
        %v779 = vpop.permute.xlu0 %778
        %782 = vset.pattern.permute.xlu0 0
        %783 = vperm.xlu0 %782, %v481
        %v784 = vpop.permute.xlu0 %783
        %787 = vset.pattern.permute.xlu0 0
        %788 = vperm.xlu0 %787, %v482
        %v789 = vpop.permute.xlu0 %788
        %792 = vset.pattern.permute.xlu0 0
        %793 = vperm.xlu0 %792, %v483
        %v794 = vpop.permute.xlu0 %793
        %797 = vset.pattern.permute.xlu0 0
        %798 = vperm.xlu0 %797, %v484
        %v799 = vpop.permute.xlu0 %798
        %802 = vset.pattern.permute.xlu0 0
        %803 = vperm.xlu0 %802, %v485
        %v804 = vpop.permute.xlu0 %803
        %v870 = vunpack.c.l.b16 %v358
        %v871 = vunpack.c.l.b16 %v359
        %v872 = vunpack.c.l.b16 %v360
        %v873 = vunpack.c.l.b16 %v361
        %v874 = vunpack.c.l.b16 %v362
        %v875 = vunpack.c.l.b16 %v363
        %v876 = vunpack.c.l.b16 %v364
        %v877 = vunpack.c.l.b16 %v365
        %v878 = vunpack.c.l.b16 %v366
        %v879 = vunpack.c.l.b16 %v367
        %v880 = vunpack.c.l.b16 %v368
        %v881 = vunpack.c.l.b16 %v369
        %v882 = vunpack.c.l.b16 %v370
        %v883 = vunpack.c.l.b16 %v371
        %v884 = vunpack.c.l.b16 %v372
        %v885 = vunpack.c.l.b16 %v373
        %v886 = vunpack.c.l.b16 %v374
        %v887 = vunpack.c.l.b16 %v375
        %v888 = vunpack.c.l.b16 %v376
        %v889 = vunpack.c.l.b16 %v377
        %v890 = vunpack.c.l.b16 %v378
        %v891 = vunpack.c.l.b16 %v379
        %v892 = vunpack.c.l.b16 %v380
        %v893 = vunpack.c.l.b16 %v381
        %v894 = vunpack.c.l.b16 %v382
        %v895 = vunpack.c.l.b16 %v383
        %v896 = vunpack.c.l.b16 %v384
        %v897 = vunpack.c.l.b16 %v385
        %v898 = vunpack.c.l.b16 %v386
        %v899 = vunpack.c.l.b16 %v387
        %v900 = vunpack.c.l.b16 %v388
        %v901 = vunpack.c.l.b16 %v389
        %v902 = vunpack.c.l.b16 %v390
        %v903 = vunpack.c.l.b16 %v391
        %v904 = vunpack.c.l.b16 %v392
        %v905 = vunpack.c.l.b16 %v393
        %v906 = vunpack.c.l.b16 %v394
        %v907 = vunpack.c.l.b16 %v395
        %v908 = vunpack.c.l.b16 %v396
        %v909 = vunpack.c.l.b16 %v397
        %v910 = vunpack.c.l.b16 %v398
        %v911 = vunpack.c.l.b16 %v399
        %v912 = vunpack.c.l.b16 %v400
        %v913 = vunpack.c.l.b16 %v401
        %v914 = vunpack.c.l.b16 %v402
        %v915 = vunpack.c.l.b16 %v403
        %v916 = vunpack.c.l.b16 %v404
        %v917 = vunpack.c.l.b16 %v405
        %v918 = vunpack.c.l.b16 %v406
        %v919 = vunpack.c.l.b16 %v407
        %v920 = vunpack.c.l.b16 %v408
        %v921 = vunpack.c.l.b16 %v409
        %v922 = vunpack.c.l.b16 %v410
        %v923 = vunpack.c.l.b16 %v411
        %v924 = vunpack.c.l.b16 %v412
        %v925 = vunpack.c.l.b16 %v413
        %v926 = vunpack.c.l.b16 %v414
        %v927 = vunpack.c.l.b16 %v415
        %v928 = vunpack.c.l.b16 %v416
        %v929 = vunpack.c.l.b16 %v417
        %v930 = vunpack.c.l.b16 %v418
        %v931 = vunpack.c.l.b16 %v419
        %v932 = vunpack.c.l.b16 %v420
        %v933 = vunpack.c.l.b16 %v421
        %v934 = vpack.c.b16 %v871, %v870
        %v935 = vpack.c.b16 %v873, %v872
        %v936 = vpack.c.b16 %v875, %v874
        %v937 = vpack.c.b16 %v877, %v876
        %v938 = vpack.c.b16 %v879, %v878
        %v939 = vpack.c.b16 %v881, %v880
        %v940 = vpack.c.b16 %v883, %v882
        %v941 = vpack.c.b16 %v885, %v884
        %v942 = vpack.c.b16 %v887, %v886
        %v943 = vpack.c.b16 %v889, %v888
        %v944 = vpack.c.b16 %v891, %v890
        %v945 = vpack.c.b16 %v893, %v892
        %v946 = vpack.c.b16 %v895, %v894
        %v947 = vpack.c.b16 %v897, %v896
        %v948 = vpack.c.b16 %v899, %v898
        %v949 = vpack.c.b16 %v901, %v900
        %v950 = vpack.c.b16 %v903, %v902
        %v951 = vpack.c.b16 %v905, %v904
        %v952 = vpack.c.b16 %v907, %v906
        %v953 = vpack.c.b16 %v909, %v908
        %v954 = vpack.c.b16 %v911, %v910
        %v955 = vpack.c.b16 %v913, %v912
        %v956 = vpack.c.b16 %v915, %v914
        %v957 = vpack.c.b16 %v917, %v916
        %v958 = vpack.c.b16 %v919, %v918
        %v959 = vpack.c.b16 %v921, %v920
        %v960 = vpack.c.b16 %v923, %v922
        %v961 = vpack.c.b16 %v925, %v924
        %v962 = vpack.c.b16 %v927, %v926
        %v963 = vpack.c.b16 %v929, %v928
        %v964 = vpack.c.b16 %v931, %v930
        %v965 = vpack.c.b16 %v933, %v932
        %vm966 = vcmask 31744
        %v968 = vsel %vm966, %v934, 0
        %v971 = vsel %vm966, %v935, 0
        %v974 = vsel %vm966, %v936, 0
        %v977 = vsel %vm966, %v937, 0
        %v980 = vsel %vm966, %v938, 0
        %v983 = vsel %vm966, %v939, 0
        %v986 = vsel %vm966, %v940, 0
        %v989 = vsel %vm966, %v941, 0
        %v992 = vsel %vm966, %v942, 0
        %v995 = vsel %vm966, %v943, 0
        %v998 = vsel %vm966, %v944, 0
        %v1001 = vsel %vm966, %v945, 0
        %v1004 = vsel %vm966, %v946, 0
        %v1007 = vsel %vm966, %v947, 0
        %v1010 = vsel %vm966, %v948, 0
        %v1013 = vsel %vm966, %v949, 0
        %v1016 = vsel %vm966, %v950, 0
        %v1019 = vsel %vm966, %v951, 0
        %v1022 = vsel %vm966, %v952, 0
        %v1025 = vsel %vm966, %v953, 0
        %v1028 = vsel %vm966, %v954, 0
        %v1031 = vsel %vm966, %v955, 0
        %v1034 = vsel %vm966, %v956, 0
        %v1037 = vsel %vm966, %v957, 0
        %v1040 = vsel %vm966, %v958, 0
        %v1043 = vsel %vm966, %v959, 0
        %v1046 = vsel %vm966, %v960, 0
        %v1049 = vsel %vm966, %v961, 0
        %v1052 = vsel %vm966, %v962, 0
        %v1055 = vsel %vm966, %v963, 0
        %v1058 = vsel %vm966, %v964, 0
        %v1061 = vsel %vm966, %v965, 0
        %vm1063 = vcmask 1041408
        %v1065 = vsel %vm1063, %v357, 0
        %1067 = vmatpush.bf16.msra.mxu0 0
        %1068 = vmatpush.bf16.msra.mxu0 0
        %1069 = vmatpush.bf16.msra.mxu0 0
        %1070 = vmatpush.bf16.msra.mxu0 0
        %1071 = vmatpush.bf16.msra.mxu0 0
        %1072 = vmatpush.bf16.msra.mxu0 0
        %1073 = vmatpush.bf16.msra.mxu0 0
        %1074 = vmatpush.bf16.msra.mxu0 %v1065
        %1075 = vmatmul.bf16.gmra.mxu0 %v968
        %v1076 = vpop.f32.mrf.mxu0
        %v1077 = vadd.f32 %v489, %v1076
        %v1078 = vpop.f32.mrf.mxu0
        %v1079 = vadd.f32 %v494, %v1078
        %1080 = vmatmul.bf16.gmra.mxu0 %v971
        %v1081 = vpop.f32.mrf.mxu0
        %v1082 = vadd.f32 %v499, %v1081
        %v1083 = vpop.f32.mrf.mxu0
        %v1084 = vadd.f32 %v504, %v1083
        %1085 = vmatmul.bf16.gmra.mxu0 %v974
        %v1086 = vpop.f32.mrf.mxu0
        %v1087 = vadd.f32 %v509, %v1086
        %v1088 = vpop.f32.mrf.mxu0
        %v1089 = vadd.f32 %v514, %v1088
        %1090 = vmatmul.bf16.gmra.mxu0 %v977
        %v1091 = vpop.f32.mrf.mxu0
        %v1092 = vadd.f32 %v519, %v1091
        %v1093 = vpop.f32.mrf.mxu0
        %v1094 = vadd.f32 %v524, %v1093
        %1095 = vmatmul.bf16.gmra.mxu0 %v980
        %v1096 = vpop.f32.mrf.mxu0
        %v1097 = vadd.f32 %v529, %v1096
        %v1098 = vpop.f32.mrf.mxu0
        %v1099 = vadd.f32 %v534, %v1098
        %1100 = vmatmul.bf16.gmra.mxu0 %v983
        %v1101 = vpop.f32.mrf.mxu0
        %v1102 = vadd.f32 %v539, %v1101
        %v1103 = vpop.f32.mrf.mxu0
        %v1104 = vadd.f32 %v544, %v1103
        %1105 = vmatmul.bf16.gmra.mxu0 %v986
        %v1106 = vpop.f32.mrf.mxu0
        %v1107 = vadd.f32 %v549, %v1106
        %v1108 = vpop.f32.mrf.mxu0
        %v1109 = vadd.f32 %v554, %v1108
        %1110 = vmatmul.bf16.gmra.mxu0 %v989
        %v1111 = vpop.f32.mrf.mxu0
        %v1112 = vadd.f32 %v559, %v1111
        %v1113 = vpop.f32.mrf.mxu0
        %v1114 = vadd.f32 %v564, %v1113
        %1115 = vmatmul.bf16.gmra.mxu0 %v992
        %v1116 = vpop.f32.mrf.mxu0
        %v1117 = vadd.f32 %v569, %v1116
        %v1118 = vpop.f32.mrf.mxu0
        %v1119 = vadd.f32 %v574, %v1118
        %1120 = vmatmul.bf16.gmra.mxu0 %v995
        %v1121 = vpop.f32.mrf.mxu0
        %v1122 = vadd.f32 %v579, %v1121
        %v1123 = vpop.f32.mrf.mxu0
        %v1124 = vadd.f32 %v584, %v1123
        %1125 = vmatmul.bf16.gmra.mxu0 %v998
        %v1126 = vpop.f32.mrf.mxu0
        %v1127 = vadd.f32 %v589, %v1126
        %v1128 = vpop.f32.mrf.mxu0
        %v1129 = vadd.f32 %v594, %v1128
        %1130 = vmatmul.bf16.gmra.mxu0 %v1001
        %v1131 = vpop.f32.mrf.mxu0
        %v1132 = vadd.f32 %v599, %v1131
        %v1133 = vpop.f32.mrf.mxu0
        %v1134 = vadd.f32 %v604, %v1133
        %1135 = vmatmul.bf16.gmra.mxu0 %v1004
        %v1136 = vpop.f32.mrf.mxu0
        %v1137 = vadd.f32 %v609, %v1136
        %v1138 = vpop.f32.mrf.mxu0
        %v1139 = vadd.f32 %v614, %v1138
        %1140 = vmatmul.bf16.gmra.mxu0 %v1007
        %v1141 = vpop.f32.mrf.mxu0
        %v1142 = vadd.f32 %v619, %v1141
        %v1143 = vpop.f32.mrf.mxu0
        %v1144 = vadd.f32 %v624, %v1143
        %1145 = vmatmul.bf16.gmra.mxu0 %v1010
        %v1146 = vpop.f32.mrf.mxu0
        %v1147 = vadd.f32 %v629, %v1146
        %v1148 = vpop.f32.mrf.mxu0
        %v1149 = vadd.f32 %v634, %v1148
        %1150 = vmatmul.bf16.gmra.mxu0 %v1013
        %v1151 = vpop.f32.mrf.mxu0
        %v1152 = vadd.f32 %v639, %v1151
        %v1153 = vpop.f32.mrf.mxu0
        %v1154 = vadd.f32 %v644, %v1153
        %1155 = vmatmul.bf16.gmra.mxu0 %v1016
        %v1156 = vpop.f32.mrf.mxu0
        %v1157 = vadd.f32 %v649, %v1156
        %v1158 = vpop.f32.mrf.mxu0
        %v1159 = vadd.f32 %v654, %v1158
        %1160 = vmatmul.bf16.gmra.mxu0 %v1019
        %v1161 = vpop.f32.mrf.mxu0
        %v1162 = vadd.f32 %v659, %v1161
        %v1163 = vpop.f32.mrf.mxu0
        %v1164 = vadd.f32 %v664, %v1163
        %1165 = vmatmul.bf16.gmra.mxu0 %v1022
        %v1166 = vpop.f32.mrf.mxu0
        %v1167 = vadd.f32 %v669, %v1166
        %v1168 = vpop.f32.mrf.mxu0
        %v1169 = vadd.f32 %v674, %v1168
        %1170 = vmatmul.bf16.gmra.mxu0 %v1025
        %v1171 = vpop.f32.mrf.mxu0
        %v1172 = vadd.f32 %v679, %v1171
        %v1173 = vpop.f32.mrf.mxu0
        %v1174 = vadd.f32 %v684, %v1173
        %1175 = vmatmul.bf16.gmra.mxu0 %v1028
        %v1176 = vpop.f32.mrf.mxu0
        %v1177 = vadd.f32 %v689, %v1176
        %v1178 = vpop.f32.mrf.mxu0
        %v1179 = vadd.f32 %v694, %v1178
        %1180 = vmatmul.bf16.gmra.mxu0 %v1031
        %v1181 = vpop.f32.mrf.mxu0
        %v1182 = vadd.f32 %v699, %v1181
        %v1183 = vpop.f32.mrf.mxu0
        %v1184 = vadd.f32 %v704, %v1183
        %1185 = vmatmul.bf16.gmra.mxu0 %v1034
        %v1186 = vpop.f32.mrf.mxu0
        %v1187 = vadd.f32 %v709, %v1186
        %v1188 = vpop.f32.mrf.mxu0
        %v1189 = vadd.f32 %v714, %v1188
        %1190 = vmatmul.bf16.gmra.mxu0 %v1037
        %v1191 = vpop.f32.mrf.mxu0
        %v1192 = vadd.f32 %v719, %v1191
        %v1193 = vpop.f32.mrf.mxu0
        %v1194 = vadd.f32 %v724, %v1193
        %1195 = vmatmul.bf16.gmra.mxu0 %v1040
        %v1196 = vpop.f32.mrf.mxu0
        %v1197 = vadd.f32 %v729, %v1196
        %v1198 = vpop.f32.mrf.mxu0
        %v1199 = vadd.f32 %v734, %v1198
        %1200 = vmatmul.bf16.gmra.mxu0 %v1043
        %v1201 = vpop.f32.mrf.mxu0
        %v1202 = vadd.f32 %v739, %v1201
        %v1203 = vpop.f32.mrf.mxu0
        %v1204 = vadd.f32 %v744, %v1203
        %1205 = vmatmul.bf16.gmra.mxu0 %v1046
        %v1206 = vpop.f32.mrf.mxu0
        %v1207 = vadd.f32 %v749, %v1206
        %v1208 = vpop.f32.mrf.mxu0
        %v1209 = vadd.f32 %v754, %v1208
        %1210 = vmatmul.bf16.gmra.mxu0 %v1049
        %v1211 = vpop.f32.mrf.mxu0
        %v1212 = vadd.f32 %v759, %v1211
        %v1213 = vpop.f32.mrf.mxu0
        %v1214 = vadd.f32 %v764, %v1213
        %1215 = vmatmul.bf16.gmra.mxu0 %v1052
        %v1216 = vpop.f32.mrf.mxu0
        %v1217 = vadd.f32 %v769, %v1216
        %v1218 = vpop.f32.mrf.mxu0
        %v1219 = vadd.f32 %v774, %v1218
        %1220 = vmatmul.bf16.gmra.mxu0 %v1055
        %v1221 = vpop.f32.mrf.mxu0
        %v1222 = vadd.f32 %v779, %v1221
        %v1223 = vpop.f32.mrf.mxu0
        %v1224 = vadd.f32 %v784, %v1223
        %1225 = vmatmul.bf16.gmra.mxu0 %v1058
        %v1226 = vpop.f32.mrf.mxu0
        %v1227 = vadd.f32 %v789, %v1226
        %v1228 = vpop.f32.mrf.mxu0
        %v1229 = vadd.f32 %v794, %v1228
        %1230 = vmatmul.bf16.gmra.mxu0 %v1061
        %v1231 = vpop.f32.mrf.mxu0
        %v1232 = vadd.f32 %v799, %v1231
        %v1233 = vpop.f32.mrf.mxu0
        %v1234 = vadd.f32 %v804, %v1233
        %1235 = vdwg.mxu0
        %v1236 = vmax.f32 %v1077, 0.0
        %v1237 = vmax.f32 %v1079, 0.0
        %v1238 = vmax.f32 %v1082, 0.0
        %v1239 = vmax.f32 %v1084, 0.0
        %v1240 = vmax.f32 %v1087, 0.0
        %v1241 = vmax.f32 %v1089, 0.0
        %v1242 = vmax.f32 %v1092, 0.0
        %v1243 = vmax.f32 %v1094, 0.0
        %v1244 = vmax.f32 %v1097, 0.0
        %v1245 = vmax.f32 %v1099, 0.0
        %v1246 = vmax.f32 %v1102, 0.0
        %v1247 = vmax.f32 %v1104, 0.0
        %v1248 = vmax.f32 %v1107, 0.0
        %v1249 = vmax.f32 %v1109, 0.0
        %v1250 = vmax.f32 %v1112, 0.0
        %v1251 = vmax.f32 %v1114, 0.0
        %v1252 = vmax.f32 %v1117, 0.0
        %v1253 = vmax.f32 %v1119, 0.0
        %v1254 = vmax.f32 %v1122, 0.0
        %v1255 = vmax.f32 %v1124, 0.0
        %v1256 = vmax.f32 %v1127, 0.0
        %v1257 = vmax.f32 %v1129, 0.0
        %v1258 = vmax.f32 %v1132, 0.0
        %v1259 = vmax.f32 %v1134, 0.0
        %v1260 = vmax.f32 %v1137, 0.0
        %v1261 = vmax.f32 %v1139, 0.0
        %v1262 = vmax.f32 %v1142, 0.0
        %v1263 = vmax.f32 %v1144, 0.0
        %v1264 = vmax.f32 %v1147, 0.0
        %v1265 = vmax.f32 %v1149, 0.0
        %v1266 = vmax.f32 %v1152, 0.0
        %v1267 = vmax.f32 %v1154, 0.0
        %v1268 = vmax.f32 %v1157, 0.0
        %v1269 = vmax.f32 %v1159, 0.0
        %v1270 = vmax.f32 %v1162, 0.0
        %v1271 = vmax.f32 %v1164, 0.0
        %v1272 = vmax.f32 %v1167, 0.0
        %v1273 = vmax.f32 %v1169, 0.0
        %v1274 = vmax.f32 %v1172, 0.0
        %v1275 = vmax.f32 %v1174, 0.0
        %v1276 = vmax.f32 %v1177, 0.0
        %v1277 = vmax.f32 %v1179, 0.0
        %v1278 = vmax.f32 %v1182, 0.0
        %v1279 = vmax.f32 %v1184, 0.0
        %v1280 = vmax.f32 %v1187, 0.0
        %v1281 = vmax.f32 %v1189, 0.0
        %v1282 = vmax.f32 %v1192, 0.0
        %v1283 = vmax.f32 %v1194, 0.0
        %v1284 = vmax.f32 %v1197, 0.0
        %v1285 = vmax.f32 %v1199, 0.0
        %v1286 = vmax.f32 %v1202, 0.0
        %v1287 = vmax.f32 %v1204, 0.0
        %v1288 = vmax.f32 %v1207, 0.0
        %v1289 = vmax.f32 %v1209, 0.0
        %v1290 = vmax.f32 %v1212, 0.0
        %v1291 = vmax.f32 %v1214, 0.0
        %v1292 = vmax.f32 %v1217, 0.0
        %v1293 = vmax.f32 %v1219, 0.0
        %v1294 = vmax.f32 %v1222, 0.0
        %v1295 = vmax.f32 %v1224, 0.0
        %v1296 = vmax.f32 %v1227, 0.0
        %v1297 = vmax.f32 %v1229, 0.0
        %v1298 = vmax.f32 %v1232, 0.0
        %v1299 = vmax.f32 %v1234, 0.0
        %v1300 = vld [vmem:[%s3] sm:$0xff]
        %v1301 = vld [vmem:[%s3 + $0x8] sm:$0xff]
        %v1302 = vld [vmem:[%s3 + $0x10] sm:$0xff]
        %v1303 = vld [vmem:[%s3 + $0x18] sm:$0xff]
        %v1304 = vld [vmem:[%s3 + $0x20] sm:$0xff]
        %v1305 = vld [vmem:[%s3 + $0x28] sm:$0xff]
        %v1306 = vld [vmem:[%s3 + $0x30] sm:$0xff]
        %v1307 = vld [vmem:[%s3 + $0x38] sm:$0xff]
        %v1308 = vld [vmem:[%s3 + $0x40] sm:$0xff]
        %v1309 = vld [vmem:[%s3 + $0x48] sm:$0xff]
        %v1310 = vld [vmem:[%s3 + $0x50] sm:$0xff]
        %v1311 = vld [vmem:[%s3 + $0x58] sm:$0xff]
        %v1312 = vld [vmem:[%s3 + $0x60] sm:$0xff]
        %v1313 = vld [vmem:[%s3 + $0x68] sm:$0xff]
        %v1314 = vld [vmem:[%s3 + $0x70] sm:$0xff]
        %v1315 = vld [vmem:[%s3 + $0x78] sm:$0xff]
        %v1316 = vld [vmem:[%s3 + $0x80] sm:$0xff]
        %v1317 = vld [vmem:[%s3 + $0x88] sm:$0xff]
        %v1318 = vld [vmem:[%s3 + $0x90] sm:$0xff]
        %v1319 = vld [vmem:[%s3 + $0x98] sm:$0xff]
        %v1320 = vld [vmem:[%s3 + $0xa0] sm:$0xff]
        %v1321 = vld [vmem:[%s3 + $0xa8] sm:$0xff]
        %v1322 = vld [vmem:[%s3 + $0xb0] sm:$0xff]
        %v1323 = vld [vmem:[%s3 + $0xb8] sm:$0xff]
        %v1324 = vld [vmem:[%s3 + $0xc0] sm:$0xff]
        %v1325 = vld [vmem:[%s3 + $0xc8] sm:$0xff]
        %v1326 = vld [vmem:[%s3 + $0xd0] sm:$0xff]
        %v1327 = vld [vmem:[%s3 + $0xd8] sm:$0xff]
        %v1328 = vld [vmem:[%s3 + $0xe0] sm:$0xff]
        %v1329 = vld [vmem:[%s3 + $0xe8] sm:$0xff]
        %v1330 = vld [vmem:[%s3 + $0xf0] sm:$0xff]
        %v1331 = vld [vmem:[%s3 + $0xf8] sm:$0xff]
        %v1332 = vld [vmem:[%s3 + $0x100] sm:$0xff]
        %v1333 = vld [vmem:[%s3 + $0x108] sm:$0xff]
        %v1334 = vld [vmem:[%s3 + $0x110] sm:$0xff]
        %v1335 = vld [vmem:[%s3 + $0x118] sm:$0xff]
        %v1336 = vld [vmem:[%s3 + $0x120] sm:$0xff]
        %v1337 = vld [vmem:[%s3 + $0x128] sm:$0xff]
        %v1338 = vld [vmem:[%s3 + $0x130] sm:$0xff]
        %v1339 = vld [vmem:[%s3 + $0x138] sm:$0xff]
        %v1340 = vld [vmem:[%s3 + $0x140] sm:$0xff]
        %v1341 = vld [vmem:[%s3 + $0x148] sm:$0xff]
        %v1342 = vld [vmem:[%s3 + $0x150] sm:$0xff]
        %v1343 = vld [vmem:[%s3 + $0x158] sm:$0xff]
        %v1344 = vld [vmem:[%s3 + $0x160] sm:$0xff]
        %v1345 = vld [vmem:[%s3 + $0x168] sm:$0xff]
        %v1346 = vld [vmem:[%s3 + $0x170] sm:$0xff]
        %v1347 = vld [vmem:[%s3 + $0x178] sm:$0xff]
        %v1348 = vld [vmem:[%s3 + $0x180] sm:$0xff]
        %v1349 = vld [vmem:[%s3 + $0x188] sm:$0xff]
        %v1350 = vld [vmem:[%s3 + $0x190] sm:$0xff]
        %v1351 = vld [vmem:[%s3 + $0x198] sm:$0xff]
        %v1352 = vld [vmem:[%s3 + $0x1a0] sm:$0xff]
        %v1353 = vld [vmem:[%s3 + $0x1a8] sm:$0xff]
        %v1354 = vld [vmem:[%s3 + $0x1b0] sm:$0xff]
        %v1355 = vld [vmem:[%s3 + $0x1b8] sm:$0xff]
        %v1356 = vld [vmem:[%s3 + $0x1c0] sm:$0xff]
        %v1357 = vld [vmem:[%s3 + $0x1c8] sm:$0xff]
        %v1358 = vld [vmem:[%s3 + $0x1d0] sm:$0xff]
        %v1359 = vld [vmem:[%s3 + $0x1d8] sm:$0xff]
        %v1360 = vld [vmem:[%s3 + $0x1e0] sm:$0xff]
        %v1361 = vld [vmem:[%s3 + $0x1e8] sm:$0xff]
        %v1362 = vld [vmem:[%s3 + $0x1f0] sm:$0xff]
        %v1363 = vld [vmem:[%s3 + $0x1f8] sm:$0xff]
        %v1364 = vpack.c.bf16 %v1237, %v1236
        %v1365 = vpack.c.bf16 %v1239, %v1238
        %v1366 = vpack.c.bf16 %v1241, %v1240
        %v1367 = vpack.c.bf16 %v1243, %v1242
        %v1368 = vpack.c.bf16 %v1245, %v1244
        %v1369 = vpack.c.bf16 %v1247, %v1246
        %v1370 = vpack.c.bf16 %v1249, %v1248
        %v1371 = vpack.c.bf16 %v1251, %v1250
        %v1372 = vpack.c.bf16 %v1253, %v1252
        %v1373 = vpack.c.bf16 %v1255, %v1254
        %v1374 = vpack.c.bf16 %v1257, %v1256
        %v1375 = vpack.c.bf16 %v1259, %v1258
        %v1376 = vpack.c.bf16 %v1261, %v1260
        %v1377 = vpack.c.bf16 %v1263, %v1262
        %v1378 = vpack.c.bf16 %v1265, %v1264
        %v1379 = vpack.c.bf16 %v1267, %v1266
        %v1380 = vpack.c.bf16 %v1269, %v1268
        %v1381 = vpack.c.bf16 %v1271, %v1270
        %v1382 = vpack.c.bf16 %v1273, %v1272
        %v1383 = vpack.c.bf16 %v1275, %v1274
        %v1384 = vpack.c.bf16 %v1277, %v1276
        %v1385 = vpack.c.bf16 %v1279, %v1278
        %v1386 = vpack.c.bf16 %v1281, %v1280
        %v1387 = vpack.c.bf16 %v1283, %v1282
        %v1388 = vpack.c.bf16 %v1285, %v1284
        %v1389 = vpack.c.bf16 %v1287, %v1286
        %v1390 = vpack.c.bf16 %v1289, %v1288
        %v1391 = vpack.c.bf16 %v1291, %v1290
        %v1392 = vpack.c.bf16 %v1293, %v1292
        %v1393 = vpack.c.bf16 %v1295, %v1294
        %v1394 = vpack.c.bf16 %v1297, %v1296
        %v1395 = vpack.c.bf16 %v1299, %v1298
        %v1396 = vld [vmem:[%s4] sm:$0xff]
        %v1397 = vld [vmem:[%s4 + $0x8] sm:$0xff]
        %v1398 = vld [vmem:[%s4 + $0x10] sm:$0xff]
        %v1399 = vld [vmem:[%s4 + $0x18] sm:$0xff]
        %v1400 = vld [vmem:[%s4 + $0x20] sm:$0xff]
        %v1401 = vld [vmem:[%s4 + $0x28] sm:$0xff]
        %v1402 = vld [vmem:[%s4 + $0x30] sm:$0xff]
        %v1403 = vld [vmem:[%s4 + $0x38] sm:$0xff]
        %v1404 = vld [vmem:[%s4 + $0x40] sm:$0xff]
        %v1405 = vld [vmem:[%s4 + $0x48] sm:$0xff]
        %v1406 = vld [vmem:[%s4 + $0x50] sm:$0xff]
        %v1407 = vld [vmem:[%s4 + $0x58] sm:$0xff]
        %v1408 = vld [vmem:[%s4 + $0x60] sm:$0xff]
        %v1409 = vld [vmem:[%s4 + $0x68] sm:$0xff]
        %v1410 = vld [vmem:[%s4 + $0x70] sm:$0xff]
        %v1411 = vld [vmem:[%s4 + $0x78] sm:$0xff]
        %v1412 = vld [vmem:[%s4 + $0x80] sm:$0xff]
        %v1413 = vld [vmem:[%s4 + $0x88] sm:$0xff]
        %v1414 = vld [vmem:[%s4 + $0x90] sm:$0xff]
        %v1415 = vld [vmem:[%s4 + $0x98] sm:$0xff]
        %v1416 = vld [vmem:[%s4 + $0xa0] sm:$0xff]
        %v1417 = vld [vmem:[%s4 + $0xa8] sm:$0xff]
        %v1418 = vld [vmem:[%s4 + $0xb0] sm:$0xff]
        %v1419 = vld [vmem:[%s4 + $0xb8] sm:$0xff]
        %v1420 = vld [vmem:[%s4 + $0xc0] sm:$0xff]
        %v1421 = vld [vmem:[%s4 + $0xc8] sm:$0xff]
        %v1422 = vld [vmem:[%s4 + $0xd0] sm:$0xff]
        %v1423 = vld [vmem:[%s4 + $0xd8] sm:$0xff]
        %v1424 = vld [vmem:[%s4 + $0xe0] sm:$0xff]
        %v1425 = vld [vmem:[%s4 + $0xe8] sm:$0xff]
        %v1426 = vld [vmem:[%s4 + $0xf0] sm:$0xff]
        %v1427 = vld [vmem:[%s4 + $0xf8] sm:$0xff]
        %1429 = vset.pattern.permute.xlu0 0
        %1430 = vperm.xlu0 %1429, %v1396
        %v1431 = vpop.permute.xlu0 %1430
        %1434 = vset.pattern.permute.xlu0 0
        %1435 = vperm.xlu0 %1434, %v1397
        %v1436 = vpop.permute.xlu0 %1435
        %1439 = vset.pattern.permute.xlu0 0
        %1440 = vperm.xlu0 %1439, %v1398
        %v1441 = vpop.permute.xlu0 %1440
        %1444 = vset.pattern.permute.xlu0 0
        %1445 = vperm.xlu0 %1444, %v1399
        %v1446 = vpop.permute.xlu0 %1445
        %1449 = vset.pattern.permute.xlu0 0
        %1450 = vperm.xlu0 %1449, %v1400
        %v1451 = vpop.permute.xlu0 %1450
        %1454 = vset.pattern.permute.xlu0 0
        %1455 = vperm.xlu0 %1454, %v1401
        %v1456 = vpop.permute.xlu0 %1455
        %1459 = vset.pattern.permute.xlu0 0
        %1460 = vperm.xlu0 %1459, %v1402
        %v1461 = vpop.permute.xlu0 %1460
        %1464 = vset.pattern.permute.xlu0 0
        %1465 = vperm.xlu0 %1464, %v1403
        %v1466 = vpop.permute.xlu0 %1465
        %1469 = vset.pattern.permute.xlu0 0
        %1470 = vperm.xlu0 %1469, %v1404
        %v1471 = vpop.permute.xlu0 %1470
        %1474 = vset.pattern.permute.xlu0 0
        %1475 = vperm.xlu0 %1474, %v1405
        %v1476 = vpop.permute.xlu0 %1475
        %1479 = vset.pattern.permute.xlu0 0
        %1480 = vperm.xlu0 %1479, %v1406
        %v1481 = vpop.permute.xlu0 %1480
        %1484 = vset.pattern.permute.xlu0 0
        %1485 = vperm.xlu0 %1484, %v1407
        %v1486 = vpop.permute.xlu0 %1485
        %1489 = vset.pattern.permute.xlu0 0
        %1490 = vperm.xlu0 %1489, %v1408
        %v1491 = vpop.permute.xlu0 %1490
        %1494 = vset.pattern.permute.xlu0 0
        %1495 = vperm.xlu0 %1494, %v1409
        %v1496 = vpop.permute.xlu0 %1495
        %1499 = vset.pattern.permute.xlu0 0
        %1500 = vperm.xlu0 %1499, %v1410
        %v1501 = vpop.permute.xlu0 %1500
        %1504 = vset.pattern.permute.xlu0 0
        %1505 = vperm.xlu0 %1504, %v1411
        %v1506 = vpop.permute.xlu0 %1505
        %1509 = vset.pattern.permute.xlu0 0
        %1510 = vperm.xlu0 %1509, %v1412
        %v1511 = vpop.permute.xlu0 %1510
        %1514 = vset.pattern.permute.xlu0 0
        %1515 = vperm.xlu0 %1514, %v1413
        %v1516 = vpop.permute.xlu0 %1515
        %1519 = vset.pattern.permute.xlu0 0
        %1520 = vperm.xlu0 %1519, %v1414
        %v1521 = vpop.permute.xlu0 %1520
        %1524 = vset.pattern.permute.xlu0 0
        %1525 = vperm.xlu0 %1524, %v1415
        %v1526 = vpop.permute.xlu0 %1525
        %1529 = vset.pattern.permute.xlu0 0
        %1530 = vperm.xlu0 %1529, %v1416
        %v1531 = vpop.permute.xlu0 %1530
        %1534 = vset.pattern.permute.xlu0 0
        %1535 = vperm.xlu0 %1534, %v1417
        %v1536 = vpop.permute.xlu0 %1535
        %1539 = vset.pattern.permute.xlu0 0
        %1540 = vperm.xlu0 %1539, %v1418
        %v1541 = vpop.permute.xlu0 %1540
        %1544 = vset.pattern.permute.xlu0 0
        %1545 = vperm.xlu0 %1544, %v1419
        %v1546 = vpop.permute.xlu0 %1545
        %1549 = vset.pattern.permute.xlu0 0
        %1550 = vperm.xlu0 %1549, %v1420
        %v1551 = vpop.permute.xlu0 %1550
        %1554 = vset.pattern.permute.xlu0 0
        %1555 = vperm.xlu0 %1554, %v1421
        %v1556 = vpop.permute.xlu0 %1555
        %1559 = vset.pattern.permute.xlu0 0
        %1560 = vperm.xlu0 %1559, %v1422
        %v1561 = vpop.permute.xlu0 %1560
        %1564 = vset.pattern.permute.xlu0 0
        %1565 = vperm.xlu0 %1564, %v1423
        %v1566 = vpop.permute.xlu0 %1565
        %1569 = vset.pattern.permute.xlu0 0
        %1570 = vperm.xlu0 %1569, %v1424
        %v1571 = vpop.permute.xlu0 %1570
        %1574 = vset.pattern.permute.xlu0 0
        %1575 = vperm.xlu0 %1574, %v1425
        %v1576 = vpop.permute.xlu0 %1575
        %1579 = vset.pattern.permute.xlu0 0
        %1580 = vperm.xlu0 %1579, %v1426
        %v1581 = vpop.permute.xlu0 %1580
        %1584 = vset.pattern.permute.xlu0 0
        %1585 = vperm.xlu0 %1584, %v1427
        %v1586 = vpop.permute.xlu0 %1585
        %v1652 = vunpack.c.l.b16 %v1300
        %v1653 = vunpack.c.h.b16 %v1300
        %v1654 = vunpack.c.l.b16 %v1301
        %v1655 = vunpack.c.h.b16 %v1301
        %v1656 = vunpack.c.l.b16 %v1302
        %v1657 = vunpack.c.h.b16 %v1302
        %v1658 = vunpack.c.l.b16 %v1303
        %v1659 = vunpack.c.h.b16 %v1303
        %v1660 = vunpack.c.l.b16 %v1304
        %v1661 = vunpack.c.h.b16 %v1304
        %v1662 = vunpack.c.l.b16 %v1305
        %v1663 = vunpack.c.h.b16 %v1305
        %v1664 = vunpack.c.l.b16 %v1306
        %v1665 = vunpack.c.h.b16 %v1306
        %v1666 = vunpack.c.l.b16 %v1307
        %v1667 = vunpack.c.h.b16 %v1307
        %v1668 = vunpack.c.l.b16 %v1308
        %v1669 = vunpack.c.h.b16 %v1308
        %v1670 = vunpack.c.l.b16 %v1309
        %v1671 = vunpack.c.h.b16 %v1309
        %v1672 = vunpack.c.l.b16 %v1310
        %v1673 = vunpack.c.h.b16 %v1310
        %v1674 = vunpack.c.l.b16 %v1311
        %v1675 = vunpack.c.h.b16 %v1311
        %v1676 = vunpack.c.l.b16 %v1312
        %v1677 = vunpack.c.h.b16 %v1312
        %v1678 = vunpack.c.l.b16 %v1313
        %v1679 = vunpack.c.h.b16 %v1313
        %v1680 = vunpack.c.l.b16 %v1314
        %v1681 = vunpack.c.h.b16 %v1314
        %v1682 = vunpack.c.l.b16 %v1315
        %v1683 = vunpack.c.h.b16 %v1315
        %v1684 = vunpack.c.l.b16 %v1316
        %v1685 = vunpack.c.h.b16 %v1316
        %v1686 = vunpack.c.l.b16 %v1317
        %v1687 = vunpack.c.h.b16 %v1317
        %v1688 = vunpack.c.l.b16 %v1318
        %v1689 = vunpack.c.h.b16 %v1318
        %v1690 = vunpack.c.l.b16 %v1319
        %v1691 = vunpack.c.h.b16 %v1319
        %v1692 = vunpack.c.l.b16 %v1320
        %v1693 = vunpack.c.h.b16 %v1320
        %v1694 = vunpack.c.l.b16 %v1321
        %v1695 = vunpack.c.h.b16 %v1321
        %v1696 = vunpack.c.l.b16 %v1322
        %v1697 = vunpack.c.h.b16 %v1322
        %v1698 = vunpack.c.l.b16 %v1323
        %v1699 = vunpack.c.h.b16 %v1323
        %v1700 = vunpack.c.l.b16 %v1324
        %v1701 = vunpack.c.h.b16 %v1324
        %v1702 = vunpack.c.l.b16 %v1325
        %v1703 = vunpack.c.h.b16 %v1325
        %v1704 = vunpack.c.l.b16 %v1326
        %v1705 = vunpack.c.h.b16 %v1326
        %v1706 = vunpack.c.l.b16 %v1327
        %v1707 = vunpack.c.h.b16 %v1327
        %v1708 = vunpack.c.l.b16 %v1328
        %v1709 = vunpack.c.h.b16 %v1328
        %v1710 = vunpack.c.l.b16 %v1329
        %v1711 = vunpack.c.h.b16 %v1329
        %v1712 = vunpack.c.l.b16 %v1330
        %v1713 = vunpack.c.h.b16 %v1330
        %v1714 = vunpack.c.l.b16 %v1331
        %v1715 = vunpack.c.h.b16 %v1331
        %v1716 = vunpack.c.l.b16 %v1332
        %v1717 = vunpack.c.h.b16 %v1332
        %v1718 = vunpack.c.l.b16 %v1333
        %v1719 = vunpack.c.h.b16 %v1333
        %v1720 = vunpack.c.l.b16 %v1334
        %v1721 = vunpack.c.h.b16 %v1334
        %v1722 = vunpack.c.l.b16 %v1335
        %v1723 = vunpack.c.h.b16 %v1335
        %v1724 = vunpack.c.l.b16 %v1336
        %v1725 = vunpack.c.h.b16 %v1336
        %v1726 = vunpack.c.l.b16 %v1337
        %v1727 = vunpack.c.h.b16 %v1337
        %v1728 = vunpack.c.l.b16 %v1338
        %v1729 = vunpack.c.h.b16 %v1338
        %v1730 = vunpack.c.l.b16 %v1339
        %v1731 = vunpack.c.h.b16 %v1339
        %v1732 = vunpack.c.l.b16 %v1340
        %v1733 = vunpack.c.h.b16 %v1340
        %v1734 = vunpack.c.l.b16 %v1341
        %v1735 = vunpack.c.h.b16 %v1341
        %v1736 = vunpack.c.l.b16 %v1342
        %v1737 = vunpack.c.h.b16 %v1342
        %v1738 = vunpack.c.l.b16 %v1343
        %v1739 = vunpack.c.h.b16 %v1343
        %v1740 = vunpack.c.l.b16 %v1344
        %v1741 = vunpack.c.h.b16 %v1344
        %v1742 = vunpack.c.l.b16 %v1345
        %v1743 = vunpack.c.h.b16 %v1345
        %v1744 = vunpack.c.l.b16 %v1346
        %v1745 = vunpack.c.h.b16 %v1346
        %v1746 = vunpack.c.l.b16 %v1347
        %v1747 = vunpack.c.h.b16 %v1347
        %v1748 = vunpack.c.l.b16 %v1348
        %v1749 = vunpack.c.h.b16 %v1348
        %v1750 = vunpack.c.l.b16 %v1349
        %v1751 = vunpack.c.h.b16 %v1349
        %v1752 = vunpack.c.l.b16 %v1350
        %v1753 = vunpack.c.h.b16 %v1350
        %v1754 = vunpack.c.l.b16 %v1351
        %v1755 = vunpack.c.h.b16 %v1351
        %v1756 = vunpack.c.l.b16 %v1352
        %v1757 = vunpack.c.h.b16 %v1352
        %v1758 = vunpack.c.l.b16 %v1353
        %v1759 = vunpack.c.h.b16 %v1353
        %v1760 = vunpack.c.l.b16 %v1354
        %v1761 = vunpack.c.h.b16 %v1354
        %v1762 = vunpack.c.l.b16 %v1355
        %v1763 = vunpack.c.h.b16 %v1355
        %v1764 = vunpack.c.l.b16 %v1356
        %v1765 = vunpack.c.h.b16 %v1356
        %v1766 = vunpack.c.l.b16 %v1357
        %v1767 = vunpack.c.h.b16 %v1357
        %v1768 = vunpack.c.l.b16 %v1358
        %v1769 = vunpack.c.h.b16 %v1358
        %v1770 = vunpack.c.l.b16 %v1359
        %v1771 = vunpack.c.h.b16 %v1359
        %v1772 = vunpack.c.l.b16 %v1360
        %v1773 = vunpack.c.h.b16 %v1360
        %v1774 = vunpack.c.l.b16 %v1361
        %v1775 = vunpack.c.h.b16 %v1361
        %v1776 = vunpack.c.l.b16 %v1362
        %v1777 = vunpack.c.h.b16 %v1362
        %v1778 = vunpack.c.l.b16 %v1363
        %v1779 = vunpack.c.h.b16 %v1363
        %v1780 = vpack.c.b16 %v1656, %v1652
        %v1781 = vpack.c.b16 %v1657, %v1653
        %v1782 = vpack.c.b16 %v1658, %v1654
        %v1783 = vpack.c.b16 %v1659, %v1655
        %v1784 = vpack.c.b16 %v1664, %v1660
        %v1785 = vpack.c.b16 %v1665, %v1661
        %v1786 = vpack.c.b16 %v1666, %v1662
        %v1787 = vpack.c.b16 %v1667, %v1663
        %v1788 = vpack.c.b16 %v1672, %v1668
        %v1789 = vpack.c.b16 %v1673, %v1669
        %v1790 = vpack.c.b16 %v1674, %v1670
        %v1791 = vpack.c.b16 %v1675, %v1671
        %v1792 = vpack.c.b16 %v1680, %v1676
        %v1793 = vpack.c.b16 %v1681, %v1677
        %v1794 = vpack.c.b16 %v1682, %v1678
        %v1795 = vpack.c.b16 %v1683, %v1679
        %v1796 = vpack.c.b16 %v1688, %v1684
        %v1797 = vpack.c.b16 %v1689, %v1685
        %v1798 = vpack.c.b16 %v1690, %v1686
        %v1799 = vpack.c.b16 %v1691, %v1687
        %v1800 = vpack.c.b16 %v1696, %v1692
        %v1801 = vpack.c.b16 %v1697, %v1693
        %v1802 = vpack.c.b16 %v1698, %v1694
        %v1803 = vpack.c.b16 %v1699, %v1695
        %v1804 = vpack.c.b16 %v1704, %v1700
        %v1805 = vpack.c.b16 %v1705, %v1701
        %v1806 = vpack.c.b16 %v1706, %v1702
        %v1807 = vpack.c.b16 %v1707, %v1703
        %v1808 = vpack.c.b16 %v1712, %v1708
        %v1809 = vpack.c.b16 %v1713, %v1709
        %v1810 = vpack.c.b16 %v1714, %v1710
        %v1811 = vpack.c.b16 %v1715, %v1711
        %v1812 = vpack.c.b16 %v1720, %v1716
        %v1813 = vpack.c.b16 %v1721, %v1717
        %v1814 = vpack.c.b16 %v1722, %v1718
        %v1815 = vpack.c.b16 %v1723, %v1719
        %v1816 = vpack.c.b16 %v1728, %v1724
        %v1817 = vpack.c.b16 %v1729, %v1725
        %v1818 = vpack.c.b16 %v1730, %v1726
        %v1819 = vpack.c.b16 %v1731, %v1727
        %v1820 = vpack.c.b16 %v1736, %v1732
        %v1821 = vpack.c.b16 %v1737, %v1733
        %v1822 = vpack.c.b16 %v1738, %v1734
        %v1823 = vpack.c.b16 %v1739, %v1735
        %v1824 = vpack.c.b16 %v1744, %v1740
        %v1825 = vpack.c.b16 %v1745, %v1741
        %v1826 = vpack.c.b16 %v1746, %v1742
        %v1827 = vpack.c.b16 %v1747, %v1743
        %v1828 = vpack.c.b16 %v1752, %v1748
        %v1829 = vpack.c.b16 %v1753, %v1749
        %v1830 = vpack.c.b16 %v1754, %v1750
        %v1831 = vpack.c.b16 %v1755, %v1751
        %v1832 = vpack.c.b16 %v1760, %v1756
        %v1833 = vpack.c.b16 %v1761, %v1757
        %v1834 = vpack.c.b16 %v1762, %v1758
        %v1835 = vpack.c.b16 %v1763, %v1759
        %v1836 = vpack.c.b16 %v1768, %v1764
        %v1837 = vpack.c.b16 %v1769, %v1765
        %v1838 = vpack.c.b16 %v1770, %v1766
        %v1839 = vpack.c.b16 %v1771, %v1767
        %v1840 = vpack.c.b16 %v1776, %v1772
        %v1841 = vpack.c.b16 %v1777, %v1773
        %v1842 = vpack.c.b16 %v1778, %v1774
        %v1843 = vpack.c.b16 %v1779, %v1775
        %1908 = vmatpush.bf16.msra.mxu0 %v1371
        %1909 = vmatpush.bf16.msra.mxu0 %v1370
        %1910 = vmatpush.bf16.msra.mxu0 %v1369
        %1911 = vmatpush.bf16.msra.mxu0 %v1368
        %1912 = vmatpush.bf16.msra.mxu0 %v1367
        %1913 = vmatpush.bf16.msra.mxu0 %v1366
        %1914 = vmatpush.bf16.msra.mxu0 %v1365
        %1915 = vmatpush.bf16.msra.mxu0 %v1364
        %1916 = vmatmul.bf16.gmra.mxu0 %v1780
        %v1917 = vpop.f32.mrf.mxu0
        %v1918 = vadd.f32 %v1431, %v1917
        %v1919 = vpop.f32.mrf.mxu0
        %v1920 = vadd.f32 %v1436, %v1919
        %1921 = vmatmul.bf16.gmra.mxu0 %v1784
        %v1922 = vpop.f32.mrf.mxu0
        %v1923 = vadd.f32 %v1441, %v1922
        %v1924 = vpop.f32.mrf.mxu0
        %v1925 = vadd.f32 %v1446, %v1924
        %1926 = vmatmul.bf16.gmra.mxu0 %v1788
        %v1927 = vpop.f32.mrf.mxu0
        %v1928 = vadd.f32 %v1451, %v1927
        %v1929 = vpop.f32.mrf.mxu0
        %v1930 = vadd.f32 %v1456, %v1929
        %1931 = vmatmul.bf16.gmra.mxu0 %v1792
        %v1932 = vpop.f32.mrf.mxu0
        %v1933 = vadd.f32 %v1461, %v1932
        %v1934 = vpop.f32.mrf.mxu0
        %v1935 = vadd.f32 %v1466, %v1934
        %1936 = vmatmul.bf16.gmra.mxu0 %v1796
        %v1937 = vpop.f32.mrf.mxu0
        %v1938 = vadd.f32 %v1471, %v1937
        %v1939 = vpop.f32.mrf.mxu0
        %v1940 = vadd.f32 %v1476, %v1939
        %1941 = vmatmul.bf16.gmra.mxu0 %v1800
        %v1942 = vpop.f32.mrf.mxu0
        %v1943 = vadd.f32 %v1481, %v1942
        %v1944 = vpop.f32.mrf.mxu0
        %v1945 = vadd.f32 %v1486, %v1944
        %1946 = vmatmul.bf16.gmra.mxu0 %v1804
        %v1947 = vpop.f32.mrf.mxu0
        %v1948 = vadd.f32 %v1491, %v1947
        %v1949 = vpop.f32.mrf.mxu0
        %v1950 = vadd.f32 %v1496, %v1949
        %1951 = vmatmul.bf16.gmra.mxu0 %v1808
        %v1952 = vpop.f32.mrf.mxu0
        %v1953 = vadd.f32 %v1501, %v1952
        %v1954 = vpop.f32.mrf.mxu0
        %v1955 = vadd.f32 %v1506, %v1954
        %1956 = vmatmul.bf16.gmra.mxu0 %v1812
        %v1957 = vpop.f32.mrf.mxu0
        %v1958 = vadd.f32 %v1511, %v1957
        %v1959 = vpop.f32.mrf.mxu0
        %v1960 = vadd.f32 %v1516, %v1959
        %1961 = vmatmul.bf16.gmra.mxu0 %v1816
        %v1962 = vpop.f32.mrf.mxu0
        %v1963 = vadd.f32 %v1521, %v1962
        %v1964 = vpop.f32.mrf.mxu0
        %v1965 = vadd.f32 %v1526, %v1964
        %1966 = vmatmul.bf16.gmra.mxu0 %v1820
        %v1967 = vpop.f32.mrf.mxu0
        %v1968 = vadd.f32 %v1531, %v1967
        %v1969 = vpop.f32.mrf.mxu0
        %v1970 = vadd.f32 %v1536, %v1969
        %1971 = vmatmul.bf16.gmra.mxu0 %v1824
        %v1972 = vpop.f32.mrf.mxu0
        %v1973 = vadd.f32 %v1541, %v1972
        %v1974 = vpop.f32.mrf.mxu0
        %v1975 = vadd.f32 %v1546, %v1974
        %1976 = vmatmul.bf16.gmra.mxu0 %v1828
        %v1977 = vpop.f32.mrf.mxu0
        %v1978 = vadd.f32 %v1551, %v1977
        %v1979 = vpop.f32.mrf.mxu0
        %v1980 = vadd.f32 %v1556, %v1979
        %1981 = vmatmul.bf16.gmra.mxu0 %v1832
        %v1982 = vpop.f32.mrf.mxu0
        %v1983 = vadd.f32 %v1561, %v1982
        %v1984 = vpop.f32.mrf.mxu0
        %v1985 = vadd.f32 %v1566, %v1984
        %1986 = vmatmul.bf16.gmra.mxu0 %v1836
        %v1987 = vpop.f32.mrf.mxu0
        %v1988 = vadd.f32 %v1571, %v1987
        %v1989 = vpop.f32.mrf.mxu0
        %v1990 = vadd.f32 %v1576, %v1989
        %1991 = vmatmul.bf16.gmra.mxu0 %v1840
        %v1992 = vpop.f32.mrf.mxu0
        %v1993 = vadd.f32 %v1581, %v1992
        %v1994 = vpop.f32.mrf.mxu0
        %v1995 = vadd.f32 %v1586, %v1994
        %1996 = vdwg.mxu0
        %1997 = vmatpush.bf16.msra.mxu0 %v1379
        %1998 = vmatpush.bf16.msra.mxu0 %v1378
        %1999 = vmatpush.bf16.msra.mxu0 %v1377
        %2000 = vmatpush.bf16.msra.mxu0 %v1376
        %2001 = vmatpush.bf16.msra.mxu0 %v1375
        %2002 = vmatpush.bf16.msra.mxu0 %v1374
        %2003 = vmatpush.bf16.msra.mxu0 %v1373
        %2004 = vmatpush.bf16.msra.mxu0 %v1372
        %2005 = vmatmul.bf16.gmra.mxu0 %v1781
        %v2006 = vpop.f32.mrf.mxu0
        %v2007 = vadd.f32 %v1918, %v2006
        %v2008 = vpop.f32.mrf.mxu0
        %v2009 = vadd.f32 %v1920, %v2008
        %2010 = vmatmul.bf16.gmra.mxu0 %v1785
        %v2011 = vpop.f32.mrf.mxu0
        %v2012 = vadd.f32 %v1923, %v2011
        %v2013 = vpop.f32.mrf.mxu0
        %v2014 = vadd.f32 %v1925, %v2013
        %2015 = vmatmul.bf16.gmra.mxu0 %v1789
        %v2016 = vpop.f32.mrf.mxu0
        %v2017 = vadd.f32 %v1928, %v2016
        %v2018 = vpop.f32.mrf.mxu0
        %v2019 = vadd.f32 %v1930, %v2018
        %2020 = vmatmul.bf16.gmra.mxu0 %v1793
        %v2021 = vpop.f32.mrf.mxu0
        %v2022 = vadd.f32 %v1933, %v2021
        %v2023 = vpop.f32.mrf.mxu0
        %v2024 = vadd.f32 %v1935, %v2023
        %2025 = vmatmul.bf16.gmra.mxu0 %v1797
        %v2026 = vpop.f32.mrf.mxu0
        %v2027 = vadd.f32 %v1938, %v2026
        %v2028 = vpop.f32.mrf.mxu0
        %v2029 = vadd.f32 %v1940, %v2028
        %2030 = vmatmul.bf16.gmra.mxu0 %v1801
        %v2031 = vpop.f32.mrf.mxu0
        %v2032 = vadd.f32 %v1943, %v2031
        %v2033 = vpop.f32.mrf.mxu0
        %v2034 = vadd.f32 %v1945, %v2033
        %2035 = vmatmul.bf16.gmra.mxu0 %v1805
        %v2036 = vpop.f32.mrf.mxu0
        %v2037 = vadd.f32 %v1948, %v2036
        %v2038 = vpop.f32.mrf.mxu0
        %v2039 = vadd.f32 %v1950, %v2038
        %2040 = vmatmul.bf16.gmra.mxu0 %v1809
        %v2041 = vpop.f32.mrf.mxu0
        %v2042 = vadd.f32 %v1953, %v2041
        %v2043 = vpop.f32.mrf.mxu0
        %v2044 = vadd.f32 %v1955, %v2043
        %2045 = vmatmul.bf16.gmra.mxu0 %v1813
        %v2046 = vpop.f32.mrf.mxu0
        %v2047 = vadd.f32 %v1958, %v2046
        %v2048 = vpop.f32.mrf.mxu0
        %v2049 = vadd.f32 %v1960, %v2048
        %2050 = vmatmul.bf16.gmra.mxu0 %v1817
        %v2051 = vpop.f32.mrf.mxu0
        %v2052 = vadd.f32 %v1963, %v2051
        %v2053 = vpop.f32.mrf.mxu0
        %v2054 = vadd.f32 %v1965, %v2053
        %2055 = vmatmul.bf16.gmra.mxu0 %v1821
        %v2056 = vpop.f32.mrf.mxu0
        %v2057 = vadd.f32 %v1968, %v2056
        %v2058 = vpop.f32.mrf.mxu0
        %v2059 = vadd.f32 %v1970, %v2058
        %2060 = vmatmul.bf16.gmra.mxu0 %v1825
        %v2061 = vpop.f32.mrf.mxu0
        %v2062 = vadd.f32 %v1973, %v2061
        %v2063 = vpop.f32.mrf.mxu0
        %v2064 = vadd.f32 %v1975, %v2063
        %2065 = vmatmul.bf16.gmra.mxu0 %v1829
        %v2066 = vpop.f32.mrf.mxu0
        %v2067 = vadd.f32 %v1978, %v2066
        %v2068 = vpop.f32.mrf.mxu0
        %v2069 = vadd.f32 %v1980, %v2068
        %2070 = vmatmul.bf16.gmra.mxu0 %v1833
        %v2071 = vpop.f32.mrf.mxu0
        %v2072 = vadd.f32 %v1983, %v2071
        %v2073 = vpop.f32.mrf.mxu0
        %v2074 = vadd.f32 %v1985, %v2073
        %2075 = vmatmul.bf16.gmra.mxu0 %v1837
        %v2076 = vpop.f32.mrf.mxu0
        %v2077 = vadd.f32 %v1988, %v2076
        %v2078 = vpop.f32.mrf.mxu0
        %v2079 = vadd.f32 %v1990, %v2078
        %2080 = vmatmul.bf16.gmra.mxu0 %v1841
        %v2081 = vpop.f32.mrf.mxu0
        %v2082 = vadd.f32 %v1993, %v2081
        %v2083 = vpop.f32.mrf.mxu0
        %v2084 = vadd.f32 %v1995, %v2083
        %2085 = vdwg.mxu0
        %2086 = vmatpush.bf16.msra.mxu0 %v1387
        %2087 = vmatpush.bf16.msra.mxu0 %v1386
        %2088 = vmatpush.bf16.msra.mxu0 %v1385
        %2089 = vmatpush.bf16.msra.mxu0 %v1384
        %2090 = vmatpush.bf16.msra.mxu0 %v1383
        %2091 = vmatpush.bf16.msra.mxu0 %v1382
        %2092 = vmatpush.bf16.msra.mxu0 %v1381
        %2093 = vmatpush.bf16.msra.mxu0 %v1380
        %2094 = vmatmul.bf16.gmra.mxu0 %v1782
        %v2095 = vpop.f32.mrf.mxu0
        %v2096 = vadd.f32 %v2007, %v2095
        %v2097 = vpop.f32.mrf.mxu0
        %v2098 = vadd.f32 %v2009, %v2097
        %2099 = vmatmul.bf16.gmra.mxu0 %v1786
        %v2100 = vpop.f32.mrf.mxu0
        %v2101 = vadd.f32 %v2012, %v2100
        %v2102 = vpop.f32.mrf.mxu0
        %v2103 = vadd.f32 %v2014, %v2102
        %2104 = vmatmul.bf16.gmra.mxu0 %v1790
        %v2105 = vpop.f32.mrf.mxu0
        %v2106 = vadd.f32 %v2017, %v2105
        %v2107 = vpop.f32.mrf.mxu0
        %v2108 = vadd.f32 %v2019, %v2107
        %2109 = vmatmul.bf16.gmra.mxu0 %v1794
        %v2110 = vpop.f32.mrf.mxu0
        %v2111 = vadd.f32 %v2022, %v2110
        %v2112 = vpop.f32.mrf.mxu0
        %v2113 = vadd.f32 %v2024, %v2112
        %2114 = vmatmul.bf16.gmra.mxu0 %v1798
        %v2115 = vpop.f32.mrf.mxu0
        %v2116 = vadd.f32 %v2027, %v2115
        %v2117 = vpop.f32.mrf.mxu0
        %v2118 = vadd.f32 %v2029, %v2117
        %2119 = vmatmul.bf16.gmra.mxu0 %v1802
        %v2120 = vpop.f32.mrf.mxu0
        %v2121 = vadd.f32 %v2032, %v2120
        %v2122 = vpop.f32.mrf.mxu0
        %v2123 = vadd.f32 %v2034, %v2122
        %2124 = vmatmul.bf16.gmra.mxu0 %v1806
        %v2125 = vpop.f32.mrf.mxu0
        %v2126 = vadd.f32 %v2037, %v2125
        %v2127 = vpop.f32.mrf.mxu0
        %v2128 = vadd.f32 %v2039, %v2127
        %2129 = vmatmul.bf16.gmra.mxu0 %v1810
        %v2130 = vpop.f32.mrf.mxu0
        %v2131 = vadd.f32 %v2042, %v2130
        %v2132 = vpop.f32.mrf.mxu0
        %v2133 = vadd.f32 %v2044, %v2132
        %2134 = vmatmul.bf16.gmra.mxu0 %v1814
        %v2135 = vpop.f32.mrf.mxu0
        %v2136 = vadd.f32 %v2047, %v2135
        %v2137 = vpop.f32.mrf.mxu0
        %v2138 = vadd.f32 %v2049, %v2137
        %2139 = vmatmul.bf16.gmra.mxu0 %v1818
        %v2140 = vpop.f32.mrf.mxu0
        %v2141 = vadd.f32 %v2052, %v2140
        %v2142 = vpop.f32.mrf.mxu0
        %v2143 = vadd.f32 %v2054, %v2142
        %2144 = vmatmul.bf16.gmra.mxu0 %v1822
        %v2145 = vpop.f32.mrf.mxu0
        %v2146 = vadd.f32 %v2057, %v2145
        %v2147 = vpop.f32.mrf.mxu0
        %v2148 = vadd.f32 %v2059, %v2147
        %2149 = vmatmul.bf16.gmra.mxu0 %v1826
        %v2150 = vpop.f32.mrf.mxu0
        %v2151 = vadd.f32 %v2062, %v2150
        %v2152 = vpop.f32.mrf.mxu0
        %v2153 = vadd.f32 %v2064, %v2152
        %2154 = vmatmul.bf16.gmra.mxu0 %v1830
        %v2155 = vpop.f32.mrf.mxu0
        %v2156 = vadd.f32 %v2067, %v2155
        %v2157 = vpop.f32.mrf.mxu0
        %v2158 = vadd.f32 %v2069, %v2157
        %2159 = vmatmul.bf16.gmra.mxu0 %v1834
        %v2160 = vpop.f32.mrf.mxu0
        %v2161 = vadd.f32 %v2072, %v2160
        %v2162 = vpop.f32.mrf.mxu0
        %v2163 = vadd.f32 %v2074, %v2162
        %2164 = vmatmul.bf16.gmra.mxu0 %v1838
        %v2165 = vpop.f32.mrf.mxu0
        %v2166 = vadd.f32 %v2077, %v2165
        %v2167 = vpop.f32.mrf.mxu0
        %v2168 = vadd.f32 %v2079, %v2167
        %2169 = vmatmul.bf16.gmra.mxu0 %v1842
        %v2170 = vpop.f32.mrf.mxu0
        %v2171 = vadd.f32 %v2082, %v2170
        %v2172 = vpop.f32.mrf.mxu0
        %v2173 = vadd.f32 %v2084, %v2172
        %2174 = vdwg.mxu0
        %2175 = vmatpush.bf16.msra.mxu0 %v1395
        %2176 = vmatpush.bf16.msra.mxu0 %v1394
        %2177 = vmatpush.bf16.msra.mxu0 %v1393
        %2178 = vmatpush.bf16.msra.mxu0 %v1392
        %2179 = vmatpush.bf16.msra.mxu0 %v1391
        %2180 = vmatpush.bf16.msra.mxu0 %v1390
        %2181 = vmatpush.bf16.msra.mxu0 %v1389
        %2182 = vmatpush.bf16.msra.mxu0 %v1388
        %2183 = vmatmul.bf16.gmra.mxu0 %v1783
        %v2184 = vpop.f32.mrf.mxu0
        %v2185 = vadd.f32 %v2096, %v2184
        %v2186 = vpop.f32.mrf.mxu0
        %v2187 = vadd.f32 %v2098, %v2186
        %2188 = vmatmul.bf16.gmra.mxu0 %v1787
        %v2189 = vpop.f32.mrf.mxu0
        %v2190 = vadd.f32 %v2101, %v2189
        %v2191 = vpop.f32.mrf.mxu0
        %v2192 = vadd.f32 %v2103, %v2191
        %2193 = vmatmul.bf16.gmra.mxu0 %v1791
        %v2194 = vpop.f32.mrf.mxu0
        %v2195 = vadd.f32 %v2106, %v2194
        %v2196 = vpop.f32.mrf.mxu0
        %v2197 = vadd.f32 %v2108, %v2196
        %2198 = vmatmul.bf16.gmra.mxu0 %v1795
        %v2199 = vpop.f32.mrf.mxu0
        %v2200 = vadd.f32 %v2111, %v2199
        %v2201 = vpop.f32.mrf.mxu0
        %v2202 = vadd.f32 %v2113, %v2201
        %2203 = vmatmul.bf16.gmra.mxu0 %v1799
        %v2204 = vpop.f32.mrf.mxu0
        %v2205 = vadd.f32 %v2116, %v2204
        %v2206 = vpop.f32.mrf.mxu0
        %v2207 = vadd.f32 %v2118, %v2206
        %2208 = vmatmul.bf16.gmra.mxu0 %v1803
        %v2209 = vpop.f32.mrf.mxu0
        %v2210 = vadd.f32 %v2121, %v2209
        %v2211 = vpop.f32.mrf.mxu0
        %v2212 = vadd.f32 %v2123, %v2211
        %2213 = vmatmul.bf16.gmra.mxu0 %v1807
        %v2214 = vpop.f32.mrf.mxu0
        %v2215 = vadd.f32 %v2126, %v2214
        %v2216 = vpop.f32.mrf.mxu0
        %v2217 = vadd.f32 %v2128, %v2216
        %2218 = vmatmul.bf16.gmra.mxu0 %v1811
        %v2219 = vpop.f32.mrf.mxu0
        %v2220 = vadd.f32 %v2131, %v2219
        %v2221 = vpop.f32.mrf.mxu0
        %v2222 = vadd.f32 %v2133, %v2221
        %2223 = vmatmul.bf16.gmra.mxu0 %v1815
        %v2224 = vpop.f32.mrf.mxu0
        %v2225 = vadd.f32 %v2136, %v2224
        %v2226 = vpop.f32.mrf.mxu0
        %v2227 = vadd.f32 %v2138, %v2226
        %2228 = vmatmul.bf16.gmra.mxu0 %v1819
        %v2229 = vpop.f32.mrf.mxu0
        %v2230 = vadd.f32 %v2141, %v2229
        %v2231 = vpop.f32.mrf.mxu0
        %v2232 = vadd.f32 %v2143, %v2231
        %2233 = vmatmul.bf16.gmra.mxu0 %v1823
        %v2234 = vpop.f32.mrf.mxu0
        %v2235 = vadd.f32 %v2146, %v2234
        %v2236 = vpop.f32.mrf.mxu0
        %v2237 = vadd.f32 %v2148, %v2236
        %2238 = vmatmul.bf16.gmra.mxu0 %v1827
        %v2239 = vpop.f32.mrf.mxu0
        %v2240 = vadd.f32 %v2151, %v2239
        %v2241 = vpop.f32.mrf.mxu0
        %v2242 = vadd.f32 %v2153, %v2241
        %2243 = vmatmul.bf16.gmra.mxu0 %v1831
        %v2244 = vpop.f32.mrf.mxu0
        %v2245 = vadd.f32 %v2156, %v2244
        %v2246 = vpop.f32.mrf.mxu0
        %v2247 = vadd.f32 %v2158, %v2246
        %2248 = vmatmul.bf16.gmra.mxu0 %v1835
        %v2249 = vpop.f32.mrf.mxu0
        %v2250 = vadd.f32 %v2161, %v2249
        %v2251 = vpop.f32.mrf.mxu0
        %v2252 = vadd.f32 %v2163, %v2251
        %2253 = vmatmul.bf16.gmra.mxu0 %v1839
        %v2254 = vpop.f32.mrf.mxu0
        %v2255 = vadd.f32 %v2166, %v2254
        %v2256 = vpop.f32.mrf.mxu0
        %v2257 = vadd.f32 %v2168, %v2256
        %2258 = vmatmul.bf16.gmra.mxu0 %v1843
        %v2259 = vpop.f32.mrf.mxu0
        %v2260 = vadd.f32 %v2171, %v2259
        %v2261 = vpop.f32.mrf.mxu0
        %v2262 = vadd.f32 %v2173, %v2261
        %2263 = vdwg.mxu0
        %v2264 = vmax.f32 %v2185, 0.0
        %v2265 = vmax.f32 %v2187, 0.0
        %v2266 = vmax.f32 %v2190, 0.0
        %v2267 = vmax.f32 %v2192, 0.0
        %v2268 = vmax.f32 %v2195, 0.0
        %v2269 = vmax.f32 %v2197, 0.0
        %v2270 = vmax.f32 %v2200, 0.0
        %v2271 = vmax.f32 %v2202, 0.0
        %v2272 = vmax.f32 %v2205, 0.0
        %v2273 = vmax.f32 %v2207, 0.0
        %v2274 = vmax.f32 %v2210, 0.0
        %v2275 = vmax.f32 %v2212, 0.0
        %v2276 = vmax.f32 %v2215, 0.0
        %v2277 = vmax.f32 %v2217, 0.0
        %v2278 = vmax.f32 %v2220, 0.0
        %v2279 = vmax.f32 %v2222, 0.0
        %v2280 = vmax.f32 %v2225, 0.0
        %v2281 = vmax.f32 %v2227, 0.0
        %v2282 = vmax.f32 %v2230, 0.0
        %v2283 = vmax.f32 %v2232, 0.0
        %v2284 = vmax.f32 %v2235, 0.0
        %v2285 = vmax.f32 %v2237, 0.0
        %v2286 = vmax.f32 %v2240, 0.0
        %v2287 = vmax.f32 %v2242, 0.0
        %v2288 = vmax.f32 %v2245, 0.0
        %v2289 = vmax.f32 %v2247, 0.0
        %v2290 = vmax.f32 %v2250, 0.0
        %v2291 = vmax.f32 %v2252, 0.0
        %v2292 = vmax.f32 %v2255, 0.0
        %v2293 = vmax.f32 %v2257, 0.0
        %v2294 = vmax.f32 %v2260, 0.0
        %v2295 = vmax.f32 %v2262, 0.0
        %v2296 = vsel %vm355, 1, 0
        %vm2297 = vcmp.eq.s32.totalorder %v2296, 1
        %v2298 = vsel %vm2297, %v2264, 0.0
        %v2299 = vsel %vm2297, %v2265, 0.0
        %v2300 = vsel %vm2297, %v2266, 0.0
        %v2301 = vsel %vm2297, %v2267, 0.0
        %v2302 = vsel %vm2297, %v2268, 0.0
        %v2303 = vsel %vm2297, %v2269, 0.0
        %v2304 = vsel %vm2297, %v2270, 0.0
        %v2305 = vsel %vm2297, %v2271, 0.0
        %v2306 = vsel %vm2297, %v2272, 0.0
        %v2307 = vsel %vm2297, %v2273, 0.0
        %v2308 = vsel %vm2297, %v2274, 0.0
        %v2309 = vsel %vm2297, %v2275, 0.0
        %v2310 = vsel %vm2297, %v2276, 0.0
        %v2311 = vsel %vm2297, %v2277, 0.0
        %v2312 = vsel %vm2297, %v2278, 0.0
        %v2313 = vsel %vm2297, %v2279, 0.0
        %v2314 = vsel %vm2297, %v2280, 0.0
        %v2315 = vsel %vm2297, %v2281, 0.0
        %v2316 = vsel %vm2297, %v2282, 0.0
        %v2317 = vsel %vm2297, %v2283, 0.0
        %v2318 = vsel %vm2297, %v2284, 0.0
        %v2319 = vsel %vm2297, %v2285, 0.0
        %v2320 = vsel %vm2297, %v2286, 0.0
        %v2321 = vsel %vm2297, %v2287, 0.0
        %v2322 = vsel %vm2297, %v2288, 0.0
        %v2323 = vsel %vm2297, %v2289, 0.0
        %v2324 = vsel %vm2297, %v2290, 0.0
        %v2325 = vsel %vm2297, %v2291, 0.0
        %v2326 = vsel %vm2297, %v2292, 0.0
        %v2327 = vsel %vm2297, %v2293, 0.0
        %v2328 = vsel %vm2297, %v2294, 0.0
        %v2329 = vsel %vm2297, %v2295, 0.0
        %2330 = vadd.xlane.f32.xlu0 %v2298
        %v2331 = vpop.xlane.xlu0 %2330
        %2332 = vadd.xlane.f32.xlu0 %v2299
        %v2333 = vpop.xlane.xlu0 %2332
        %2334 = vadd.xlane.f32.xlu0 %v2300
        %v2335 = vpop.xlane.xlu0 %2334
        %2336 = vadd.xlane.f32.xlu0 %v2301
        %v2337 = vpop.xlane.xlu0 %2336
        %2338 = vadd.xlane.f32.xlu0 %v2302
        %v2339 = vpop.xlane.xlu0 %2338
        %2340 = vadd.xlane.f32.xlu0 %v2303
        %v2341 = vpop.xlane.xlu0 %2340
        %2342 = vadd.xlane.f32.xlu0 %v2304
        %v2343 = vpop.xlane.xlu0 %2342
        %2344 = vadd.xlane.f32.xlu0 %v2305
        %v2345 = vpop.xlane.xlu0 %2344
        %2346 = vadd.xlane.f32.xlu0 %v2306
        %v2347 = vpop.xlane.xlu0 %2346
        %2348 = vadd.xlane.f32.xlu0 %v2307
        %v2349 = vpop.xlane.xlu0 %2348
        %2350 = vadd.xlane.f32.xlu0 %v2308
        %v2351 = vpop.xlane.xlu0 %2350
        %2352 = vadd.xlane.f32.xlu0 %v2309
        %v2353 = vpop.xlane.xlu0 %2352
        %2354 = vadd.xlane.f32.xlu0 %v2310
        %v2355 = vpop.xlane.xlu0 %2354
        %2356 = vadd.xlane.f32.xlu0 %v2311
        %v2357 = vpop.xlane.xlu0 %2356
        %2358 = vadd.xlane.f32.xlu0 %v2312
        %v2359 = vpop.xlane.xlu0 %2358
        %2360 = vadd.xlane.f32.xlu0 %v2313
        %v2361 = vpop.xlane.xlu0 %2360
        %2362 = vadd.xlane.f32.xlu0 %v2314
        %v2363 = vpop.xlane.xlu0 %2362
        %2364 = vadd.xlane.f32.xlu0 %v2315
        %v2365 = vpop.xlane.xlu0 %2364
        %2366 = vadd.xlane.f32.xlu0 %v2316
        %v2367 = vpop.xlane.xlu0 %2366
        %2368 = vadd.xlane.f32.xlu0 %v2317
        %v2369 = vpop.xlane.xlu0 %2368
        %2370 = vadd.xlane.f32.xlu0 %v2318
        %v2371 = vpop.xlane.xlu0 %2370
        %2372 = vadd.xlane.f32.xlu0 %v2319
        %v2373 = vpop.xlane.xlu0 %2372
        %2374 = vadd.xlane.f32.xlu0 %v2320
        %v2375 = vpop.xlane.xlu0 %2374
        %2376 = vadd.xlane.f32.xlu0 %v2321
        %v2377 = vpop.xlane.xlu0 %2376
        %2378 = vadd.xlane.f32.xlu0 %v2322
        %v2379 = vpop.xlane.xlu0 %2378
        %2380 = vadd.xlane.f32.xlu0 %v2323
        %v2381 = vpop.xlane.xlu0 %2380
        %2382 = vadd.xlane.f32.xlu0 %v2324
        %v2383 = vpop.xlane.xlu0 %2382
        %2384 = vadd.xlane.f32.xlu0 %v2325
        %v2385 = vpop.xlane.xlu0 %2384
        %2386 = vadd.xlane.f32.xlu0 %v2326
        %v2387 = vpop.xlane.xlu0 %2386
        %2388 = vadd.xlane.f32.xlu0 %v2327
        %v2389 = vpop.xlane.xlu0 %2388
        %2390 = vadd.xlane.f32.xlu0 %v2328
        %v2391 = vpop.xlane.xlu0 %2390
        %2392 = vadd.xlane.f32.xlu0 %v2329
        %v2393 = vpop.xlane.xlu0 %2392
        %s2394 = scalar_lea.vmem %s288, 4 [#allocation3]
        %v2395 = vld [vmem:[%s2394] sm:$0xf]
        %v2396 = vpack.c.bf16 %v2395, %v2395
        %v2398 = vsel %vm1063, %v2396, 0
        %2400 = vmatpush.bf16.msra.mxu0 0
        %2401 = vmatpush.bf16.msra.mxu0 0
        %2402 = vmatpush.bf16.msra.mxu0 0
        %2403 = vmatpush.bf16.msra.mxu0 0
        %2404 = vmatpush.bf16.msra.mxu0 0
        %2405 = vmatpush.bf16.msra.mxu0 0
        %2406 = vmatpush.bf16.msra.mxu0 0
        %2407 = vmatpush.bf16.msra.mxu0 %v2398
        %2408 = vmatmul.bf16.gmra.mxu0 %v968
        %v2409 = vpop.f32.mrf.mxu0
        %v2410 = vadd.f32 %v489, %v2409
        %v2411 = vpop.f32.mrf.mxu0
        %v2412 = vadd.f32 %v494, %v2411
        %2413 = vmatmul.bf16.gmra.mxu0 %v971
        %v2414 = vpop.f32.mrf.mxu0
        %v2415 = vadd.f32 %v499, %v2414
        %v2416 = vpop.f32.mrf.mxu0
        %v2417 = vadd.f32 %v504, %v2416
        %2418 = vmatmul.bf16.gmra.mxu0 %v974
        %v2419 = vpop.f32.mrf.mxu0
        %v2420 = vadd.f32 %v509, %v2419
        %v2421 = vpop.f32.mrf.mxu0
        %v2422 = vadd.f32 %v514, %v2421
        %2423 = vmatmul.bf16.gmra.mxu0 %v977
        %v2424 = vpop.f32.mrf.mxu0
        %v2425 = vadd.f32 %v519, %v2424
        %v2426 = vpop.f32.mrf.mxu0
        %v2427 = vadd.f32 %v524, %v2426
        %2428 = vmatmul.bf16.gmra.mxu0 %v980
        %v2429 = vpop.f32.mrf.mxu0
        %v2430 = vadd.f32 %v529, %v2429
        %v2431 = vpop.f32.mrf.mxu0
        %v2432 = vadd.f32 %v534, %v2431
        %2433 = vmatmul.bf16.gmra.mxu0 %v983
        %v2434 = vpop.f32.mrf.mxu0
        %v2435 = vadd.f32 %v539, %v2434
        %v2436 = vpop.f32.mrf.mxu0
        %v2437 = vadd.f32 %v544, %v2436
        %2438 = vmatmul.bf16.gmra.mxu0 %v986
        %v2439 = vpop.f32.mrf.mxu0
        %v2440 = vadd.f32 %v549, %v2439
        %v2441 = vpop.f32.mrf.mxu0
        %v2442 = vadd.f32 %v554, %v2441
        %2443 = vmatmul.bf16.gmra.mxu0 %v989
        %v2444 = vpop.f32.mrf.mxu0
        %v2445 = vadd.f32 %v559, %v2444
        %v2446 = vpop.f32.mrf.mxu0
        %v2447 = vadd.f32 %v564, %v2446
        %2448 = vmatmul.bf16.gmra.mxu0 %v992
        %v2449 = vpop.f32.mrf.mxu0
        %v2450 = vadd.f32 %v569, %v2449
        %v2451 = vpop.f32.mrf.mxu0
        %v2452 = vadd.f32 %v574, %v2451
        %2453 = vmatmul.bf16.gmra.mxu0 %v995
        %v2454 = vpop.f32.mrf.mxu0
        %v2455 = vadd.f32 %v579, %v2454
        %v2456 = vpop.f32.mrf.mxu0
        %v2457 = vadd.f32 %v584, %v2456
        %2458 = vmatmul.bf16.gmra.mxu0 %v998
        %v2459 = vpop.f32.mrf.mxu0
        %v2460 = vadd.f32 %v589, %v2459
        %v2461 = vpop.f32.mrf.mxu0
        %v2462 = vadd.f32 %v594, %v2461
        %2463 = vmatmul.bf16.gmra.mxu0 %v1001
        %v2464 = vpop.f32.mrf.mxu0
        %v2465 = vadd.f32 %v599, %v2464
        %v2466 = vpop.f32.mrf.mxu0
        %v2467 = vadd.f32 %v604, %v2466
        %2468 = vmatmul.bf16.gmra.mxu0 %v1004
        %v2469 = vpop.f32.mrf.mxu0
        %v2470 = vadd.f32 %v609, %v2469
        %v2471 = vpop.f32.mrf.mxu0
        %v2472 = vadd.f32 %v614, %v2471
        %2473 = vmatmul.bf16.gmra.mxu0 %v1007
        %v2474 = vpop.f32.mrf.mxu0
        %v2475 = vadd.f32 %v619, %v2474
        %v2476 = vpop.f32.mrf.mxu0
        %v2477 = vadd.f32 %v624, %v2476
        %2478 = vmatmul.bf16.gmra.mxu0 %v1010
        %v2479 = vpop.f32.mrf.mxu0
        %v2480 = vadd.f32 %v629, %v2479
        %v2481 = vpop.f32.mrf.mxu0
        %v2482 = vadd.f32 %v634, %v2481
        %2483 = vmatmul.bf16.gmra.mxu0 %v1013
        %v2484 = vpop.f32.mrf.mxu0
        %v2485 = vadd.f32 %v639, %v2484
        %v2486 = vpop.f32.mrf.mxu0
        %v2487 = vadd.f32 %v644, %v2486
        %2488 = vmatmul.bf16.gmra.mxu0 %v1016
        %v2489 = vpop.f32.mrf.mxu0
        %v2490 = vadd.f32 %v649, %v2489
        %v2491 = vpop.f32.mrf.mxu0
        %v2492 = vadd.f32 %v654, %v2491
        %2493 = vmatmul.bf16.gmra.mxu0 %v1019
        %v2494 = vpop.f32.mrf.mxu0
        %v2495 = vadd.f32 %v659, %v2494
        %v2496 = vpop.f32.mrf.mxu0
        %v2497 = vadd.f32 %v664, %v2496
        %2498 = vmatmul.bf16.gmra.mxu0 %v1022
        %v2499 = vpop.f32.mrf.mxu0
        %v2500 = vadd.f32 %v669, %v2499
        %v2501 = vpop.f32.mrf.mxu0
        %v2502 = vadd.f32 %v674, %v2501
        %2503 = vmatmul.bf16.gmra.mxu0 %v1025
        %v2504 = vpop.f32.mrf.mxu0
        %v2505 = vadd.f32 %v679, %v2504
        %v2506 = vpop.f32.mrf.mxu0
        %v2507 = vadd.f32 %v684, %v2506
        %2508 = vmatmul.bf16.gmra.mxu0 %v1028
        %v2509 = vpop.f32.mrf.mxu0
        %v2510 = vadd.f32 %v689, %v2509
        %v2511 = vpop.f32.mrf.mxu0
        %v2512 = vadd.f32 %v694, %v2511
        %2513 = vmatmul.bf16.gmra.mxu0 %v1031
        %v2514 = vpop.f32.mrf.mxu0
        %v2515 = vadd.f32 %v699, %v2514
        %v2516 = vpop.f32.mrf.mxu0
        %v2517 = vadd.f32 %v704, %v2516
        %2518 = vmatmul.bf16.gmra.mxu0 %v1034
        %v2519 = vpop.f32.mrf.mxu0
        %v2520 = vadd.f32 %v709, %v2519
        %v2521 = vpop.f32.mrf.mxu0
        %v2522 = vadd.f32 %v714, %v2521
        %2523 = vmatmul.bf16.gmra.mxu0 %v1037
        %v2524 = vpop.f32.mrf.mxu0
        %v2525 = vadd.f32 %v719, %v2524
        %v2526 = vpop.f32.mrf.mxu0
        %v2527 = vadd.f32 %v724, %v2526
        %2528 = vmatmul.bf16.gmra.mxu0 %v1040
        %v2529 = vpop.f32.mrf.mxu0
        %v2530 = vadd.f32 %v729, %v2529
        %v2531 = vpop.f32.mrf.mxu0
        %v2532 = vadd.f32 %v734, %v2531
        %2533 = vmatmul.bf16.gmra.mxu0 %v1043
        %v2534 = vpop.f32.mrf.mxu0
        %v2535 = vadd.f32 %v739, %v2534
        %v2536 = vpop.f32.mrf.mxu0
        %v2537 = vadd.f32 %v744, %v2536
        %2538 = vmatmul.bf16.gmra.mxu0 %v1046
        %v2539 = vpop.f32.mrf.mxu0
        %v2540 = vadd.f32 %v749, %v2539
        %v2541 = vpop.f32.mrf.mxu0
        %v2542 = vadd.f32 %v754, %v2541
        %2543 = vmatmul.bf16.gmra.mxu0 %v1049
        %v2544 = vpop.f32.mrf.mxu0
        %v2545 = vadd.f32 %v759, %v2544
        %v2546 = vpop.f32.mrf.mxu0
        %v2547 = vadd.f32 %v764, %v2546
        %2548 = vmatmul.bf16.gmra.mxu0 %v1052
        %v2549 = vpop.f32.mrf.mxu0
        %v2550 = vadd.f32 %v769, %v2549
        %v2551 = vpop.f32.mrf.mxu0
        %v2552 = vadd.f32 %v774, %v2551
        %2553 = vmatmul.bf16.gmra.mxu0 %v1055
        %v2554 = vpop.f32.mrf.mxu0
        %v2555 = vadd.f32 %v779, %v2554
        %v2556 = vpop.f32.mrf.mxu0
        %v2557 = vadd.f32 %v784, %v2556
        %2558 = vmatmul.bf16.gmra.mxu0 %v1058
        %v2559 = vpop.f32.mrf.mxu0
        %v2560 = vadd.f32 %v789, %v2559
        %v2561 = vpop.f32.mrf.mxu0
        %v2562 = vadd.f32 %v794, %v2561
        %2563 = vmatmul.bf16.gmra.mxu0 %v1061
        %v2564 = vpop.f32.mrf.mxu0
        %v2565 = vadd.f32 %v799, %v2564
        %v2566 = vpop.f32.mrf.mxu0
        %v2567 = vadd.f32 %v804, %v2566
        %2568 = vdwg.mxu0
        %v2569 = vmax.f32 %v2410, 0.0
        %v2570 = vmax.f32 %v2412, 0.0
        %v2571 = vmax.f32 %v2415, 0.0
        %v2572 = vmax.f32 %v2417, 0.0
        %v2573 = vmax.f32 %v2420, 0.0
        %v2574 = vmax.f32 %v2422, 0.0
        %v2575 = vmax.f32 %v2425, 0.0
        %v2576 = vmax.f32 %v2427, 0.0
        %v2577 = vmax.f32 %v2430, 0.0
        %v2578 = vmax.f32 %v2432, 0.0
        %v2579 = vmax.f32 %v2435, 0.0
        %v2580 = vmax.f32 %v2437, 0.0
        %v2581 = vmax.f32 %v2440, 0.0
        %v2582 = vmax.f32 %v2442, 0.0
        %v2583 = vmax.f32 %v2445, 0.0
        %v2584 = vmax.f32 %v2447, 0.0
        %v2585 = vmax.f32 %v2450, 0.0
        %v2586 = vmax.f32 %v2452, 0.0
        %v2587 = vmax.f32 %v2455, 0.0
        %v2588 = vmax.f32 %v2457, 0.0
        %v2589 = vmax.f32 %v2460, 0.0
        %v2590 = vmax.f32 %v2462, 0.0
        %v2591 = vmax.f32 %v2465, 0.0
        %v2592 = vmax.f32 %v2467, 0.0
        %v2593 = vmax.f32 %v2470, 0.0
        %v2594 = vmax.f32 %v2472, 0.0
        %v2595 = vmax.f32 %v2475, 0.0
        %v2596 = vmax.f32 %v2477, 0.0
        %v2597 = vmax.f32 %v2480, 0.0
        %v2598 = vmax.f32 %v2482, 0.0
        %v2599 = vmax.f32 %v2485, 0.0
        %v2600 = vmax.f32 %v2487, 0.0
        %v2601 = vmax.f32 %v2490, 0.0
        %v2602 = vmax.f32 %v2492, 0.0
        %v2603 = vmax.f32 %v2495, 0.0
        %v2604 = vmax.f32 %v2497, 0.0
        %v2605 = vmax.f32 %v2500, 0.0
        %v2606 = vmax.f32 %v2502, 0.0
        %v2607 = vmax.f32 %v2505, 0.0
        %v2608 = vmax.f32 %v2507, 0.0
        %v2609 = vmax.f32 %v2510, 0.0
        %v2610 = vmax.f32 %v2512, 0.0
        %v2611 = vmax.f32 %v2515, 0.0
        %v2612 = vmax.f32 %v2517, 0.0
        %v2613 = vmax.f32 %v2520, 0.0
        %v2614 = vmax.f32 %v2522, 0.0
        %v2615 = vmax.f32 %v2525, 0.0
        %v2616 = vmax.f32 %v2527, 0.0
        %v2617 = vmax.f32 %v2530, 0.0
        %v2618 = vmax.f32 %v2532, 0.0
        %v2619 = vmax.f32 %v2535, 0.0
        %v2620 = vmax.f32 %v2537, 0.0
        %v2621 = vmax.f32 %v2540, 0.0
        %v2622 = vmax.f32 %v2542, 0.0
        %v2623 = vmax.f32 %v2545, 0.0
        %v2624 = vmax.f32 %v2547, 0.0
        %v2625 = vmax.f32 %v2550, 0.0
        %v2626 = vmax.f32 %v2552, 0.0
        %v2627 = vmax.f32 %v2555, 0.0
        %v2628 = vmax.f32 %v2557, 0.0
        %v2629 = vmax.f32 %v2560, 0.0
        %v2630 = vmax.f32 %v2562, 0.0
        %v2631 = vmax.f32 %v2565, 0.0
        %v2632 = vmax.f32 %v2567, 0.0
        %v2633 = vpack.c.bf16 %v2570, %v2569
        %v2634 = vpack.c.bf16 %v2572, %v2571
        %v2635 = vpack.c.bf16 %v2574, %v2573
        %v2636 = vpack.c.bf16 %v2576, %v2575
        %v2637 = vpack.c.bf16 %v2578, %v2577
        %v2638 = vpack.c.bf16 %v2580, %v2579
        %v2639 = vpack.c.bf16 %v2582, %v2581
        %v2640 = vpack.c.bf16 %v2584, %v2583
        %v2641 = vpack.c.bf16 %v2586, %v2585
        %v2642 = vpack.c.bf16 %v2588, %v2587
        %v2643 = vpack.c.bf16 %v2590, %v2589
        %v2644 = vpack.c.bf16 %v2592, %v2591
        %v2645 = vpack.c.bf16 %v2594, %v2593
        %v2646 = vpack.c.bf16 %v2596, %v2595
        %v2647 = vpack.c.bf16 %v2598, %v2597
        %v2648 = vpack.c.bf16 %v2600, %v2599
        %v2649 = vpack.c.bf16 %v2602, %v2601
        %v2650 = vpack.c.bf16 %v2604, %v2603
        %v2651 = vpack.c.bf16 %v2606, %v2605
        %v2652 = vpack.c.bf16 %v2608, %v2607
        %v2653 = vpack.c.bf16 %v2610, %v2609
        %v2654 = vpack.c.bf16 %v2612, %v2611
        %v2655 = vpack.c.bf16 %v2614, %v2613
        %v2656 = vpack.c.bf16 %v2616, %v2615
        %v2657 = vpack.c.bf16 %v2618, %v2617
        %v2658 = vpack.c.bf16 %v2620, %v2619
        %v2659 = vpack.c.bf16 %v2622, %v2621
        %v2660 = vpack.c.bf16 %v2624, %v2623
        %v2661 = vpack.c.bf16 %v2626, %v2625
        %v2662 = vpack.c.bf16 %v2628, %v2627
        %v2663 = vpack.c.bf16 %v2630, %v2629
        %v2664 = vpack.c.bf16 %v2632, %v2631
        %2665 = vmatpush.bf16.msra.mxu0 %v2640
        %2666 = vmatpush.bf16.msra.mxu0 %v2639
        %2667 = vmatpush.bf16.msra.mxu0 %v2638
        %2668 = vmatpush.bf16.msra.mxu0 %v2637
        %2669 = vmatpush.bf16.msra.mxu0 %v2636
        %2670 = vmatpush.bf16.msra.mxu0 %v2635
        %2671 = vmatpush.bf16.msra.mxu0 %v2634
        %2672 = vmatpush.bf16.msra.mxu0 %v2633
        %2673 = vmatmul.bf16.gmra.mxu0 %v1780
        %v2674 = vpop.f32.mrf.mxu0
        %v2675 = vadd.f32 %v1431, %v2674
        %v2676 = vpop.f32.mrf.mxu0
        %v2677 = vadd.f32 %v1436, %v2676
        %2678 = vmatmul.bf16.gmra.mxu0 %v1784
        %v2679 = vpop.f32.mrf.mxu0
        %v2680 = vadd.f32 %v1441, %v2679
        %v2681 = vpop.f32.mrf.mxu0
        %v2682 = vadd.f32 %v1446, %v2681
        %2683 = vmatmul.bf16.gmra.mxu0 %v1788
        %v2684 = vpop.f32.mrf.mxu0
        %v2685 = vadd.f32 %v1451, %v2684
        %v2686 = vpop.f32.mrf.mxu0
        %v2687 = vadd.f32 %v1456, %v2686
        %2688 = vmatmul.bf16.gmra.mxu0 %v1792
        %v2689 = vpop.f32.mrf.mxu0
        %v2690 = vadd.f32 %v1461, %v2689
        %v2691 = vpop.f32.mrf.mxu0
        %v2692 = vadd.f32 %v1466, %v2691
        %2693 = vmatmul.bf16.gmra.mxu0 %v1796
        %v2694 = vpop.f32.mrf.mxu0
        %v2695 = vadd.f32 %v1471, %v2694
        %v2696 = vpop.f32.mrf.mxu0
        %v2697 = vadd.f32 %v1476, %v2696
        %2698 = vmatmul.bf16.gmra.mxu0 %v1800
        %v2699 = vpop.f32.mrf.mxu0
        %v2700 = vadd.f32 %v1481, %v2699
        %v2701 = vpop.f32.mrf.mxu0
        %v2702 = vadd.f32 %v1486, %v2701
        %2703 = vmatmul.bf16.gmra.mxu0 %v1804
        %v2704 = vpop.f32.mrf.mxu0
        %v2705 = vadd.f32 %v1491, %v2704
        %v2706 = vpop.f32.mrf.mxu0
        %v2707 = vadd.f32 %v1496, %v2706
        %2708 = vmatmul.bf16.gmra.mxu0 %v1808
        %v2709 = vpop.f32.mrf.mxu0
        %v2710 = vadd.f32 %v1501, %v2709
        %v2711 = vpop.f32.mrf.mxu0
        %v2712 = vadd.f32 %v1506, %v2711
        %2713 = vmatmul.bf16.gmra.mxu0 %v1812
        %v2714 = vpop.f32.mrf.mxu0
        %v2715 = vadd.f32 %v1511, %v2714
        %v2716 = vpop.f32.mrf.mxu0
        %v2717 = vadd.f32 %v1516, %v2716
        %2718 = vmatmul.bf16.gmra.mxu0 %v1816
        %v2719 = vpop.f32.mrf.mxu0
        %v2720 = vadd.f32 %v1521, %v2719
        %v2721 = vpop.f32.mrf.mxu0
        %v2722 = vadd.f32 %v1526, %v2721
        %2723 = vmatmul.bf16.gmra.mxu0 %v1820
        %v2724 = vpop.f32.mrf.mxu0
        %v2725 = vadd.f32 %v1531, %v2724
        %v2726 = vpop.f32.mrf.mxu0
        %v2727 = vadd.f32 %v1536, %v2726
        %2728 = vmatmul.bf16.gmra.mxu0 %v1824
        %v2729 = vpop.f32.mrf.mxu0
        %v2730 = vadd.f32 %v1541, %v2729
        %v2731 = vpop.f32.mrf.mxu0
        %v2732 = vadd.f32 %v1546, %v2731
        %2733 = vmatmul.bf16.gmra.mxu0 %v1828
        %v2734 = vpop.f32.mrf.mxu0
        %v2735 = vadd.f32 %v1551, %v2734
        %v2736 = vpop.f32.mrf.mxu0
        %v2737 = vadd.f32 %v1556, %v2736
        %2738 = vmatmul.bf16.gmra.mxu0 %v1832
        %v2739 = vpop.f32.mrf.mxu0
        %v2740 = vadd.f32 %v1561, %v2739
        %v2741 = vpop.f32.mrf.mxu0
        %v2742 = vadd.f32 %v1566, %v2741
        %2743 = vmatmul.bf16.gmra.mxu0 %v1836
        %v2744 = vpop.f32.mrf.mxu0
        %v2745 = vadd.f32 %v1571, %v2744
        %v2746 = vpop.f32.mrf.mxu0
        %v2747 = vadd.f32 %v1576, %v2746
        %2748 = vmatmul.bf16.gmra.mxu0 %v1840
        %v2749 = vpop.f32.mrf.mxu0
        %v2750 = vadd.f32 %v1581, %v2749
        %v2751 = vpop.f32.mrf.mxu0
        %v2752 = vadd.f32 %v1586, %v2751
        %2753 = vdwg.mxu0
        %2754 = vmatpush.bf16.msra.mxu0 %v2648
        %2755 = vmatpush.bf16.msra.mxu0 %v2647
        %2756 = vmatpush.bf16.msra.mxu0 %v2646
        %2757 = vmatpush.bf16.msra.mxu0 %v2645
        %2758 = vmatpush.bf16.msra.mxu0 %v2644
        %2759 = vmatpush.bf16.msra.mxu0 %v2643
        %2760 = vmatpush.bf16.msra.mxu0 %v2642
        %2761 = vmatpush.bf16.msra.mxu0 %v2641
        %2762 = vmatmul.bf16.gmra.mxu0 %v1781
        %v2763 = vpop.f32.mrf.mxu0
        %v2764 = vadd.f32 %v2675, %v2763
        %v2765 = vpop.f32.mrf.mxu0
        %v2766 = vadd.f32 %v2677, %v2765
        %2767 = vmatmul.bf16.gmra.mxu0 %v1785
        %v2768 = vpop.f32.mrf.mxu0
        %v2769 = vadd.f32 %v2680, %v2768
        %v2770 = vpop.f32.mrf.mxu0
        %v2771 = vadd.f32 %v2682, %v2770
        %2772 = vmatmul.bf16.gmra.mxu0 %v1789
        %v2773 = vpop.f32.mrf.mxu0
        %v2774 = vadd.f32 %v2685, %v2773
        %v2775 = vpop.f32.mrf.mxu0
        %v2776 = vadd.f32 %v2687, %v2775
        %2777 = vmatmul.bf16.gmra.mxu0 %v1793
        %v2778 = vpop.f32.mrf.mxu0
        %v2779 = vadd.f32 %v2690, %v2778
        %v2780 = vpop.f32.mrf.mxu0
        %v2781 = vadd.f32 %v2692, %v2780
        %2782 = vmatmul.bf16.gmra.mxu0 %v1797
        %v2783 = vpop.f32.mrf.mxu0
        %v2784 = vadd.f32 %v2695, %v2783
        %v2785 = vpop.f32.mrf.mxu0
        %v2786 = vadd.f32 %v2697, %v2785
        %2787 = vmatmul.bf16.gmra.mxu0 %v1801
        %v2788 = vpop.f32.mrf.mxu0
        %v2789 = vadd.f32 %v2700, %v2788
        %v2790 = vpop.f32.mrf.mxu0
        %v2791 = vadd.f32 %v2702, %v2790
        %2792 = vmatmul.bf16.gmra.mxu0 %v1805
        %v2793 = vpop.f32.mrf.mxu0
        %v2794 = vadd.f32 %v2705, %v2793
        %v2795 = vpop.f32.mrf.mxu0
        %v2796 = vadd.f32 %v2707, %v2795
        %2797 = vmatmul.bf16.gmra.mxu0 %v1809
        %v2798 = vpop.f32.mrf.mxu0
        %v2799 = vadd.f32 %v2710, %v2798
        %v2800 = vpop.f32.mrf.mxu0
        %v2801 = vadd.f32 %v2712, %v2800
        %2802 = vmatmul.bf16.gmra.mxu0 %v1813
        %v2803 = vpop.f32.mrf.mxu0
        %v2804 = vadd.f32 %v2715, %v2803
        %v2805 = vpop.f32.mrf.mxu0
        %v2806 = vadd.f32 %v2717, %v2805
        %2807 = vmatmul.bf16.gmra.mxu0 %v1817
        %v2808 = vpop.f32.mrf.mxu0
        %v2809 = vadd.f32 %v2720, %v2808
        %v2810 = vpop.f32.mrf.mxu0
        %v2811 = vadd.f32 %v2722, %v2810
        %2812 = vmatmul.bf16.gmra.mxu0 %v1821
        %v2813 = vpop.f32.mrf.mxu0
        %v2814 = vadd.f32 %v2725, %v2813
        %v2815 = vpop.f32.mrf.mxu0
        %v2816 = vadd.f32 %v2727, %v2815
        %2817 = vmatmul.bf16.gmra.mxu0 %v1825
        %v2818 = vpop.f32.mrf.mxu0
        %v2819 = vadd.f32 %v2730, %v2818
        %v2820 = vpop.f32.mrf.mxu0
        %v2821 = vadd.f32 %v2732, %v2820
        %2822 = vmatmul.bf16.gmra.mxu0 %v1829
        %v2823 = vpop.f32.mrf.mxu0
        %v2824 = vadd.f32 %v2735, %v2823
        %v2825 = vpop.f32.mrf.mxu0
        %v2826 = vadd.f32 %v2737, %v2825
        %2827 = vmatmul.bf16.gmra.mxu0 %v1833
        %v2828 = vpop.f32.mrf.mxu0
        %v2829 = vadd.f32 %v2740, %v2828
        %v2830 = vpop.f32.mrf.mxu0
        %v2831 = vadd.f32 %v2742, %v2830
        %2832 = vmatmul.bf16.gmra.mxu0 %v1837
        %v2833 = vpop.f32.mrf.mxu0
        %v2834 = vadd.f32 %v2745, %v2833
        %v2835 = vpop.f32.mrf.mxu0
        %v2836 = vadd.f32 %v2747, %v2835
        %2837 = vmatmul.bf16.gmra.mxu0 %v1841
        %v2838 = vpop.f32.mrf.mxu0
        %v2839 = vadd.f32 %v2750, %v2838
        %v2840 = vpop.f32.mrf.mxu0
        %v2841 = vadd.f32 %v2752, %v2840
        %2842 = vdwg.mxu0
        %2843 = vmatpush.bf16.msra.mxu0 %v2656
        %2844 = vmatpush.bf16.msra.mxu0 %v2655
        %2845 = vmatpush.bf16.msra.mxu0 %v2654
        %2846 = vmatpush.bf16.msra.mxu0 %v2653
        %2847 = vmatpush.bf16.msra.mxu0 %v2652
        %2848 = vmatpush.bf16.msra.mxu0 %v2651
        %2849 = vmatpush.bf16.msra.mxu0 %v2650
        %2850 = vmatpush.bf16.msra.mxu0 %v2649
        %2851 = vmatmul.bf16.gmra.mxu0 %v1782
        %v2852 = vpop.f32.mrf.mxu0
        %v2853 = vadd.f32 %v2764, %v2852
        %v2854 = vpop.f32.mrf.mxu0
        %v2855 = vadd.f32 %v2766, %v2854
        %2856 = vmatmul.bf16.gmra.mxu0 %v1786
        %v2857 = vpop.f32.mrf.mxu0
        %v2858 = vadd.f32 %v2769, %v2857
        %v2859 = vpop.f32.mrf.mxu0
        %v2860 = vadd.f32 %v2771, %v2859
        %2861 = vmatmul.bf16.gmra.mxu0 %v1790
        %v2862 = vpop.f32.mrf.mxu0
        %v2863 = vadd.f32 %v2774, %v2862
        %v2864 = vpop.f32.mrf.mxu0
        %v2865 = vadd.f32 %v2776, %v2864
        %2866 = vmatmul.bf16.gmra.mxu0 %v1794
        %v2867 = vpop.f32.mrf.mxu0
        %v2868 = vadd.f32 %v2779, %v2867
        %v2869 = vpop.f32.mrf.mxu0
        %v2870 = vadd.f32 %v2781, %v2869
        %2871 = vmatmul.bf16.gmra.mxu0 %v1798
        %v2872 = vpop.f32.mrf.mxu0
        %v2873 = vadd.f32 %v2784, %v2872
        %v2874 = vpop.f32.mrf.mxu0
        %v2875 = vadd.f32 %v2786, %v2874
        %2876 = vmatmul.bf16.gmra.mxu0 %v1802
        %v2877 = vpop.f32.mrf.mxu0
        %v2878 = vadd.f32 %v2789, %v2877
        %v2879 = vpop.f32.mrf.mxu0
        %v2880 = vadd.f32 %v2791, %v2879
        %2881 = vmatmul.bf16.gmra.mxu0 %v1806
        %v2882 = vpop.f32.mrf.mxu0
        %v2883 = vadd.f32 %v2794, %v2882
        %v2884 = vpop.f32.mrf.mxu0
        %v2885 = vadd.f32 %v2796, %v2884
        %2886 = vmatmul.bf16.gmra.mxu0 %v1810
        %v2887 = vpop.f32.mrf.mxu0
        %v2888 = vadd.f32 %v2799, %v2887
        %v2889 = vpop.f32.mrf.mxu0
        %v2890 = vadd.f32 %v2801, %v2889
        %2891 = vmatmul.bf16.gmra.mxu0 %v1814
        %v2892 = vpop.f32.mrf.mxu0
        %v2893 = vadd.f32 %v2804, %v2892
        %v2894 = vpop.f32.mrf.mxu0
        %v2895 = vadd.f32 %v2806, %v2894
        %2896 = vmatmul.bf16.gmra.mxu0 %v1818
        %v2897 = vpop.f32.mrf.mxu0
        %v2898 = vadd.f32 %v2809, %v2897
        %v2899 = vpop.f32.mrf.mxu0
        %v2900 = vadd.f32 %v2811, %v2899
        %2901 = vmatmul.bf16.gmra.mxu0 %v1822
        %v2902 = vpop.f32.mrf.mxu0
        %v2903 = vadd.f32 %v2814, %v2902
        %v2904 = vpop.f32.mrf.mxu0
        %v2905 = vadd.f32 %v2816, %v2904
        %2906 = vmatmul.bf16.gmra.mxu0 %v1826
        %v2907 = vpop.f32.mrf.mxu0
        %v2908 = vadd.f32 %v2819, %v2907
        %v2909 = vpop.f32.mrf.mxu0
        %v2910 = vadd.f32 %v2821, %v2909
        %2911 = vmatmul.bf16.gmra.mxu0 %v1830
        %v2912 = vpop.f32.mrf.mxu0
        %v2913 = vadd.f32 %v2824, %v2912
        %v2914 = vpop.f32.mrf.mxu0
        %v2915 = vadd.f32 %v2826, %v2914
        %2916 = vmatmul.bf16.gmra.mxu0 %v1834
        %v2917 = vpop.f32.mrf.mxu0
        %v2918 = vadd.f32 %v2829, %v2917
        %v2919 = vpop.f32.mrf.mxu0
        %v2920 = vadd.f32 %v2831, %v2919
        %2921 = vmatmul.bf16.gmra.mxu0 %v1838
        %v2922 = vpop.f32.mrf.mxu0
        %v2923 = vadd.f32 %v2834, %v2922
        %v2924 = vpop.f32.mrf.mxu0
        %v2925 = vadd.f32 %v2836, %v2924
        %2926 = vmatmul.bf16.gmra.mxu0 %v1842
        %v2927 = vpop.f32.mrf.mxu0
        %v2928 = vadd.f32 %v2839, %v2927
        %v2929 = vpop.f32.mrf.mxu0
        %v2930 = vadd.f32 %v2841, %v2929
        %2931 = vdwg.mxu0
        %2932 = vmatpush.bf16.msra.mxu0 %v2664
        %2933 = vmatpush.bf16.msra.mxu0 %v2663
        %2934 = vmatpush.bf16.msra.mxu0 %v2662
        %2935 = vmatpush.bf16.msra.mxu0 %v2661
        %2936 = vmatpush.bf16.msra.mxu0 %v2660
        %2937 = vmatpush.bf16.msra.mxu0 %v2659
        %2938 = vmatpush.bf16.msra.mxu0 %v2658
        %2939 = vmatpush.bf16.msra.mxu0 %v2657
        %2940 = vmatmul.bf16.gmra.mxu0 %v1783
        %v2941 = vpop.f32.mrf.mxu0
        %v2942 = vadd.f32 %v2853, %v2941
        %v2943 = vpop.f32.mrf.mxu0
        %v2944 = vadd.f32 %v2855, %v2943
        %2945 = vmatmul.bf16.gmra.mxu0 %v1787
        %v2946 = vpop.f32.mrf.mxu0
        %v2947 = vadd.f32 %v2858, %v2946
        %v2948 = vpop.f32.mrf.mxu0
        %v2949 = vadd.f32 %v2860, %v2948
        %2950 = vmatmul.bf16.gmra.mxu0 %v1791
        %v2951 = vpop.f32.mrf.mxu0
        %v2952 = vadd.f32 %v2863, %v2951
        %v2953 = vpop.f32.mrf.mxu0
        %v2954 = vadd.f32 %v2865, %v2953
        %2955 = vmatmul.bf16.gmra.mxu0 %v1795
        %v2956 = vpop.f32.mrf.mxu0
        %v2957 = vadd.f32 %v2868, %v2956
        %v2958 = vpop.f32.mrf.mxu0
        %v2959 = vadd.f32 %v2870, %v2958
        %2960 = vmatmul.bf16.gmra.mxu0 %v1799
        %v2961 = vpop.f32.mrf.mxu0
        %v2962 = vadd.f32 %v2873, %v2961
        %v2963 = vpop.f32.mrf.mxu0
        %v2964 = vadd.f32 %v2875, %v2963
        %2965 = vmatmul.bf16.gmra.mxu0 %v1803
        %v2966 = vpop.f32.mrf.mxu0
        %v2967 = vadd.f32 %v2878, %v2966
        %v2968 = vpop.f32.mrf.mxu0
        %v2969 = vadd.f32 %v2880, %v2968
        %2970 = vmatmul.bf16.gmra.mxu0 %v1807
        %v2971 = vpop.f32.mrf.mxu0
        %v2972 = vadd.f32 %v2883, %v2971
        %v2973 = vpop.f32.mrf.mxu0
        %v2974 = vadd.f32 %v2885, %v2973
        %2975 = vmatmul.bf16.gmra.mxu0 %v1811
        %v2976 = vpop.f32.mrf.mxu0
        %v2977 = vadd.f32 %v2888, %v2976
        %v2978 = vpop.f32.mrf.mxu0
        %v2979 = vadd.f32 %v2890, %v2978
        %2980 = vmatmul.bf16.gmra.mxu0 %v1815
        %v2981 = vpop.f32.mrf.mxu0
        %v2982 = vadd.f32 %v2893, %v2981
        %v2983 = vpop.f32.mrf.mxu0
        %v2984 = vadd.f32 %v2895, %v2983
        %2985 = vmatmul.bf16.gmra.mxu0 %v1819
        %v2986 = vpop.f32.mrf.mxu0
        %v2987 = vadd.f32 %v2898, %v2986
        %v2988 = vpop.f32.mrf.mxu0
        %v2989 = vadd.f32 %v2900, %v2988
        %2990 = vmatmul.bf16.gmra.mxu0 %v1823
        %v2991 = vpop.f32.mrf.mxu0
        %v2992 = vadd.f32 %v2903, %v2991
        %v2993 = vpop.f32.mrf.mxu0
        %v2994 = vadd.f32 %v2905, %v2993
        %2995 = vmatmul.bf16.gmra.mxu0 %v1827
        %v2996 = vpop.f32.mrf.mxu0
        %v2997 = vadd.f32 %v2908, %v2996
        %v2998 = vpop.f32.mrf.mxu0
        %v2999 = vadd.f32 %v2910, %v2998
        %3000 = vmatmul.bf16.gmra.mxu0 %v1831
        %v3001 = vpop.f32.mrf.mxu0
        %v3002 = vadd.f32 %v2913, %v3001
        %v3003 = vpop.f32.mrf.mxu0
        %v3004 = vadd.f32 %v2915, %v3003
        %3005 = vmatmul.bf16.gmra.mxu0 %v1835
        %v3006 = vpop.f32.mrf.mxu0
        %v3007 = vadd.f32 %v2918, %v3006
        %v3008 = vpop.f32.mrf.mxu0
        %v3009 = vadd.f32 %v2920, %v3008
        %3010 = vmatmul.bf16.gmra.mxu0 %v1839
        %v3011 = vpop.f32.mrf.mxu0
        %v3012 = vadd.f32 %v2923, %v3011
        %v3013 = vpop.f32.mrf.mxu0
        %v3014 = vadd.f32 %v2925, %v3013
        %3015 = vmatmul.bf16.gmra.mxu0 %v1843
        %v3016 = vpop.f32.mrf.mxu0
        %v3017 = vadd.f32 %v2928, %v3016
        %v3018 = vpop.f32.mrf.mxu0
        %v3019 = vadd.f32 %v2930, %v3018
        %3020 = vdwg.mxu0
        %v3021 = vmax.f32 %v2942, 0.0
        %v3022 = vmax.f32 %v2944, 0.0
        %v3023 = vmax.f32 %v2947, 0.0
        %v3024 = vmax.f32 %v2949, 0.0
        %v3025 = vmax.f32 %v2952, 0.0
        %v3026 = vmax.f32 %v2954, 0.0
        %v3027 = vmax.f32 %v2957, 0.0
        %v3028 = vmax.f32 %v2959, 0.0
        %v3029 = vmax.f32 %v2962, 0.0
        %v3030 = vmax.f32 %v2964, 0.0
        %v3031 = vmax.f32 %v2967, 0.0
        %v3032 = vmax.f32 %v2969, 0.0
        %v3033 = vmax.f32 %v2972, 0.0
        %v3034 = vmax.f32 %v2974, 0.0
        %v3035 = vmax.f32 %v2977, 0.0
        %v3036 = vmax.f32 %v2979, 0.0
        %v3037 = vmax.f32 %v2982, 0.0
        %v3038 = vmax.f32 %v2984, 0.0
        %v3039 = vmax.f32 %v2987, 0.0
        %v3040 = vmax.f32 %v2989, 0.0
        %v3041 = vmax.f32 %v2992, 0.0
        %v3042 = vmax.f32 %v2994, 0.0
        %v3043 = vmax.f32 %v2997, 0.0
        %v3044 = vmax.f32 %v2999, 0.0
        %v3045 = vmax.f32 %v3002, 0.0
        %v3046 = vmax.f32 %v3004, 0.0
        %v3047 = vmax.f32 %v3007, 0.0
        %v3048 = vmax.f32 %v3009, 0.0
        %v3049 = vmax.f32 %v3012, 0.0
        %v3050 = vmax.f32 %v3014, 0.0
        %v3051 = vmax.f32 %v3017, 0.0
        %v3052 = vmax.f32 %v3019, 0.0
        %v3053 = vsel %vm2297, %v3021, 0.0
        %v3054 = vsel %vm2297, %v3022, 0.0
        %v3055 = vsel %vm2297, %v3023, 0.0
        %v3056 = vsel %vm2297, %v3024, 0.0
        %v3057 = vsel %vm2297, %v3025, 0.0
        %v3058 = vsel %vm2297, %v3026, 0.0
        %v3059 = vsel %vm2297, %v3027, 0.0
        %v3060 = vsel %vm2297, %v3028, 0.0
        %v3061 = vsel %vm2297, %v3029, 0.0
        %v3062 = vsel %vm2297, %v3030, 0.0
        %v3063 = vsel %vm2297, %v3031, 0.0
        %v3064 = vsel %vm2297, %v3032, 0.0
        %v3065 = vsel %vm2297, %v3033, 0.0
        %v3066 = vsel %vm2297, %v3034, 0.0
        %v3067 = vsel %vm2297, %v3035, 0.0
        %v3068 = vsel %vm2297, %v3036, 0.0
        %v3069 = vsel %vm2297, %v3037, 0.0
        %v3070 = vsel %vm2297, %v3038, 0.0
        %v3071 = vsel %vm2297, %v3039, 0.0
        %v3072 = vsel %vm2297, %v3040, 0.0
        %v3073 = vsel %vm2297, %v3041, 0.0
        %v3074 = vsel %vm2297, %v3042, 0.0
        %v3075 = vsel %vm2297, %v3043, 0.0
        %v3076 = vsel %vm2297, %v3044, 0.0
        %v3077 = vsel %vm2297, %v3045, 0.0
        %v3078 = vsel %vm2297, %v3046, 0.0
        %v3079 = vsel %vm2297, %v3047, 0.0
        %v3080 = vsel %vm2297, %v3048, 0.0
        %v3081 = vsel %vm2297, %v3049, 0.0
        %v3082 = vsel %vm2297, %v3050, 0.0
        %v3083 = vsel %vm2297, %v3051, 0.0
        %v3084 = vsel %vm2297, %v3052, 0.0
        %3085 = vadd.xlane.f32.xlu0 %v3053
        %v3086 = vpop.xlane.xlu0 %3085
        %3087 = vadd.xlane.f32.xlu0 %v3054
        %v3088 = vpop.xlane.xlu0 %3087
        %3089 = vadd.xlane.f32.xlu0 %v3055
        %v3090 = vpop.xlane.xlu0 %3089
        %3091 = vadd.xlane.f32.xlu0 %v3056
        %v3092 = vpop.xlane.xlu0 %3091
        %3093 = vadd.xlane.f32.xlu0 %v3057
        %v3094 = vpop.xlane.xlu0 %3093
        %3095 = vadd.xlane.f32.xlu0 %v3058
        %v3096 = vpop.xlane.xlu0 %3095
        %3097 = vadd.xlane.f32.xlu0 %v3059
        %v3098 = vpop.xlane.xlu0 %3097
        %3099 = vadd.xlane.f32.xlu0 %v3060
        %v3100 = vpop.xlane.xlu0 %3099
        %3101 = vadd.xlane.f32.xlu0 %v3061
        %v3102 = vpop.xlane.xlu0 %3101
        %3103 = vadd.xlane.f32.xlu0 %v3062
        %v3104 = vpop.xlane.xlu0 %3103
        %3105 = vadd.xlane.f32.xlu0 %v3063
        %v3106 = vpop.xlane.xlu0 %3105
        %3107 = vadd.xlane.f32.xlu0 %v3064
        %v3108 = vpop.xlane.xlu0 %3107
        %3109 = vadd.xlane.f32.xlu0 %v3065
        %v3110 = vpop.xlane.xlu0 %3109
        %3111 = vadd.xlane.f32.xlu0 %v3066
        %v3112 = vpop.xlane.xlu0 %3111
        %3113 = vadd.xlane.f32.xlu0 %v3067
        %v3114 = vpop.xlane.xlu0 %3113
        %3115 = vadd.xlane.f32.xlu0 %v3068
        %v3116 = vpop.xlane.xlu0 %3115
        %3117 = vadd.xlane.f32.xlu0 %v3069
        %v3118 = vpop.xlane.xlu0 %3117
        %3119 = vadd.xlane.f32.xlu0 %v3070
        %v3120 = vpop.xlane.xlu0 %3119
        %3121 = vadd.xlane.f32.xlu0 %v3071
        %v3122 = vpop.xlane.xlu0 %3121
        %3123 = vadd.xlane.f32.xlu0 %v3072
        %v3124 = vpop.xlane.xlu0 %3123
        %3125 = vadd.xlane.f32.xlu0 %v3073
        %v3126 = vpop.xlane.xlu0 %3125
        %3127 = vadd.xlane.f32.xlu0 %v3074
        %v3128 = vpop.xlane.xlu0 %3127
        %3129 = vadd.xlane.f32.xlu0 %v3075
        %v3130 = vpop.xlane.xlu0 %3129
        %3131 = vadd.xlane.f32.xlu0 %v3076
        %v3132 = vpop.xlane.xlu0 %3131
        %3133 = vadd.xlane.f32.xlu0 %v3077
        %v3134 = vpop.xlane.xlu0 %3133
        %3135 = vadd.xlane.f32.xlu0 %v3078
        %v3136 = vpop.xlane.xlu0 %3135
        %3137 = vadd.xlane.f32.xlu0 %v3079
        %v3138 = vpop.xlane.xlu0 %3137
        %3139 = vadd.xlane.f32.xlu0 %v3080
        %v3140 = vpop.xlane.xlu0 %3139
        %3141 = vadd.xlane.f32.xlu0 %v3081
        %v3142 = vpop.xlane.xlu0 %3141
        %3143 = vadd.xlane.f32.xlu0 %v3082
        %v3144 = vpop.xlane.xlu0 %3143
        %3145 = vadd.xlane.f32.xlu0 %v3083
        %v3146 = vpop.xlane.xlu0 %3145
        %3147 = vadd.xlane.f32.xlu0 %v3084
        %v3148 = vpop.xlane.xlu0 %3147
        %v3149 = vld [vmem:[#allocation2] sm:$0xff]
        %v3150 = vld [vmem:[#allocation2 + $0x8] sm:$0xff]
        %v3151 = vld [vmem:[#allocation2 + $0x10] sm:$0xff]
        %v3152 = vld [vmem:[#allocation2 + $0x18] sm:$0xff]
        %v3153 = vld [vmem:[#allocation2 + $0x20] sm:$0xff]
        %v3154 = vld [vmem:[#allocation2 + $0x28] sm:$0xff]
        %v3155 = vld [vmem:[#allocation2 + $0x30] sm:$0xff]
        %v3156 = vld [vmem:[#allocation2 + $0x38] sm:$0xff]
        %v3157 = vld [vmem:[#allocation2 + $0x40] sm:$0xff]
        %v3158 = vld [vmem:[#allocation2 + $0x48] sm:$0xff]
        %v3159 = vld [vmem:[#allocation2 + $0x50] sm:$0xff]
        %v3160 = vld [vmem:[#allocation2 + $0x58] sm:$0xff]
        %v3161 = vld [vmem:[#allocation2 + $0x60] sm:$0xff]
        %v3162 = vld [vmem:[#allocation2 + $0x68] sm:$0xff]
        %v3163 = vld [vmem:[#allocation2 + $0x70] sm:$0xff]
        %v3164 = vld [vmem:[#allocation2 + $0x78] sm:$0xff]
        %v3165 = vld [vmem:[#allocation2 + $0x80] sm:$0xff]
        %v3166 = vld [vmem:[#allocation2 + $0x88] sm:$0xff]
        %v3167 = vld [vmem:[#allocation2 + $0x90] sm:$0xff]
        %v3168 = vld [vmem:[#allocation2 + $0x98] sm:$0xff]
        %v3169 = vld [vmem:[#allocation2 + $0xa0] sm:$0xff]
        %v3170 = vld [vmem:[#allocation2 + $0xa8] sm:$0xff]
        %v3171 = vld [vmem:[#allocation2 + $0xb0] sm:$0xff]
        %v3172 = vld [vmem:[#allocation2 + $0xb8] sm:$0xff]
        %v3173 = vld [vmem:[#allocation2 + $0xc0] sm:$0xff]
        %v3174 = vld [vmem:[#allocation2 + $0xc8] sm:$0xff]
        %v3175 = vld [vmem:[#allocation2 + $0xd0] sm:$0xff]
        %v3176 = vld [vmem:[#allocation2 + $0xd8] sm:$0xff]
        %v3177 = vld [vmem:[#allocation2 + $0xe0] sm:$0xff]
        %v3178 = vld [vmem:[#allocation2 + $0xe8] sm:$0xff]
        %v3179 = vld [vmem:[#allocation2 + $0xf0] sm:$0xff]
        %v3180 = vld [vmem:[#allocation2 + $0xf8] sm:$0xff]
        %vm3181 = vcmask 7168
        %v3182 = vsel %vm3181, %v2331, %v3086
        %v3183 = vsel %vm3181, %v2333, %v3088
        %v3184 = vsel %vm3181, %v2335, %v3090
        %v3185 = vsel %vm3181, %v2337, %v3092
        %v3186 = vsel %vm3181, %v2339, %v3094
        %v3187 = vsel %vm3181, %v2341, %v3096
        %v3188 = vsel %vm3181, %v2343, %v3098
        %v3189 = vsel %vm3181, %v2345, %v3100
        %v3190 = vsel %vm3181, %v2347, %v3102
        %v3191 = vsel %vm3181, %v2349, %v3104
        %v3192 = vsel %vm3181, %v2351, %v3106
        %v3193 = vsel %vm3181, %v2353, %v3108
        %v3194 = vsel %vm3181, %v2355, %v3110
        %v3195 = vsel %vm3181, %v2357, %v3112
        %v3196 = vsel %vm3181, %v2359, %v3114
        %v3197 = vsel %vm3181, %v2361, %v3116
        %v3198 = vsel %vm3181, %v2363, %v3118
        %v3199 = vsel %vm3181, %v2365, %v3120
        %v3200 = vsel %vm3181, %v2367, %v3122
        %v3201 = vsel %vm3181, %v2369, %v3124
        %v3202 = vsel %vm3181, %v2371, %v3126
        %v3203 = vsel %vm3181, %v2373, %v3128
        %v3204 = vsel %vm3181, %v2375, %v3130
        %v3205 = vsel %vm3181, %v2377, %v3132
        %v3206 = vsel %vm3181, %v2379, %v3134
        %v3207 = vsel %vm3181, %v2381, %v3136
        %v3208 = vsel %vm3181, %v2383, %v3138
        %v3209 = vsel %vm3181, %v2385, %v3140
        %v3210 = vsel %vm3181, %v2387, %v3142
        %v3211 = vsel %vm3181, %v2389, %v3144
        %v3212 = vsel %vm3181, %v2391, %v3146
        %v3213 = vsel %vm3181, %v2393, %v3148
        %v3214 = vadd.f32 %v3149, %v3182
        %v3215 = vadd.f32 %v3150, %v3183
        %v3216 = vadd.f32 %v3151, %v3184
        %v3217 = vadd.f32 %v3152, %v3185
        %v3218 = vadd.f32 %v3153, %v3186
        %v3219 = vadd.f32 %v3154, %v3187
        %v3220 = vadd.f32 %v3155, %v3188
        %v3221 = vadd.f32 %v3156, %v3189
        %v3222 = vadd.f32 %v3157, %v3190
        %v3223 = vadd.f32 %v3158, %v3191
        %v3224 = vadd.f32 %v3159, %v3192
        %v3225 = vadd.f32 %v3160, %v3193
        %v3226 = vadd.f32 %v3161, %v3194
        %v3227 = vadd.f32 %v3162, %v3195
        %v3228 = vadd.f32 %v3163, %v3196
        %v3229 = vadd.f32 %v3164, %v3197
        %v3230 = vadd.f32 %v3165, %v3198
        %v3231 = vadd.f32 %v3166, %v3199
        %v3232 = vadd.f32 %v3167, %v3200
        %v3233 = vadd.f32 %v3168, %v3201
        %v3234 = vadd.f32 %v3169, %v3202
        %v3235 = vadd.f32 %v3170, %v3203
        %v3236 = vadd.f32 %v3171, %v3204
        %v3237 = vadd.f32 %v3172, %v3205
        %v3238 = vadd.f32 %v3173, %v3206
        %v3239 = vadd.f32 %v3174, %v3207
        %v3240 = vadd.f32 %v3175, %v3208
        %v3241 = vadd.f32 %v3176, %v3209
        %v3242 = vadd.f32 %v3177, %v3210
        %v3243 = vadd.f32 %v3178, %v3211
        %v3244 = vadd.f32 %v3179, %v3212
        %v3245 = vadd.f32 %v3180, %v3213
        %vm3246 = vcmask 15360
        %3247 = vst.msk [vmem:[#allocation2] sm:$0xff] %vm3246, %v3214
        %3248 = vst.msk [vmem:[#allocation2 + $0x8] sm:$0xff] %vm3246, %v3215
        %3249 = vst.msk [vmem:[#allocation2 + $0x10] sm:$0xff] %vm3246, %v3216
        %3250 = vst.msk [vmem:[#allocation2 + $0x18] sm:$0xff] %vm3246, %v3217
        %3251 = vst.msk [vmem:[#allocation2 + $0x20] sm:$0xff] %vm3246, %v3218
        %3252 = vst.msk [vmem:[#allocation2 + $0x28] sm:$0xff] %vm3246, %v3219
        %3253 = vst.msk [vmem:[#allocation2 + $0x30] sm:$0xff] %vm3246, %v3220
        %3254 = vst.msk [vmem:[#allocation2 + $0x38] sm:$0xff] %vm3246, %v3221
        %3255 = vst.msk [vmem:[#allocation2 + $0x40] sm:$0xff] %vm3246, %v3222
        %3256 = vst.msk [vmem:[#allocation2 + $0x48] sm:$0xff] %vm3246, %v3223
        %3257 = vst.msk [vmem:[#allocation2 + $0x50] sm:$0xff] %vm3246, %v3224
        %3258 = vst.msk [vmem:[#allocation2 + $0x58] sm:$0xff] %vm3246, %v3225
        %3259 = vst.msk [vmem:[#allocation2 + $0x60] sm:$0xff] %vm3246, %v3226
        %3260 = vst.msk [vmem:[#allocation2 + $0x68] sm:$0xff] %vm3246, %v3227
        %3261 = vst.msk [vmem:[#allocation2 + $0x70] sm:$0xff] %vm3246, %v3228
        %3262 = vst.msk [vmem:[#allocation2 + $0x78] sm:$0xff] %vm3246, %v3229
        %3263 = vst.msk [vmem:[#allocation2 + $0x80] sm:$0xff] %vm3246, %v3230
        %3264 = vst.msk [vmem:[#allocation2 + $0x88] sm:$0xff] %vm3246, %v3231
        %3265 = vst.msk [vmem:[#allocation2 + $0x90] sm:$0xff] %vm3246, %v3232
        %3266 = vst.msk [vmem:[#allocation2 + $0x98] sm:$0xff] %vm3246, %v3233
        %3267 = vst.msk [vmem:[#allocation2 + $0xa0] sm:$0xff] %vm3246, %v3234
        %3268 = vst.msk [vmem:[#allocation2 + $0xa8] sm:$0xff] %vm3246, %v3235
        %3269 = vst.msk [vmem:[#allocation2 + $0xb0] sm:$0xff] %vm3246, %v3236
        %3270 = vst.msk [vmem:[#allocation2 + $0xb8] sm:$0xff] %vm3246, %v3237
        %3271 = vst.msk [vmem:[#allocation2 + $0xc0] sm:$0xff] %vm3246, %v3238
        %3272 = vst.msk [vmem:[#allocation2 + $0xc8] sm:$0xff] %vm3246, %v3239
        %3273 = vst.msk [vmem:[#allocation2 + $0xd0] sm:$0xff] %vm3246, %v3240
        %3274 = vst.msk [vmem:[#allocation2 + $0xd8] sm:$0xff] %vm3246, %v3241
        %3275 = vst.msk [vmem:[#allocation2 + $0xe0] sm:$0xff] %vm3246, %v3242
        %3276 = vst.msk [vmem:[#allocation2 + $0xe8] sm:$0xff] %vm3246, %v3243
        %3277 = vst.msk [vmem:[#allocation2 + $0xf0] sm:$0xff] %vm3246, %v3244
        %3278 = vst.msk [vmem:[#allocation2 + $0xf8] sm:$0xff] %vm3246, %v3245
        %p3279 = scmp.eq.s32.totalorder %s19, 2
        // Predicated region
        $region94: #{tpu_custom_call.1} parent=84 // pred_check
          %p3280 = pneg %p3279
        $region95: #{tpu_custom_call.1} parent=84 // pred_check_branch
          %3282 = sbr.rel (%p3280) target = $region97
        $region96: #{tpu_custom_call.1} parent=84 // pred_region
          %v3283 = vld [vmem:[#allocation2] sm:$0xff]
          %v3284 = vld [vmem:[#allocation2 + $0x8] sm:$0xff]
          %v3285 = vld [vmem:[#allocation2 + $0x10] sm:$0xff]
          %v3286 = vld [vmem:[#allocation2 + $0x18] sm:$0xff]
          %v3287 = vld [vmem:[#allocation2 + $0x20] sm:$0xff]
          %v3288 = vld [vmem:[#allocation2 + $0x28] sm:$0xff]
          %v3289 = vld [vmem:[#allocation2 + $0x30] sm:$0xff]
          %v3290 = vld [vmem:[#allocation2 + $0x38] sm:$0xff]
          %v3291 = vld [vmem:[#allocation2 + $0x40] sm:$0xff]
          %v3292 = vld [vmem:[#allocation2 + $0x48] sm:$0xff]
          %v3293 = vld [vmem:[#allocation2 + $0x50] sm:$0xff]
          %v3294 = vld [vmem:[#allocation2 + $0x58] sm:$0xff]
          %v3295 = vld [vmem:[#allocation2 + $0x60] sm:$0xff]
          %v3296 = vld [vmem:[#allocation2 + $0x68] sm:$0xff]
          %v3297 = vld [vmem:[#allocation2 + $0x70] sm:$0xff]
          %v3298 = vld [vmem:[#allocation2 + $0x78] sm:$0xff]
          %v3299 = vld [vmem:[#allocation2 + $0x80] sm:$0xff]
          %v3300 = vld [vmem:[#allocation2 + $0x88] sm:$0xff]
          %v3301 = vld [vmem:[#allocation2 + $0x90] sm:$0xff]
          %v3302 = vld [vmem:[#allocation2 + $0x98] sm:$0xff]
          %v3303 = vld [vmem:[#allocation2 + $0xa0] sm:$0xff]
          %v3304 = vld [vmem:[#allocation2 + $0xa8] sm:$0xff]
          %v3305 = vld [vmem:[#allocation2 + $0xb0] sm:$0xff]
          %v3306 = vld [vmem:[#allocation2 + $0xb8] sm:$0xff]
          %v3307 = vld [vmem:[#allocation2 + $0xc0] sm:$0xff]
          %v3308 = vld [vmem:[#allocation2 + $0xc8] sm:$0xff]
          %v3309 = vld [vmem:[#allocation2 + $0xd0] sm:$0xff]
          %v3310 = vld [vmem:[#allocation2 + $0xd8] sm:$0xff]
          %v3311 = vld [vmem:[#allocation2 + $0xe0] sm:$0xff]
          %v3312 = vld [vmem:[#allocation2 + $0xe8] sm:$0xff]
          %v3313 = vld [vmem:[#allocation2 + $0xf0] sm:$0xff]
          %v3314 = vld [vmem:[#allocation2 + $0xf8] sm:$0xff]
          %v3315 = vmul.f32 %v3283, 0.0033333334
          %v3316 = vmul.f32 %v3284, 0.0033333334
          %v3317 = vmul.f32 %v3285, 0.0033333334
          %v3318 = vmul.f32 %v3286, 0.0033333334
          %v3319 = vmul.f32 %v3287, 0.0033333334
          %v3320 = vmul.f32 %v3288, 0.0033333334
          %v3321 = vmul.f32 %v3289, 0.0033333334
          %v3322 = vmul.f32 %v3290, 0.0033333334
          %v3323 = vmul.f32 %v3291, 0.0033333334
          %v3324 = vmul.f32 %v3292, 0.0033333334
          %v3325 = vmul.f32 %v3293, 0.0033333334
          %v3326 = vmul.f32 %v3294, 0.0033333334
          %v3327 = vmul.f32 %v3295, 0.0033333334
          %v3328 = vmul.f32 %v3296, 0.0033333334
          %v3329 = vmul.f32 %v3297, 0.0033333334
          %v3330 = vmul.f32 %v3298, 0.0033333334
          %v3331 = vmul.f32 %v3299, 0.0033333334
          %v3332 = vmul.f32 %v3300, 0.0033333334
          %v3333 = vmul.f32 %v3301, 0.0033333334
          %v3334 = vmul.f32 %v3302, 0.0033333334
          %v3335 = vmul.f32 %v3303, 0.0033333334
          %v3336 = vmul.f32 %v3304, 0.0033333334
          %v3337 = vmul.f32 %v3305, 0.0033333334
          %v3338 = vmul.f32 %v3306, 0.0033333334
          %v3339 = vmul.f32 %v3307, 0.0033333334
          %v3340 = vmul.f32 %v3308, 0.0033333334
          %v3341 = vmul.f32 %v3309, 0.0033333334
          %v3342 = vmul.f32 %v3310, 0.0033333334
          %v3343 = vmul.f32 %v3311, 0.0033333334
          %v3344 = vmul.f32 %v3312, 0.0033333334
          %v3345 = vmul.f32 %v3313, 0.0033333334
          %v3346 = vmul.f32 %v3314, 0.0033333334
          %3347 = vxpose.xlu0.b32.start [1/16] %v3315, 128
          %3348 = vxpose.xlu0.b32.cont [2/16] %v3316, 128
          %3349 = vxpose.xlu0.b32.cont [3/16] %v3317, 128
          %3350 = vxpose.xlu0.b32.cont [4/16] %v3318, 128
          %3351 = vxpose.xlu0.b32.cont [5/16] %v3319, 128
          %3352 = vxpose.xlu0.b32.cont [6/16] %v3320, 128
          %3353 = vxpose.xlu0.b32.cont [7/16] %v3321, 128
          %3354 = vxpose.xlu0.b32.cont [8/16] %v3322, 128
          %3355 = vxpose.xlu0.b32.cont [9/16] %v3323, 128
          %3356 = vxpose.xlu0.b32.cont [10/16] %v3324, 128
          %3357 = vxpose.xlu0.b32.cont [11/16] %v3325, 128
          %3358 = vxpose.xlu0.b32.cont [12/16] %v3326, 128
          %3359 = vxpose.xlu0.b32.cont [13/16] %v3327, 128
          %3360 = vxpose.xlu0.b32.cont [14/16] %v3328, 128
          %3361 = vxpose.xlu0.b32.cont [15/16] %v3329, 128
          %3362 = vxpose.xlu0.b32.end [16/16] %v3330, 128
          %v3363 = vpop.trf.xlu0
          %v3364 = vpop.trf.xlu0
          %v3365 = vpop.trf.xlu0
          %v3366 = vpop.trf.xlu0
          %v3367 = vpop.trf.xlu0
          %v3368 = vpop.trf.xlu0
          %v3369 = vpop.trf.xlu0
          %v3370 = vpop.trf.xlu0
          %v3371 = vpop.trf.xlu0
          %v3372 = vpop.trf.xlu0
          %v3373 = vpop.trf.xlu0
          %v3374 = vpop.trf.xlu0
          %v3375 = vpop.trf.xlu0
          %v3376 = vpop.trf.xlu0
          %v3377 = vpop.trf.xlu0
          %v3378 = vpop.trf.xlu0
          %3379 = vxpose.xlu0.b32.start [1/16] %v3331, 128
          %3380 = vxpose.xlu0.b32.cont [2/16] %v3332, 128
          %3381 = vxpose.xlu0.b32.cont [3/16] %v3333, 128
          %3382 = vxpose.xlu0.b32.cont [4/16] %v3334, 128
          %3383 = vxpose.xlu0.b32.cont [5/16] %v3335, 128
          %3384 = vxpose.xlu0.b32.cont [6/16] %v3336, 128
          %3385 = vxpose.xlu0.b32.cont [7/16] %v3337, 128
          %3386 = vxpose.xlu0.b32.cont [8/16] %v3338, 128
          %3387 = vxpose.xlu0.b32.cont [9/16] %v3339, 128
          %3388 = vxpose.xlu0.b32.cont [10/16] %v3340, 128
          %3389 = vxpose.xlu0.b32.cont [11/16] %v3341, 128
          %3390 = vxpose.xlu0.b32.cont [12/16] %v3342, 128
          %3391 = vxpose.xlu0.b32.cont [13/16] %v3343, 128
          %3392 = vxpose.xlu0.b32.cont [14/16] %v3344, 128
          %3393 = vxpose.xlu0.b32.cont [15/16] %v3345, 128
          %3394 = vxpose.xlu0.b32.end [16/16] %v3346, 128
          %v3395 = vpop.trf.xlu0
          %v3396 = vpop.trf.xlu0
          %v3397 = vpop.trf.xlu0
          %v3398 = vpop.trf.xlu0
          %v3399 = vpop.trf.xlu0
          %v3400 = vpop.trf.xlu0
          %v3401 = vpop.trf.xlu0
          %v3402 = vpop.trf.xlu0
          %v3403 = vpop.trf.xlu0
          %v3404 = vpop.trf.xlu0
          %v3405 = vpop.trf.xlu0
          %v3406 = vpop.trf.xlu0
          %v3407 = vpop.trf.xlu0
          %v3408 = vpop.trf.xlu0
          %v3409 = vpop.trf.xlu0
          %v3410 = vpop.trf.xlu0
          %v3411 = vld [vmem:[%s5] sm:$0xff]
          %v3412 = vld [vmem:[%s5 + $0x8] sm:$0xff]
          %v3413 = vld [vmem:[%s5 + $0x10] sm:$0xff]
          %v3414 = vld [vmem:[%s5 + $0x18] sm:$0xff]
          %v3415 = vld [vmem:[%s5 + $0x20] sm:$0xff]
          %v3416 = vld [vmem:[%s5 + $0x28] sm:$0xff]
          %v3417 = vld [vmem:[%s5 + $0x30] sm:$0xff]
          %v3418 = vld [vmem:[%s5 + $0x38] sm:$0xff]
          %v3419 = vld [vmem:[%s5 + $0x40] sm:$0xff]
          %v3420 = vld [vmem:[%s5 + $0x48] sm:$0xff]
          %v3421 = vld [vmem:[%s5 + $0x50] sm:$0xff]
          %v3422 = vld [vmem:[%s5 + $0x58] sm:$0xff]
          %v3423 = vld [vmem:[%s5 + $0x60] sm:$0xff]
          %v3424 = vld [vmem:[%s5 + $0x68] sm:$0xff]
          %v3425 = vld [vmem:[%s5 + $0x70] sm:$0xff]
          %v3426 = vld [vmem:[%s5 + $0x78] sm:$0xff]
          %v3427 = vld [vmem:[%s5 + $0x80] sm:$0xff]
          %v3428 = vld [vmem:[%s5 + $0x88] sm:$0xff]
          %v3429 = vld [vmem:[%s5 + $0x90] sm:$0xff]
          %v3430 = vld [vmem:[%s5 + $0x98] sm:$0xff]
          %v3431 = vld [vmem:[%s5 + $0xa0] sm:$0xff]
          %v3432 = vld [vmem:[%s5 + $0xa8] sm:$0xff]
          %v3433 = vld [vmem:[%s5 + $0xb0] sm:$0xff]
          %v3434 = vld [vmem:[%s5 + $0xb8] sm:$0xff]
          %v3435 = vld [vmem:[%s5 + $0xc0] sm:$0xff]
          %v3436 = vld [vmem:[%s5 + $0xc8] sm:$0xff]
          %v3437 = vld [vmem:[%s5 + $0xd0] sm:$0xff]
          %v3438 = vld [vmem:[%s5 + $0xd8] sm:$0xff]
          %v3439 = vld [vmem:[%s5 + $0xe0] sm:$0xff]
          %v3440 = vld [vmem:[%s5 + $0xe8] sm:$0xff]
          %v3441 = vld [vmem:[%s5 + $0xf0] sm:$0xff]
          %v3442 = vld [vmem:[%s5 + $0xf8] sm:$0xff]
          %v3443 = vld [vmem:[%s6] sm:$0x1]
          %v3445 = vperm.slane %v3443, 0
          %3447 = vmatpush.msra.mxu0 %v3426
          %3448 = vmatpush.msra.mxu0 %v3425
          %3449 = vmatpush.msra.mxu0 %v3424
          %3450 = vmatpush.msra.mxu0 %v3423
          %3451 = vmatpush.msra.mxu0 %v3422
          %3452 = vmatpush.msra.mxu0 %v3421
          %3453 = vmatpush.msra.mxu0 %v3420
          %3454 = vmatpush.msra.mxu0 %v3419
          %3455 = vmatpush.msra.mxu0 %v3418
          %3456 = vmatpush.msra.mxu0 %v3417
          %3457 = vmatpush.msra.mxu0 %v3416
          %3458 = vmatpush.msra.mxu0 %v3415
          %3459 = vmatpush.msra.mxu0 %v3414
          %3460 = vmatpush.msra.mxu0 %v3413
          %3461 = vmatpush.msra.mxu0 %v3412
          %3462 = vmatpush.msra.mxu0 %v3411
          %3463 = vmatmul.f32.gmra.mxu0 %v3363
          %v3464 = vpop.f32.mrf.mxu0
          %v3465 = vadd.f32 %v3445, %v3464
          %3466 = vdwg.mxu0
          %3467 = vmatpush.msra.mxu0 %v3442
          %3468 = vmatpush.msra.mxu0 %v3441
          %3469 = vmatpush.msra.mxu0 %v3440
          %3470 = vmatpush.msra.mxu0 %v3439
          %3471 = vmatpush.msra.mxu0 %v3438
          %3472 = vmatpush.msra.mxu0 %v3437
          %3473 = vmatpush.msra.mxu0 %v3436
          %3474 = vmatpush.msra.mxu0 %v3435
          %3475 = vmatpush.msra.mxu0 %v3434
          %3476 = vmatpush.msra.mxu0 %v3433
          %3477 = vmatpush.msra.mxu0 %v3432
          %3478 = vmatpush.msra.mxu0 %v3431
          %3479 = vmatpush.msra.mxu0 %v3430
          %3480 = vmatpush.msra.mxu0 %v3429
          %3481 = vmatpush.msra.mxu0 %v3428
          %3482 = vmatpush.msra.mxu0 %v3427
          %3483 = vmatmul.f32.gmra.mxu0 %v3395
          %v3484 = vpop.f32.mrf.mxu0
          %v3485 = vadd.f32 %v3465, %v3484
          %3486 = vdwg.mxu0
          %vm3487 = vcmask 9216
          %3488 = vst.msk [vmem:[#allocation4] sm:$0x3] %vm3487, %v3485
        $region97: #{tpu_custom_call.1} parent=84 // pred_fallthru
          _
        // Predicated region
        $region98: #{tpu_custom_call.1} parent=84 // pred_check
          %p3489 = pneg %p184
        $region99: #{tpu_custom_call.1} parent=84 // pred_check_branch
          %3491 = sbr.rel (%p3489) target = $region101
        $region100: #{tpu_custom_call.1} parent=84 // pred_region
          %3493 = vsyncadd [#allocation5], 0
          %s3495 = sshll.u32 [#allocation4], 4
          %s3496 = int_to_ptr.vmem [resolvable:$true] %s3495
          %s3497 = sshll.u32 %s7, 4
          %s3498 = int_to_ptr.hbm [resolvable:$true] %s3497
          %3500 = dma.vmem_to_hbm [thread:$0]  %s3496, 32, %s3498, [#allocation5]
        $region101: #{tpu_custom_call.1} parent=84 // pred_fallthru
          _
        // Predicated region
        $region102: #{tpu_custom_call.1} parent=84 // pred_check
          %p3501 = pneg %p184
        $region103: #{tpu_custom_call.1} parent=84 // pred_check_branch
          %3503 = sbr.rel (%p3501) target = $region105
        $region104: #{tpu_custom_call.1} parent=84 // pred_region
          %3505 = dma.done [#allocation5], 32
        $region105: #{tpu_custom_call.1} parent=84 // pred_fallthru
          _
      $region85: #{tpu_custom_call.1} parent=5 // pred_fallthru
        _
      %p3506 = scmp.le.s32.totalorder 2, %s14
      // Predicated region
      $region106: #{tpu_custom_call.1} parent=5 // pred_check
        %p3507 = pneg %p3506
      $region107: #{tpu_custom_call.1} parent=5 // pred_check_branch
        %3509 = sbr.rel (%p3507) target = $region109
      $region108: #{tpu_custom_call.1} parent=5 // pred_region
        %s3510 = ssub.s32 %s14, 2
      $region109: #{tpu_custom_call.1} parent=5 // pred_fallthru
        _
    $region6: #{tpu_custom_call.1} parent=1 // loop_footer
      %s18 = sadd.s32 1, %s14
    $region7: #{tpu_custom_call.1} parent=1 // loop_footer_branch
      %13 = sbr.rel target = $region3
    $region8: #{tpu_custom_call.1} parent=1 // loop_exit
      _
    %3511 = vsyncpa [#allocation5], 1
    %s3512 = scalar_lea.sflag [#allocation5], 1
    %3513 = vsyncpa %s3512, 1

</llo_original>
